<compile_context>
chip_gen: v6e
topology: v6e:2x2x1
jax: 0.10.0
libtpu: 0.0.40
codegen_flags: <defaults>
</compile_context>

<pallas_src>
import functools

import jax
import jax.numpy as jnp
import numpy as np
from jax import lax
from jax.experimental import pallas as pl
from jax.experimental.pallas import tpu as pltpu

EPS = 1e-5
EXPANSION = 4


def _vmem_limit_bytes():
    cap = 64 * 1024 * 1024
    try:
        cap = int(getattr(pltpu.get_tpu_info(), "vmem_capacity_bytes", cap))
    except Exception:
        pass
    # keep headroom for Mosaic's own scratch; never exceed 96 MiB
    return int(min(cap * 3 // 4, 96 * 1024 * 1024))


VMEM_LIMIT = _vmem_limit_bytes()


# ------------------------------ small helpers ------------------------------

def _cparams(semantics):
    return pltpu.CompilerParams(dimension_semantics=semantics,
                                vmem_limit_bytes=VMEM_LIMIT)


def _pick_row_tile(m, bytes_per_row, fixed_bytes=0):
    """Row-tile for the (M, C) kernels, sized from the per-row VMEM footprint.
    Keeps >= 2 tiles when possible so v7x megacore sharding has work."""
    budget = max(VMEM_LIMIT // 3 - fixed_bytes, 8 * bytes_per_row)
    target = max(8, min(2048, budget // max(bytes_per_row, 1)))
    if m >= 64:
        target = min(target, m // 2)          # at least 2 grid steps
    target = max(8, (target // 8) * 8)
    if m <= target:
        return m
    best = 0
    t = 8
    while t <= target:                        # largest multiple-of-8 divisor
        if m % t == 0:
            best = t
        t += 8
    if best:
        return best
    # TODO(synk): pad M with zero rows to a fixed tile multiple instead of
    # falling back to coarse divisors for awkward N*H*W.
    for t in range(target, 0, -1):
        if m % t == 0:
            return t
    return m


def _pick_batch_group(n, per_img_bytes, budget):
    """Largest divisor of n whose conv-block footprint fits, but keep >= 2
    grid steps when n > 1 (pipelining + megacore)."""
    best = 1
    for cand in range(1, n + 1):
        if n % cand == 0 and cand * per_img_bytes <= budget:
            best = cand
    if best == n and n > 1:
        for cand in range(n // 2, 0, -1):
            if n % cand == 0:
                return cand
    return best


def _scale_shift(st, gamma, beta, count):
    """Per-channel BN affine (scale, shift) from reduced (sum, sumsq). Tiny
    (C,)-sized JAX computation, done once per BN outside the kernels."""
    mean = st[0] / count
    var = jnp.maximum(st[1] / count - mean * mean, 0.0)   # biased variance
    scale = gamma * lax.rsqrt(var + EPS)
    shift = beta - mean * scale
    return scale.reshape(1, -1), shift.reshape(1, -1)


def _tile_stats(y):
    """(1, 2, C) partial BN statistics (sum, sum-of-squares) for one tile."""
    return jnp.concatenate(
        [jnp.sum(y, axis=0, keepdims=True),
         jnp.sum(y * y, axis=0, keepdims=True)], axis=0).reshape(1, 2, -1)


# ------------------------------ Pallas kernels ------------------------------

def _matmul_stats_kernel(x_ref, w_ref, y_ref, st_ref):
    """y = x @ w (bf16 operands, f32 accum); per-tile BN partial stats."""
    y = jnp.dot(x_ref[...], w_ref[...], preferred_element_type=jnp.float32)
    y_ref[...] = y.astype(y_ref.dtype)
    st_ref[...] = _tile_stats(y)


def _conv3x3_kernel(ph_ref, mask_ref, sc1_ref, sh1_ref, w2_ref, y_ref, st_ref,
                    *, stride, ho, wo, gb, p):
    """Fused BN1+ReLU apply + 3x3 conv (pad=1, stride) over a batch group.
    The 9 shifted windows are concatenated along K and fed to ONE MXU dot
    (K = 9*planes). Per-tile BN2 partial stats are emitted."""
    s = stride
    rows = gb * ho * wo
    # BN1 + ReLU applied once to the whole loaded phase block (f32 affine),
    # then the static mask restores the conv's zero-padding semantics.
    h = jnp.maximum(ph_ref[...].astype(jnp.float32) * sc1_ref[...]
                    + sh1_ref[...], 0.0)
    h = h.astype(jnp.bfloat16) * mask_ref[...]
    # TODO(synk): the c0-offset width slices below are unaligned sublane
    # slices (in-VMEM relayouts); a pre-shifted phase layout would avoid them.
    wins = []
    for dy in range(3):
        for dx in range(3):
            phase = (dy % s) * s + (dx % s)
            r0, c0 = dy // s, dx // s
            wins.append(h[phase, :, r0:r0 + ho, c0:c0 + wo, :].reshape(rows, p))
    big = jnp.concatenate(wins, axis=-1)                     # (rows, 9p)
    acc = jnp.dot(big, w2_ref[...], preferred_element_type=jnp.float32)
    y_ref[...] = acc.reshape(gb, ho, wo, p).astype(y_ref.dtype)
    st_ref[...] = _tile_stats(acc)


def _stage3_proj_kernel(y2_ref, sc2_ref, sh2_ref, w3_ref, xs_ref, ws_ref,
                        y3_ref, ys_ref, st3_ref, sts_ref):
    """BN2+ReLU apply fused with both 1x1 projections (main + shortcut);
    per-tile BN3 / BN_shortcut partial stats."""
    h2 = jnp.maximum(y2_ref[...].astype(jnp.float32) * sc2_ref[...]
                     + sh2_ref[...], 0.0)
    y3 = jnp.dot(h2.astype(jnp.bfloat16), w3_ref[...],
                 preferred_element_type=jnp.float32)
    ys = jnp.dot(xs_ref[...], ws_ref[...], preferred_element_type=jnp.float32)
    y3_ref[...] = y3.astype(y3_ref.dtype)
    ys_ref[...] = ys.astype(ys_ref.dtype)
    st3_ref[...] = _tile_stats(y3)
    sts_ref[...] = _tile_stats(ys)


def _stage3_id_kernel(y2_ref, sc2_ref, sh2_ref, w3_ref, y3_ref, st3_ref):
    h2 = jnp.maximum(y2_ref[...].astype(jnp.float32) * sc2_ref[...]
                     + sh2_ref[...], 0.0)
    y3 = jnp.dot(h2.astype(jnp.bfloat16), w3_ref[...],
                 preferred_element_type=jnp.float32)
    y3_ref[...] = y3.astype(y3_ref.dtype)
    st3_ref[...] = _tile_stats(y3)


def _final_proj_kernel(y3_ref, ys_ref, a3_ref, c3_ref, as_ref, cs_ref, o_ref):
    out = (y3_ref[...].astype(jnp.float32) * a3_ref[...] + c3_ref[...]
           + ys_ref[...].astype(jnp.float32) * as_ref[...] + cs_ref[...])
    o_ref[...] = jnp.maximum(out, 0.0)


def _final_id_kernel(y3_ref, a3_ref, c3_ref, xres_ref, o_ref):
    out = (y3_ref[...].astype(jnp.float32) * a3_ref[...] + c3_ref[...]
           + xres_ref[...].astype(jnp.float32))
    o_ref[...] = jnp.maximum(out, 0.0)


# --------------------------- pallas_call wrappers ---------------------------

def _matmul_stats(x2d, w):
    m, k = x2d.shape
    c = w.shape[1]
    bpr = 2 * k + 2 * c + 4 * c
    tm = _pick_row_tile(m, bpr, fixed_bytes=4 * k * c)
    nb = m // tm
    y, st = pl.pallas_call(
        _matmul_stats_kernel,
        grid=(nb,),
        in_specs=[pl.BlockSpec((tm, k), lambda i: (i, 0)),
                  pl.BlockSpec((k, c), lambda i: (0, 0))],
        out_specs=[pl.BlockSpec((tm, c), lambda i: (i, 0)),
                   pl.BlockSpec((1, 2, c), lambda i: (i, 0, 0))],
        out_shape=[jax.ShapeDtypeStruct((m, c), jnp.bfloat16),
                   jax.ShapeDtypeStruct((nb, 2, c), jnp.float32)],
        compiler_params=_cparams(("parallel",)),
        cost_estimate=pl.CostEstimate(
            flops=int(2 * m * k * c), transcendentals=0,
            bytes_accessed=int(2 * m * k + 2 * k * c + 2 * m * c + 8 * nb * c)),
    )(x2d, w)
    return y, jnp.sum(st, axis=0)


def _make_phases(y1_nhwc, s):
    """Zero-pad (pad=1) and split into stride*stride spatial phases
    (space-to-depth) so the conv kernel only needs static slices.  Also build
    the static 0/1 mask that marks non-padding positions (BN1 is applied
    in-kernel, so pad zeros must be re-zeroed after the affine)."""
    n, h, w, p = y1_nhwc.shape
    hp = jnp.pad(y1_nhwc, ((0, 0), (1, 1), (1, 1), (0, 0)))
    hpp = -(-(h + 2) // s)
    wpp = -(-(w + 2) // s)
    hp = jnp.pad(hp, ((0, 0), (0, hpp * s - (h + 2)),
                      (0, wpp * s - (w + 2)), (0, 0)))
    phases = jnp.stack([hp[:, py::s, px::s, :]
                        for py in range(s) for px in range(s)], axis=0)
    mask_np = np.zeros((s * s, 1, hpp, wpp, 1), np.float32)
    for py in range(s):
        for px in range(s):
            rr = np.arange(hpp) * s + py
            cc = np.arange(wpp) * s + px
            valid = (((rr >= 1) & (rr <= h))[:, None]
                     & ((cc >= 1) & (cc <= w))[None, :])
            mask_np[py * s + px, 0, :, :, 0] = valid.astype(np.float32)
    mask = jnp.asarray(np.broadcast_to(mask_np, (s * s, 1, hpp, wpp, p)),
                       dtype=jnp.bfloat16)
    return phases, mask                      # (s*s, n, hpp, wpp, p), mask


def _conv3x3_fused(phases, mask, sc1, sh1, w2r, stride, ho, wo):
    s2, n, hpp, wpp, p = phases.shape
    per_img = 10 * s2 * hpp * wpp * p + 26 * ho * wo * p
    fixed = 4 * s2 * hpp * wpp * p + 4 * 9 * p * p
    gb = _pick_batch_group(n, per_img, max(VMEM_LIMIT // 2 - fixed, per_img))
    nb = n // gb
    kern = functools.partial(_conv3x3_kernel, stride=stride,
                             ho=ho, wo=wo, gb=gb, p=p)
    # TODO(synk): for small-batch / large-image layers add a second 'parallel'
    # grid axis over output-row tiles (needs overlapping-row block handling).
    y2, st = pl.pallas_call(
        kern, grid=(nb,),
        in_specs=[pl.BlockSpec((s2, gb, hpp, wpp, p), lambda b: (0, b, 0, 0, 0)),
                  pl.BlockSpec((s2, 1, hpp, wpp, p), lambda b: (0, 0, 0, 0, 0)),
                  pl.BlockSpec((1, p), lambda b: (0, 0)),
                  pl.BlockSpec((1, p), lambda b: (0, 0)),
                  pl.BlockSpec((9 * p, p), lambda b: (0, 0))],
        out_specs=[pl.BlockSpec((gb, ho, wo, p), lambda b: (b, 0, 0, 0)),
                   pl.BlockSpec((1, 2, p), lambda b: (b, 0, 0))],
        out_shape=[jax.ShapeDtypeStruct((n, ho, wo, p), jnp.bfloat16),
                   jax.ShapeDtypeStruct((nb, 2, p), jnp.float32)],
        compiler_params=_cparams(("parallel",)),
        cost_estimate=pl.CostEstimate(
            flops=int(2 * 9 * n * ho * wo * p * p), transcendentals=0,
            bytes_accessed=int(2 * s2 * n * hpp * wpp * p + 18 * p * p
                               + 2 * n * ho * wo * p)),
    )(phases, mask, sc1, sh1, w2r)
    return y2, jnp.sum(st, axis=0)


def _stage3_proj(y2, sc2, sh2, w3, xs, ws):
    m, p = y2.shape
    cin = xs.shape[1]
    cout = w3.shape[1]
    bpr = 2 * p + 2 * cin + 4 * p + 4 * cout + 8 * cout
    fixed = 4 * (p * cout + cin * cout)
    tm = _pick_row_tile(m, bpr, fixed_bytes=fixed)
    nb = m // tm
    y3, ys, st3, sts = pl.pallas_call(
        _stage3_proj_kernel, grid=(nb,),
        in_specs=[pl.BlockSpec((tm, p), lambda i: (i, 0)),
                  pl.BlockSpec((1, p), lambda i: (0, 0)),
                  pl.BlockSpec((1, p), lambda i: (0, 0)),
                  pl.BlockSpec((p, cout), lambda i: (0, 0)),
                  pl.BlockSpec((tm, cin), lambda i: (i, 0)),
                  pl.BlockSpec((cin, cout), lambda i: (0, 0))],
        out_specs=[pl.BlockSpec((tm, cout), lambda i: (i, 0)),
                   pl.BlockSpec((tm, cout), lambda i: (i, 0)),
                   pl.BlockSpec((1, 2, cout), lambda i: (i, 0, 0)),
                   pl.BlockSpec((1, 2, cout), lambda i: (i, 0, 0))],
        out_shape=[jax.ShapeDtypeStruct((m, cout), jnp.bfloat16),
                   jax.ShapeDtypeStruct((m, cout), jnp.bfloat16),
                   jax.ShapeDtypeStruct((nb, 2, cout), jnp.float32),
                   jax.ShapeDtypeStruct((nb, 2, cout), jnp.float32)],
        compiler_params=_cparams(("parallel",)),
        cost_estimate=pl.CostEstimate(
            flops=int(2 * m * (p + cin) * cout), transcendentals=0,
            bytes_accessed=int(2 * m * p + 2 * m * cin + 4 * m * cout)),
    )(y2, sc2, sh2, w3, xs, ws)
    return y3, ys, jnp.sum(st3, axis=0), jnp.sum(sts, axis=0)


def _stage3_id(y2, sc2, sh2, w3):
    m, p = y2.shape
    cout = w3.shape[1]
    bpr = 2 * p + 4 * p + 2 * cout + 4 * cout
    tm = _pick_row_tile(m, bpr, fixed_bytes=4 * p * cout)
    nb = m // tm
    y3, st3 = pl.pallas_call(
        _stage3_id_kernel, grid=(nb,),
        in_specs=[pl.BlockSpec((tm, p), lambda i: (i, 0)),
                  pl.BlockSpec((1, p), lambda i: (0, 0)),
                  pl.BlockSpec((1, p), lambda i: (0, 0)),
                  pl.BlockSpec((p, cout), lambda i: (0, 0))],
        out_specs=[pl.BlockSpec((tm, cout), lambda i: (i, 0)),
                   pl.BlockSpec((1, 2, cout), lambda i: (i, 0, 0))],
        out_shape=[jax.ShapeDtypeStruct((m, cout), jnp.bfloat16),
                   jax.ShapeDtypeStruct((nb, 2, cout), jnp.float32)],
        compiler_params=_cparams(("parallel",)),
        cost_estimate=pl.CostEstimate(
            flops=int(2 * m * p * cout), transcendentals=0,
            bytes_accessed=int(2 * m * p + 2 * m * cout)),
    )(y2, sc2, sh2, w3)
    return y3, jnp.sum(st3, axis=0)


def _final_proj(y3, ys, a3, c3, a_s, c_s):
    m, cout = y3.shape
    bpr = 2 * cout + 2 * cout + 4 * cout + 8 * cout
    tm = _pick_row_tile(m, bpr)
    return pl.pallas_call(
        _final_proj_kernel, grid=(m // tm,),
        in_specs=[pl.BlockSpec((tm, cout), lambda i: (i, 0)),
                  pl.BlockSpec((tm, cout), lambda i: (i, 0)),
                  pl.BlockSpec((1, cout), lambda i: (0, 0)),
                  pl.BlockSpec((1, cout), lambda i: (0, 0)),
                  pl.BlockSpec((1, cout), lambda i: (0, 0)),
                  pl.BlockSpec((1, cout), lambda i: (0, 0))],
        out_specs=pl.BlockSpec((tm, cout), lambda i: (i, 0)),
        out_shape=jax.ShapeDtypeStruct((m, cout), jnp.float32),
        compiler_params=_cparams(("parallel",)),
    )(y3, ys, a3, c3, a_s, c_s)


def _final_id(y3, a3, c3, xres):
    m, cout = y3.shape
    bpr = 2 * cout + 2 * cout + 4 * cout + 8 * cout
    tm = _pick_row_tile(m, bpr)
    return pl.pallas_call(
        _final_id_kernel, grid=(m // tm,),
        in_specs=[pl.BlockSpec((tm, cout), lambda i: (i, 0)),
                  pl.BlockSpec((1, cout), lambda i: (0, 0)),
                  pl.BlockSpec((1, cout), lambda i: (0, 0)),
                  pl.BlockSpec((tm, cout), lambda i: (i, 0))],
        out_specs=pl.BlockSpec((tm, cout), lambda i: (i, 0)),
        out_shape=jax.ShapeDtypeStruct((m, cout), jnp.float32),
        compiler_params=_cparams(("parallel",)),
    )(y3, a3, c3, xres)


# ----------------------------- wrapper (glue) -------------------------------

def bottleneck_forward(x_nchw, params, stride):
    """Pallas forward of the PyTorch Bottleneck block (training-mode BN).
    Input/output are NCHW f32, matching the PyTorch module."""
    # Single NHWC/bf16 materialisation of the input (cast fuses into the
    # transpose).  TODO(synk): if the surrounding model keeps NHWC/bf16
    # activations the boundary transposes can be dropped entirely.
    x_bf = jnp.transpose(x_nchw, (0, 2, 3, 1)).astype(jnp.bfloat16)
    n, h, w, cin = x_bf.shape
    planes = params["w1"].shape[0]
    cout = EXPANSION * planes
    s = stride
    ho = (h - 1) // s + 1
    wo = (w - 1) // s + 1
    m1 = n * h * w
    m2 = n * ho * wo

    bf = jnp.bfloat16
    w1 = params["w1"][:, :, 0, 0].T.astype(bf)                        # (cin, p)
    w2r = jnp.transpose(params["w2"], (2, 3, 1, 0)).reshape(
        9 * planes, planes).astype(bf)                                # (9p, p)
    w3 = params["w3"][:, :, 0, 0].T.astype(bf)                        # (p, 4p)

    x2d = x_bf.reshape(m1, cin)

    # stage 1: 1x1 conv + BN1 partial stats (grid 'parallel', tiny jnp reduce)
    y1, st1 = _matmul_stats(x2d, w1)
    sc1, sh1 = _scale_shift(st1, params["g1"], params["b1"], float(m1))

    # stage 2: BN1+ReLU fused into the 3x3 conv (pad=1, stride) + BN2 stats
    phases, mask = _make_phases(y1.reshape(n, h, w, planes), s)
    y2, st2 = _conv3x3_fused(phases, mask, sc1, sh1, w2r, s, ho, wo)
    y2 = y2.reshape(m2, planes)
    sc2, sh2 = _scale_shift(st2, params["g2"], params["b2"], float(m2))

    # stage 3 (+ shortcut): BN2+ReLU apply fused with the 1x1 projections,
    # then final pass applies BN3 (+BNs), residual add, ReLU.
    if "ws" in params:                         # projection shortcut
        ws = params["ws"][:, :, 0, 0].T.astype(bf)                    # (cin, 4p)
        # TODO(synk): for stride==1 fold ws into w1 (one fused RHS) and for
        # stride>1 gather the strided rows in-kernel instead of via XLA.
        xs = x_bf[:, ::s, ::s, :].reshape(m2, cin)
        y3, ys, st3, sts = _stage3_proj(y2, sc2, sh2, w3, xs, ws)
        a3, c3 = _scale_shift(st3, params["g3"], params["b3"], float(m2))
        a_s, c_s = _scale_shift(sts, params["gs"], params["bs"], float(m2))
        out2d = _final_proj(y3, ys, a3, c3, a_s, c_s)
    else:                                      # identity shortcut
        assert s == 1 and cin == cout, \
            "identity shortcut requires stride == 1 and in_planes == 4*planes"
        y3, st3 = _stage3_id(y2, sc2, sh2, w3)
        a3, c3 = _scale_shift(st3, params["g3"], params["b3"], float(m2))
        out2d = _final_id(y3, a3, c3, x2d)     # bf16 residual (tolerance-safe)

    out = out2d.reshape(n, ho, wo, cout)
    # TODO(synk): emit bf16/NHWC here if the consumer accepts it (saves the
    # widest f32 write + transpose copy); kept f32 NCHW for module fidelity.
    return jnp.transpose(out, (0, 3, 1, 2))


# --------------------- deterministic parameter init -------------------------

def init_params(key, in_planes, planes, stride):
    keys = jax.random.split(key, 12)

    def conv_w(k, shape):
        fan_in = int(np.prod(shape[1:]))
        return jax.random.normal(k, shape, jnp.float32) / np.sqrt(fan_in)

    def bn_gb(kg, kb, c):
        g = 1.0 + 0.1 * jax.random.normal(kg, (c,), jnp.float32)
        b = 0.1 * jax.random.normal(kb, (c,), jnp.float32)
        return g, b

    exp_planes = EXPANSION * planes
    p = {}
    p["w1"] = conv_w(keys[0], (planes, in_planes, 1, 1))
    p["w2"] = conv_w(keys[1], (planes, planes, 3, 3))
    p["w3"] = conv_w(keys[2], (exp_planes, planes, 1, 1))
    p["g1"], p["b1"] = bn_gb(keys[3], keys[4], planes)
    p["g2"], p["b2"] = bn_gb(keys[5], keys[6], planes)
    p["g3"], p["b3"] = bn_gb(keys[7], keys[8], exp_planes)
    if stride != 1 or in_planes != exp_planes:     # same condition as PyTorch
        p["ws"] = conv_w(keys[9], (exp_planes, in_planes, 1, 1))
        p["gs"], p["bs"] = bn_gb(keys[10], keys[11], exp_planes)
    return p


# ----------------------------- pure-JAX reference ---------------------------

def ref_forward(x_nchw, params, stride):
    def conv(x, w, s, pad):
        return lax.conv_general_dilated(
            x, w, window_strides=(s, s), padding=pad,
            dimension_numbers=("NCHW", "OIHW", "NCHW"))

    def bn(y, g, b):
        mean = jnp.mean(y, axis=(0, 2, 3), keepdims=True)
        var = jnp.mean(jnp.square(y - mean), axis=(0, 2, 3), keepdims=True)
        return ((y - mean) * lax.rsqrt(var + EPS)
                * g.reshape(1, -1, 1, 1) + b.reshape(1, -1, 1, 1))

    out = jax.nn.relu(bn(conv(x_nchw, params["w1"], 1, "VALID"),
                         params["g1"], params["b1"]))
    out = jax.nn.relu(bn(conv(out, params["w2"], stride, [(1, 1), (1, 1)]),
                         params["g2"], params["b2"]))
    out = bn(conv(out, params["w3"], 1, "VALID"), params["g3"], params["b3"])
    if "ws" in params:
        sc = bn(conv(x_nchw, params["ws"], stride, "VALID"),
                params["gs"], params["bs"])
    else:
        sc = x_nchw
    return jax.nn.relu(out + sc)


# ---------------------------------- main ------------------------------------

if __name__ == "__main__":
    fwd = jax.jit(bottleneck_forward, static_argnums=2)
    ref_fwd = jax.jit(ref_forward, static_argnums=2)

    def run_case(name, in_planes, planes, stride, kx, kp):
        x = jax.random.normal(kx, (2, in_planes, 16, 16), jnp.float32)
        params = init_params(kp, in_planes, planes, stride)
        out = jax.block_until_ready(fwd(x, params, stride))
        ref = jax.block_until_ready(ref_fwd(x, params, stride))
        assert out.shape == ref.shape, (name, out.shape, ref.shape)
        max_err = float(jnp.max(jnp.abs(out - ref)))
        mean_err = float(jnp.mean(jnp.abs(out - ref)))
        # bf16 matmul operands / bf16 intermediates -> relaxed tolerance.
        tol = 0.05 * float(jnp.max(jnp.abs(ref))) + 0.05
        assert max_err < tol, f"{name}: max abs err {max_err} (tol {tol})"
        assert mean_err < 0.03, f"{name}: mean abs err {mean_err}"

    key = jax.random.PRNGKey(0)
    k1, k2, k3, k4 = jax.random.split(key, 4)

    # projection shortcut + stride 2 (same input shape as the original test)
    run_case("proj_stride2", 4, 4, 2, k1, k2)
    # identity shortcut (stride 1, in_planes == expansion * planes)
    run_case("identity", 16, 4, 1, k3, k4)

    # NOTE: BatchNorm running-stat (momentum) updates are training-time state
    # mutation, not part of the forward output, so they are not reproduced.
    print("KERNEL_OK")
</pallas_src>

<mosaic_0001>
module attributes {stable_mosaic.version = 11 : i64} {
  func.func @_matmul_stats_kernel(%arg0: i32, %arg1: memref<256x4xbf16, #tpu.memory_space<vmem>>, %arg2: memref<4x4xbf16, #tpu.memory_space<vmem>>, %arg3: memref<256x4xbf16, #tpu.memory_space<vmem>>, %arg4: memref<1x2x4xf32, #tpu.memory_space<vmem>>) attributes {dimension_semantics = [#tpu.dimension_semantics<parallel>], iteration_bounds = array<i64: 2>, scalar_prefetch = 0 : i64, scratch_operands = 0 : i64, tpu.core_type = #tpu.core_type<tc>, window_params = [{transform_indices = @transform_0, window_bounds = array<i64: 256, 4>}, {pipeline_mode = #tpu.pipeline_mode<synchronous>, transform_indices = @transform_1, window_bounds = array<i64: 4, 4>}, {transform_indices = @transform_2, window_bounds = array<i64: 256, 4>}, {transform_indices = @transform_3, window_bounds = array<i64: 1, 2, 4>}]} {
    %c0 = arith.constant 0 : index
    %c0_0 = arith.constant 0 : index
    %0 = vector.load %arg1[%c0, %c0_0] : memref<256x4xbf16, #tpu.memory_space<vmem>>, vector<256x4xbf16>
    %c0_1 = arith.constant 0 : index
    %c0_2 = arith.constant 0 : index
    %1 = vector.load %arg2[%c0_1, %c0_2] : memref<4x4xbf16, #tpu.memory_space<vmem>>, vector<4x4xbf16>
    %cst = arith.constant dense<0.000000e+00> : vector<256x4xf32>
    %2 = tpu.matmul %0, %1, %cst {dimension_numbers = #tpu.dot_dimension_numbers<[1], [0], [0], [1], [0, 0, 1, 1], [], []>} : vector<256x4xbf16>, vector<4x4xbf16>, vector<256x4xf32> -> vector<256x4xf32>
    %3 = arith.truncf %2 : vector<256x4xf32> to vector<256x4xbf16>
    %c0_3 = arith.constant 0 : index
    %c0_4 = arith.constant 0 : index
    %4 = vector.load %arg3[%c0_3, %c0_4] : memref<256x4xbf16, #tpu.memory_space<vmem>>, vector<256x4xbf16>
    tpu.vector_store %arg3[%c0_3, %c0_4], %3 {strides = array<i32>} : memref<256x4xbf16, #tpu.memory_space<vmem>>, vector<256x4xbf16>,
    %cst_5 = arith.constant dense<0.000000e+00> : vector<4xf32>
    %5 = vector.multi_reduction <add>, %2, %cst_5 [0] : vector<256x4xf32> to vector<4xf32>
    %6 = vector.shape_cast %5 : vector<4xf32> to vector<1x4xf32>
    %7 = arith.mulf %2, %2 : vector<256x4xf32>
    %cst_6 = arith.constant dense<0.000000e+00> : vector<4xf32>
    %8 = vector.multi_reduction <add>, %7, %cst_6 [0] : vector<256x4xf32> to vector<4xf32>
    %9 = vector.shape_cast %8 : vector<4xf32> to vector<1x4xf32>
    %10 = tpu.concatenate %6, %9 in 0 : vector<1x4xf32>, vector<1x4xf32> -> vector<2x4xf32>
    %11 = vector.shape_cast %10 : vector<2x4xf32> to vector<1x2x4xf32>
    %c0_7 = arith.constant 0 : index
    %c0_8 = arith.constant 0 : index
    %c0_9 = arith.constant 0 : index
    %12 = vector.load %arg4[%c0_7, %c0_8, %c0_9] : memref<1x2x4xf32, #tpu.memory_space<vmem>>, vector<1x2x4xf32>
    tpu.vector_store %arg4[%c0_7, %c0_8, %c0_9], %11 {strides = array<i32>} : memref<1x2x4xf32, #tpu.memory_space<vmem>>, vector<1x2x4xf32>,
    return
  }
  func.func @transform_0(%arg0: i32) -> (i32, i32) {
    %c0_i32 = arith.constant 0 : i32
    %c0_i32_0 = arith.constant 0 : i32
    return %arg0, %c0_i32 : i32, i32
  }
  func.func @transform_1(%arg0: i32) -> (i32, i32) {
    %c0_i32 = arith.constant 0 : i32
    %c0_i32_0 = arith.constant 0 : i32
    %c0_i32_1 = arith.constant 0 : i32
    return %c0_i32, %c0_i32_0 : i32, i32
  }
  func.func @transform_2(%arg0: i32) -> (i32, i32) {
    %c0_i32 = arith.constant 0 : i32
    %c0_i32_0 = arith.constant 0 : i32
    return %arg0, %c0_i32 : i32, i32
  }
  func.func @transform_3(%arg0: i32) -> (i32, i32, i32) {
    %c0_i32 = arith.constant 0 : i32
    %c0_i32_0 = arith.constant 0 : i32
    %c0_i32_1 = arith.constant 0 : i32
    return %arg0, %c0_i32, %c0_i32_0 : i32, i32, i32
  }
}

module attributes {stable_mosaic.version = 11 : i64} {
  func.func @_conv3x3_kernel(%arg0: i32, %arg1: memref<4x1x9x9x4xbf16, #tpu.memory_space<vmem>>, %arg2: memref<4x1x9x9x4xbf16, #tpu.memory_space<vmem>>, %arg3: memref<1x4xf32, #tpu.memory_space<vmem>>, %arg4: memref<1x4xf32, #tpu.memory_space<vmem>>, %arg5: memref<36x4xbf16, #tpu.memory_space<vmem>>, %arg6: memref<1x8x8x4xbf16, #tpu.memory_space<vmem>>, %arg7: memref<1x2x4xf32, #tpu.memory_space<vmem>>) attributes {dimension_semantics = [#tpu.dimension_semantics<parallel>], iteration_bounds = array<i64: 2>, scalar_prefetch = 0 : i64, scratch_operands = 0 : i64, tpu.core_type = #tpu.core_type<tc>, window_params = [{transform_indices = @transform_0, window_bounds = array<i64: 4, 1, 9, 9, 4>}, {pipeline_mode = #tpu.pipeline_mode<synchronous>, transform_indices = @transform_1, window_bounds = array<i64: 4, 1, 9, 9, 4>}, {pipeline_mode = #tpu.pipeline_mode<synchronous>, transform_indices = @transform_2, window_bounds = array<i64: 1, 4>}, {pipeline_mode = #tpu.pipeline_mode<synchronous>, transform_indices = @transform_3, window_bounds = array<i64: 1, 4>}, {pipeline_mode = #tpu.pipeline_mode<synchronous>, transform_indices = @transform_4, window_bounds = array<i64: 36, 4>}, {transform_indices = @transform_5, window_bounds = array<i64: 1, 8, 8, 4>}, {transform_indices = @transform_6, window_bounds = array<i64: 1, 2, 4>}]} {
    %c0 = arith.constant 0 : index
    %c0_0 = arith.constant 0 : index
    %c0_1 = arith.constant 0 : index
    %c0_2 = arith.constant 0 : index
    %c0_3 = arith.constant 0 : index
    %0 = vector.load %arg1[%c0, %c0_0, %c0_1, %c0_2, %c0_3] : memref<4x1x9x9x4xbf16, #tpu.memory_space<vmem>>, vector<4x1x9x9x4xbf16>
    %1 = arith.extf %0 : vector<4x1x9x9x4xbf16> to vector<4x1x9x9x4xf32>
    %c0_4 = arith.constant 0 : index
    %c0_5 = arith.constant 0 : index
    %2 = vector.load %arg3[%c0_4, %c0_5] : memref<1x4xf32, #tpu.memory_space<vmem>>, vector<1x4xf32>
    %3 = vector.shape_cast %2 : vector<1x4xf32> to vector<1x1x1x1x4xf32>
    %4 = vector.broadcast %3 : vector<1x1x1x1x4xf32> to vector<4x1x9x9x4xf32>
    %5 = arith.mulf %1, %4 : vector<4x1x9x9x4xf32>
    %c0_6 = arith.constant 0 : index
    %c0_7 = arith.constant 0 : index
    %6 = vector.load %arg4[%c0_6, %c0_7] : memref<1x4xf32, #tpu.memory_space<vmem>>, vector<1x4xf32>
    %7 = vector.shape_cast %6 : vector<1x4xf32> to vector<1x1x1x1x4xf32>
    %8 = vector.broadcast %7 : vector<1x1x1x1x4xf32> to vector<4x1x9x9x4xf32>
    %9 = arith.addf %5, %8 : vector<4x1x9x9x4xf32>
    %cst = arith.constant 0.000000e+00 : f32
    %10 = vector.broadcast %cst : f32 to vector<4x1x9x9x4xf32>
    %11 = arith.maximumf %9, %10 : vector<4x1x9x9x4xf32>
    %12 = arith.truncf %11 : vector<4x1x9x9x4xf32> to vector<4x1x9x9x4xbf16>
    %c0_8 = arith.constant 0 : index
    %c0_9 = arith.constant 0 : index
    %c0_10 = arith.constant 0 : index
    %c0_11 = arith.constant 0 : index
    %c0_12 = arith.constant 0 : index
    %13 = vector.load %arg2[%c0_8, %c0_9, %c0_10, %c0_11, %c0_12] : memref<4x1x9x9x4xbf16, #tpu.memory_space<vmem>>, vector<4x1x9x9x4xbf16>
    %14 = arith.mulf %12, %13 : vector<4x1x9x9x4xbf16>
    %15 = vector.extract_strided_slice %14 {offsets = [0, 0, 0, 0, 0], sizes = [1, 1, 8, 8, 4], strides = [1, 1, 1, 1, 1]} : vector<4x1x9x9x4xbf16> to vector<1x1x8x8x4xbf16>
    %16 = vector.shape_cast %15 : vector<1x1x8x8x4xbf16> to vector<1x8x8x4xbf16>
    %17 = vector.shape_cast %16 : vector<1x8x8x4xbf16> to vector<64x4xbf16>
    %18 = vector.extract_strided_slice %14 {offsets = [1, 0, 0, 0, 0], sizes = [1, 1, 8, 8, 4], strides = [1, 1, 1, 1, 1]} : vector<4x1x9x9x4xbf16> to vector<1x1x8x8x4xbf16>
    %19 = vector.shape_cast %18 : vector<1x1x8x8x4xbf16> to vector<1x8x8x4xbf16>
    %20 = vector.shape_cast %19 : vector<1x8x8x4xbf16> to vector<64x4xbf16>
    %21 = vector.extract_strided_slice %14 {offsets = [0, 0, 0, 1, 0], sizes = [1, 1, 8, 8, 4], strides = [1, 1, 1, 1, 1]} : vector<4x1x9x9x4xbf16> to vector<1x1x8x8x4xbf16>
    %22 = vector.shape_cast %21 : vector<1x1x8x8x4xbf16> to vector<1x8x8x4xbf16>
    %23 = vector.shape_cast %22 : vector<1x8x8x4xbf16> to vector<64x4xbf16>
    %24 = vector.extract_strided_slice %14 {offsets = [2, 0, 0, 0, 0], sizes = [1, 1, 8, 8, 4], strides = [1, 1, 1, 1, 1]} : vector<4x1x9x9x4xbf16> to vector<1x1x8x8x4xbf16>
    %25 = vector.shape_cast %24 : vector<1x1x8x8x4xbf16> to vector<1x8x8x4xbf16>
    %26 = vector.shape_cast %25 : vector<1x8x8x4xbf16> to vector<64x4xbf16>
    %27 = vector.extract_strided_slice %14 {offsets = [3, 0, 0, 0, 0], sizes = [1, 1, 8, 8, 4], strides = [1, 1, 1, 1, 1]} : vector<4x1x9x9x4xbf16> to vector<1x1x8x8x4xbf16>
    %28 = vector.shape_cast %27 : vector<1x1x8x8x4xbf16> to vector<1x8x8x4xbf16>
    %29 = vector.shape_cast %28 : vector<1x8x8x4xbf16> to vector<64x4xbf16>
    %30 = vector.extract_strided_slice %14 {offsets = [2, 0, 0, 1, 0], sizes = [1, 1, 8, 8, 4], strides = [1, 1, 1, 1, 1]} : vector<4x1x9x9x4xbf16> to vector<1x1x8x8x4xbf16>
    %31 = vector.shape_cast %30 : vector<1x1x8x8x4xbf16> to vector<1x8x8x4xbf16>
    %32 = vector.shape_cast %31 : vector<1x8x8x4xbf16> to vector<64x4xbf16>
    %33 = vector.extract_strided_slice %14 {offsets = [0, 0, 1, 0, 0], sizes = [1, 1, 8, 8, 4], strides = [1, 1, 1, 1, 1]} : vector<4x1x9x9x4xbf16> to vector<1x1x8x8x4xbf16>
    %34 = vector.shape_cast %33 : vector<1x1x8x8x4xbf16> to vector<1x8x8x4xbf16>
    %35 = vector.shape_cast %34 : vector<1x8x8x4xbf16> to vector<64x4xbf16>
    %36 = vector.extract_strided_slice %14 {offsets = [1, 0, 1, 0, 0], sizes = [1, 1, 8, 8, 4], strides = [1, 1, 1, 1, 1]} : vector<4x1x9x9x4xbf16> to vector<1x1x8x8x4xbf16>
    %37 = vector.shape_cast %36 : vector<1x1x8x8x4xbf16> to vector<1x8x8x4xbf16>
    %38 = vector.shape_cast %37 : vector<1x8x8x4xbf16> to vector<64x4xbf16>
    %39 = vector.extract_strided_slice %14 {offsets = [0, 0, 1, 1, 0], sizes = [1, 1, 8, 8, 4], strides = [1, 1, 1, 1, 1]} : vector<4x1x9x9x4xbf16> to vector<1x1x8x8x4xbf16>
    %40 = vector.shape_cast %39 : vector<1x1x8x8x4xbf16> to vector<1x8x8x4xbf16>
    %41 = vector.shape_cast %40 : vector<1x8x8x4xbf16> to vector<64x4xbf16>
    %42 = tpu.concatenate %17, %20, %23, %26, %29, %32, %35, %38, %41 in 1 : vector<64x4xbf16>, vector<64x4xbf16>, vector<64x4xbf16>, vector<64x4xbf16>, vector<64x4xbf16>, vector<64x4xbf16>, vector<64x4xbf16>, vector<64x4xbf16>, vector<64x4xbf16> -> vector<64x36xbf16>
    %c0_13 = arith.constant 0 : index
    %c0_14 = arith.constant 0 : index
    %43 = vector.load %arg5[%c0_13, %c0_14] : memref<36x4xbf16, #tpu.memory_space<vmem>>, vector<36x4xbf16>
    %cst_15 = arith.constant dense<0.000000e+00> : vector<64x4xf32>
    %44 = tpu.matmul %42, %43, %cst_15 {dimension_numbers = #tpu.dot_dimension_numbers<[1], [0], [0], [1], [0, 0, 1, 1], [], []>} : vector<64x36xbf16>, vector<36x4xbf16>, vector<64x4xf32> -> vector<64x4xf32>
    %45 = vector.shape_cast %44 : vector<64x4xf32> to vector<1x8x8x4xf32>
    %46 = arith.truncf %45 : vector<1x8x8x4xf32> to vector<1x8x8x4xbf16>
    %c0_16 = arith.constant 0 : index
    %c0_17 = arith.constant 0 : index
    %c0_18 = arith.constant 0 : index
    %c0_19 = arith.constant 0 : index
    %47 = vector.load %arg6[%c0_16, %c0_17, %c0_18, %c0_19] : memref<1x8x8x4xbf16, #tpu.memory_space<vmem>>, vector<1x8x8x4xbf16>
    tpu.vector_store %arg6[%c0_16, %c0_17, %c0_18, %c0_19], %46 {strides = array<i32>} : memref<1x8x8x4xbf16, #tpu.memory_space<vmem>>, vector<1x8x8x4xbf16>,
    %cst_20 = arith.constant dense<0.000000e+00> : vector<4xf32>
    %48 = vector.multi_reduction <add>, %44, %cst_20 [0] : vector<64x4xf32> to vector<4xf32>
    %49 = vector.shape_cast %48 : vector<4xf32> to vector<1x4xf32>
    %50 = arith.mulf %44, %44 : vector<64x4xf32>
    %cst_21 = arith.constant dense<0.000000e+00> : vector<4xf32>
    %51 = vector.multi_reduction <add>, %50, %cst_21 [0] : vector<64x4xf32> to vector<4xf32>
    %52 = vector.shape_cast %51 : vector<4xf32> to vector<1x4xf32>
    %53 = tpu.concatenate %49, %52 in 0 : vector<1x4xf32>, vector<1x4xf32> -> vector<2x4xf32>
    %54 = vector.shape_cast %53 : vector<2x4xf32> to vector<1x2x4xf32>
    %c0_22 = arith.constant 0 : index
    %c0_23 = arith.constant 0 : index
    %c0_24 = arith.constant 0 : index
    %55 = vector.load %arg7[%c0_22, %c0_23, %c0_24] : memref<1x2x4xf32, #tpu.memory_space<vmem>>, vector<1x2x4xf32>
    tpu.vector_store %arg7[%c0_22, %c0_23, %c0_24], %54 {strides = array<i32>} : memref<1x2x4xf32, #tpu.memory_space<vmem>>, vector<1x2x4xf32>,
    return
  }
  func.func @transform_0(%arg0: i32) -> (i32, i32, i32, i32, i32) {
    %c0_i32 = arith.constant 0 : i32
    %c0_i32_0 = arith.constant 0 : i32
    %c0_i32_1 = arith.constant 0 : i32
    %c0_i32_2 = arith.constant 0 : i32
    %c0_i32_3 = arith.constant 0 : i32
    return %c0_i32, %arg0, %c0_i32_0, %c0_i32_1, %c0_i32_2 : i32, i32, i32, i32, i32
  }
  func.func @transform_1(%arg0: i32) -> (i32, i32, i32, i32, i32) {
    %c0_i32 = arith.constant 0 : i32
    %c0_i32_0 = arith.constant 0 : i32
    %c0_i32_1 = arith.constant 0 : i32
    %c0_i32_2 = arith.constant 0 : i32
    %c0_i32_3 = arith.constant 0 : i32
    %c0_i32_4 = arith.constant 0 : i32
    return %c0_i32, %c0_i32_0, %c0_i32_1, %c0_i32_2, %c0_i32_3 : i32, i32, i32, i32, i32
  }
  func.func @transform_2(%arg0: i32) -> (i32, i32) {
    %c0_i32 = arith.constant 0 : i32
    %c0_i32_0 = arith.constant 0 : i32
    %c0_i32_1 = arith.constant 0 : i32
    return %c0_i32, %c0_i32_0 : i32, i32
  }
  func.func @transform_3(%arg0: i32) -> (i32, i32) {
    %c0_i32 = arith.constant 0 : i32
    %c0_i32_0 = arith.constant 0 : i32
    %c0_i32_1 = arith.constant 0 : i32
    return %c0_i32, %c0_i32_0 : i32, i32
  }
  func.func @transform_4(%arg0: i32) -> (i32, i32) {
    %c0_i32 = arith.constant 0 : i32
    %c0_i32_0 = arith.constant 0 : i32
    %c0_i32_1 = arith.constant 0 : i32
    return %c0_i32, %c0_i32_0 : i32, i32
  }
  func.func @transform_5(%arg0: i32) -> (i32, i32, i32, i32) {
    %c0_i32 = arith.constant 0 : i32
    %c0_i32_0 = arith.constant 0 : i32
    %c0_i32_1 = arith.constant 0 : i32
    %c0_i32_2 = arith.constant 0 : i32
    return %arg0, %c0_i32, %c0_i32_0, %c0_i32_1 : i32, i32, i32, i32
  }
  func.func @transform_6(%arg0: i32) -> (i32, i32, i32) {
    %c0_i32 = arith.constant 0 : i32
    %c0_i32_0 = arith.constant 0 : i32
    %c0_i32_1 = arith.constant 0 : i32
    return %arg0, %c0_i32, %c0_i32_0 : i32, i32, i32
  }
}

module attributes {stable_mosaic.version = 11 : i64} {
  func.func @_stage3_proj_kernel(%arg0: i32, %arg1: memref<64x4xbf16, #tpu.memory_space<vmem>>, %arg2: memref<1x4xf32, #tpu.memory_space<vmem>>, %arg3: memref<1x4xf32, #tpu.memory_space<vmem>>, %arg4: memref<4x16xbf16, #tpu.memory_space<vmem>>, %arg5: memref<64x4xbf16, #tpu.memory_space<vmem>>, %arg6: memref<4x16xbf16, #tpu.memory_space<vmem>>, %arg7: memref<64x16xbf16, #tpu.memory_space<vmem>>, %arg8: memref<64x16xbf16, #tpu.memory_space<vmem>>, %arg9: memref<1x2x16xf32, #tpu.memory_space<vmem>>, %arg10: memref<1x2x16xf32, #tpu.memory_space<vmem>>) attributes {dimension_semantics = [#tpu.dimension_semantics<parallel>], iteration_bounds = array<i64: 2>, scalar_prefetch = 0 : i64, scratch_operands = 0 : i64, tpu.core_type = #tpu.core_type<tc>, window_params = [{transform_indices = @transform_0, window_bounds = array<i64: 64, 4>}, {pipeline_mode = #tpu.pipeline_mode<synchronous>, transform_indices = @transform_1, window_bounds = array<i64: 1, 4>}, {pipeline_mode = #tpu.pipeline_mode<synchronous>, transform_indices = @transform_2, window_bounds = array<i64: 1, 4>}, {pipeline_mode = #tpu.pipeline_mode<synchronous>, transform_indices = @transform_3, window_bounds = array<i64: 4, 16>}, {transform_indices = @transform_4, window_bounds = array<i64: 64, 4>}, {pipeline_mode = #tpu.pipeline_mode<synchronous>, transform_indices = @transform_5, window_bounds = array<i64: 4, 16>}, {transform_indices = @transform_6, window_bounds = array<i64: 64, 16>}, {transform_indices = @transform_7, window_bounds = array<i64: 64, 16>}, {transform_indices = @transform_8, window_bounds = array<i64: 1, 2, 16>}, {transform_indices = @transform_9, window_bounds = array<i64: 1, 2, 16>}]} {
    %c0 = arith.constant 0 : index
    %c0_0 = arith.constant 0 : index
    %0 = vector.load %arg1[%c0, %c0_0] : memref<64x4xbf16, #tpu.memory_space<vmem>>, vector<64x4xbf16>
    %1 = arith.extf %0 : vector<64x4xbf16> to vector<64x4xf32>
    %c0_1 = arith.constant 0 : index
    %c0_2 = arith.constant 0 : index
    %2 = vector.load %arg2[%c0_1, %c0_2] : memref<1x4xf32, #tpu.memory_space<vmem>>, vector<1x4xf32>
    %3 = vector.broadcast %2 : vector<1x4xf32> to vector<64x4xf32>
    %4 = arith.mulf %1, %3 : vector<64x4xf32>
    %c0_3 = arith.constant 0 : index
    %c0_4 = arith.constant 0 : index
    %5 = vector.load %arg3[%c0_3, %c0_4] : memref<1x4xf32, #tpu.memory_space<vmem>>, vector<1x4xf32>
    %6 = vector.broadcast %5 : vector<1x4xf32> to vector<64x4xf32>
    %7 = arith.addf %4, %6 : vector<64x4xf32>
    %cst = arith.constant 0.000000e+00 : f32
    %8 = vector.broadcast %cst : f32 to vector<64x4xf32>
    %9 = arith.maximumf %7, %8 : vector<64x4xf32>
    %10 = arith.truncf %9 : vector<64x4xf32> to vector<64x4xbf16>
    %c0_5 = arith.constant 0 : index
    %c0_6 = arith.constant 0 : index
    %11 = vector.load %arg4[%c0_5, %c0_6] : memref<4x16xbf16, #tpu.memory_space<vmem>>, vector<4x16xbf16>
    %cst_7 = arith.constant dense<0.000000e+00> : vector<64x16xf32>
    %12 = tpu.matmul %10, %11, %cst_7 {dimension_numbers = #tpu.dot_dimension_numbers<[1], [0], [0], [1], [0, 0, 1, 1], [], []>} : vector<64x4xbf16>, vector<4x16xbf16>, vector<64x16xf32> -> vector<64x16xf32>
    %c0_8 = arith.constant 0 : index
    %c0_9 = arith.constant 0 : index
    %13 = vector.load %arg5[%c0_8, %c0_9] : memref<64x4xbf16, #tpu.memory_space<vmem>>, vector<64x4xbf16>
    %c0_10 = arith.constant 0 : index
    %c0_11 = arith.constant 0 : index
    %14 = vector.load %arg6[%c0_10, %c0_11] : memref<4x16xbf16, #tpu.memory_space<vmem>>, vector<4x16xbf16>
    %cst_12 = arith.constant dense<0.000000e+00> : vector<64x16xf32>
    %15 = tpu.matmul %13, %14, %cst_12 {dimension_numbers = #tpu.dot_dimension_numbers<[1], [0], [0], [1], [0, 0, 1, 1], [], []>} : vector<64x4xbf16>, vector<4x16xbf16>, vector<64x16xf32> -> vector<64x16xf32>
    %16 = arith.truncf %12 : vector<64x16xf32> to vector<64x16xbf16>
    %c0_13 = arith.constant 0 : index
    %c0_14 = arith.constant 0 : index
    %17 = vector.load %arg7[%c0_13, %c0_14] : memref<64x16xbf16, #tpu.memory_space<vmem>>, vector<64x16xbf16>
    tpu.vector_store %arg7[%c0_13, %c0_14], %16 {strides = array<i32>} : memref<64x16xbf16, #tpu.memory_space<vmem>>, vector<64x16xbf16>,
    %18 = arith.truncf %15 : vector<64x16xf32> to vector<64x16xbf16>
    %c0_15 = arith.constant 0 : index
    %c0_16 = arith.constant 0 : index
    %19 = vector.load %arg8[%c0_15, %c0_16] : memref<64x16xbf16, #tpu.memory_space<vmem>>, vector<64x16xbf16>
    tpu.vector_store %arg8[%c0_15, %c0_16], %18 {strides = array<i32>} : memref<64x16xbf16, #tpu.memory_space<vmem>>, vector<64x16xbf16>,
    %cst_17 = arith.constant dense<0.000000e+00> : vector<16xf32>
    %20 = vector.multi_reduction <add>, %12, %cst_17 [0] : vector<64x16xf32> to vector<16xf32>
    %21 = vector.shape_cast %20 : vector<16xf32> to vector<1x16xf32>
    %22 = arith.mulf %12, %12 : vector<64x16xf32>
    %cst_18 = arith.constant dense<0.000000e+00> : vector<16xf32>
    %23 = vector.multi_reduction <add>, %22, %cst_18 [0] : vector<64x16xf32> to vector<16xf32>
    %24 = vector.shape_cast %23 : vector<16xf32> to vector<1x16xf32>
    %25 = tpu.concatenate %21, %24 in 0 : vector<1x16xf32>, vector<1x16xf32> -> vector<2x16xf32>
    %26 = vector.shape_cast %25 : vector<2x16xf32> to vector<1x2x16xf32>
    %c0_19 = arith.constant 0 : index
    %c0_20 = arith.constant 0 : index
    %c0_21 = arith.constant 0 : index
    %27 = vector.load %arg9[%c0_19, %c0_20, %c0_21] : memref<1x2x16xf32, #tpu.memory_space<vmem>>, vector<1x2x16xf32>
    tpu.vector_store %arg9[%c0_19, %c0_20, %c0_21], %26 {strides = array<i32>} : memref<1x2x16xf32, #tpu.memory_space<vmem>>, vector<1x2x16xf32>,
    %cst_22 = arith.constant dense<0.000000e+00> : vector<16xf32>
    %28 = vector.multi_reduction <add>, %15, %cst_22 [0] : vector<64x16xf32> to vector<16xf32>
    %29 = vector.shape_cast %28 : vector<16xf32> to vector<1x16xf32>
    %30 = arith.mulf %15, %15 : vector<64x16xf32>
    %cst_23 = arith.constant dense<0.000000e+00> : vector<16xf32>
    %31 = vector.multi_reduction <add>, %30, %cst_23 [0] : vector<64x16xf32> to vector<16xf32>
    %32 = vector.shape_cast %31 : vector<16xf32> to vector<1x16xf32>
    %33 = tpu.concatenate %29, %32 in 0 : vector<1x16xf32>, vector<1x16xf32> -> vector<2x16xf32>
    %34 = vector.shape_cast %33 : vector<2x16xf32> to vector<1x2x16xf32>
    %c0_24 = arith.constant 0 : index
    %c0_25 = arith.constant 0 : index
    %c0_26 = arith.constant 0 : index
    %35 = vector.load %arg10[%c0_24, %c0_25, %c0_26] : memref<1x2x16xf32, #tpu.memory_space<vmem>>, vector<1x2x16xf32>
    tpu.vector_store %arg10[%c0_24, %c0_25, %c0_26], %34 {strides = array<i32>} : memref<1x2x16xf32, #tpu.memory_space<vmem>>, vector<1x2x16xf32>,
    return
  }
  func.func @transform_0(%arg0: i32) -> (i32, i32) {
    %c0_i32 = arith.constant 0 : i32
    %c0_i32_0 = arith.constant 0 : i32
    return %arg0, %c0_i32 : i32, i32
  }
  func.func @transform_1(%arg0: i32) -> (i32, i32) {
    %c0_i32 = arith.constant 0 : i32
    %c0_i32_0 = arith.constant 0 : i32
    %c0_i32_1 = arith.constant 0 : i32
    return %c0_i32, %c0_i32_0 : i32, i32
  }
  func.func @transform_2(%arg0: i32) -> (i32, i32) {
    %c0_i32 = arith.constant 0 : i32
    %c0_i32_0 = arith.constant 0 : i32
    %c0_i32_1 = arith.constant 0 : i32
    return %c0_i32, %c0_i32_0 : i32, i32
  }
  func.func @transform_3(%arg0: i32) -> (i32, i32) {
    %c0_i32 = arith.constant 0 : i32
    %c0_i32_0 = arith.constant 0 : i32
    %c0_i32_1 = arith.constant 0 : i32
    return %c0_i32, %c0_i32_0 : i32, i32
  }
  func.func @transform_4(%arg0: i32) -> (i32, i32) {
    %c0_i32 = arith.constant 0 : i32
    %c0_i32_0 = arith.constant 0 : i32
    return %arg0, %c0_i32 : i32, i32
  }
  func.func @transform_5(%arg0: i32) -> (i32, i32) {
    %c0_i32 = arith.constant 0 : i32
    %c0_i32_0 = arith.constant 0 : i32
    %c0_i32_1 = arith.constant 0 : i32
    return %c0_i32, %c0_i32_0 : i32, i32
  }
  func.func @transform_6(%arg0: i32) -> (i32, i32) {
    %c0_i32 = arith.constant 0 : i32
    %c0_i32_0 = arith.constant 0 : i32
    return %arg0, %c0_i32 : i32, i32
  }
  func.func @transform_7(%arg0: i32) -> (i32, i32) {
    %c0_i32 = arith.constant 0 : i32
    %c0_i32_0 = arith.constant 0 : i32
    return %arg0, %c0_i32 : i32, i32
  }
  func.func @transform_8(%arg0: i32) -> (i32, i32, i32) {
    %c0_i32 = arith.constant 0 : i32
    %c0_i32_0 = arith.constant 0 : i32
    %c0_i32_1 = arith.constant 0 : i32
    return %arg0, %c0_i32, %c0_i32_0 : i32, i32, i32
  }
  func.func @transform_9(%arg0: i32) -> (i32, i32, i32) {
    %c0_i32 = arith.constant 0 : i32
    %c0_i32_0 = arith.constant 0 : i32
    %c0_i32_1 = arith.constant 0 : i32
    return %arg0, %c0_i32, %c0_i32_0 : i32, i32, i32
  }
}

module attributes {stable_mosaic.version = 11 : i64} {
  func.func @_final_proj_kernel(%arg0: i32, %arg1: memref<64x16xbf16, #tpu.memory_space<vmem>>, %arg2: memref<64x16xbf16, #tpu.memory_space<vmem>>, %arg3: memref<1x16xf32, #tpu.memory_space<vmem>>, %arg4: memref<1x16xf32, #tpu.memory_space<vmem>>, %arg5: memref<1x16xf32, #tpu.memory_space<vmem>>, %arg6: memref<1x16xf32, #tpu.memory_space<vmem>>, %arg7: memref<64x16xf32, #tpu.memory_space<vmem>>) attributes {dimension_semantics = [#tpu.dimension_semantics<parallel>], iteration_bounds = array<i64: 2>, scalar_prefetch = 0 : i64, scratch_operands = 0 : i64, tpu.core_type = #tpu.core_type<tc>, window_params = [{transform_indices = @transform_0, window_bounds = array<i64: 64, 16>}, {transform_indices = @transform_1, window_bounds = array<i64: 64, 16>}, {pipeline_mode = #tpu.pipeline_mode<synchronous>, transform_indices = @transform_2, window_bounds = array<i64: 1, 16>}, {pipeline_mode = #tpu.pipeline_mode<synchronous>, transform_indices = @transform_3, window_bounds = array<i64: 1, 16>}, {pipeline_mode = #tpu.pipeline_mode<synchronous>, transform_indices = @transform_4, window_bounds = array<i64: 1, 16>}, {pipeline_mode = #tpu.pipeline_mode<synchronous>, transform_indices = @transform_5, window_bounds = array<i64: 1, 16>}, {transform_indices = @transform_6, window_bounds = array<i64: 64, 16>}]} {
    %c0 = arith.constant 0 : index
    %c0_0 = arith.constant 0 : index
    %0 = vector.load %arg1[%c0, %c0_0] : memref<64x16xbf16, #tpu.memory_space<vmem>>, vector<64x16xbf16>
    %1 = arith.extf %0 : vector<64x16xbf16> to vector<64x16xf32>
    %c0_1 = arith.constant 0 : index
    %c0_2 = arith.constant 0 : index
    %2 = vector.load %arg3[%c0_1, %c0_2] : memref<1x16xf32, #tpu.memory_space<vmem>>, vector<1x16xf32>
    %3 = vector.broadcast %2 : vector<1x16xf32> to vector<64x16xf32>
    %4 = arith.mulf %1, %3 : vector<64x16xf32>
    %c0_3 = arith.constant 0 : index
    %c0_4 = arith.constant 0 : index
    %5 = vector.load %arg4[%c0_3, %c0_4] : memref<1x16xf32, #tpu.memory_space<vmem>>, vector<1x16xf32>
    %6 = vector.broadcast %5 : vector<1x16xf32> to vector<64x16xf32>
    %7 = arith.addf %4, %6 : vector<64x16xf32>
    %c0_5 = arith.constant 0 : index
    %c0_6 = arith.constant 0 : index
    %8 = vector.load %arg2[%c0_5, %c0_6] : memref<64x16xbf16, #tpu.memory_space<vmem>>, vector<64x16xbf16>
    %9 = arith.extf %8 : vector<64x16xbf16> to vector<64x16xf32>
    %c0_7 = arith.constant 0 : index
    %c0_8 = arith.constant 0 : index
    %10 = vector.load %arg5[%c0_7, %c0_8] : memref<1x16xf32, #tpu.memory_space<vmem>>, vector<1x16xf32>
    %11 = vector.broadcast %10 : vector<1x16xf32> to vector<64x16xf32>
    %12 = arith.mulf %9, %11 : vector<64x16xf32>
    %13 = arith.addf %7, %12 : vector<64x16xf32>
    %c0_9 = arith.constant 0 : index
    %c0_10 = arith.constant 0 : index
    %14 = vector.load %arg6[%c0_9, %c0_10] : memref<1x16xf32, #tpu.memory_space<vmem>>, vector<1x16xf32>
    %15 = vector.broadcast %14 : vector<1x16xf32> to vector<64x16xf32>
    %16 = arith.addf %13, %15 : vector<64x16xf32>
    %cst = arith.constant 0.000000e+00 : f32
    %17 = vector.broadcast %cst : f32 to vector<64x16xf32>
    %18 = arith.maximumf %16, %17 : vector<64x16xf32>
    %c0_11 = arith.constant 0 : index
    %c0_12 = arith.constant 0 : index
    %19 = vector.load %arg7[%c0_11, %c0_12] : memref<64x16xf32, #tpu.memory_space<vmem>>, vector<64x16xf32>
    tpu.vector_store %arg7[%c0_11, %c0_12], %18 {strides = array<i32>} : memref<64x16xf32, #tpu.memory_space<vmem>>, vector<64x16xf32>,
    return
  }
  func.func @transform_0(%arg0: i32) -> (i32, i32) {
    %c0_i32 = arith.constant 0 : i32
    %c0_i32_0 = arith.constant 0 : i32
    return %arg0, %c0_i32 : i32, i32
  }
  func.func @transform_1(%arg0: i32) -> (i32, i32) {
    %c0_i32 = arith.constant 0 : i32
    %c0_i32_0 = arith.constant 0 : i32
    return %arg0, %c0_i32 : i32, i32
  }
  func.func @transform_2(%arg0: i32) -> (i32, i32) {
    %c0_i32 = arith.constant 0 : i32
    %c0_i32_0 = arith.constant 0 : i32
    %c0_i32_1 = arith.constant 0 : i32
    return %c0_i32, %c0_i32_0 : i32, i32
  }
  func.func @transform_3(%arg0: i32) -> (i32, i32) {
    %c0_i32 = arith.constant 0 : i32
    %c0_i32_0 = arith.constant 0 : i32
    %c0_i32_1 = arith.constant 0 : i32
    return %c0_i32, %c0_i32_0 : i32, i32
  }
  func.func @transform_4(%arg0: i32) -> (i32, i32) {
    %c0_i32 = arith.constant 0 : i32
    %c0_i32_0 = arith.constant 0 : i32
    %c0_i32_1 = arith.constant 0 : i32
    return %c0_i32, %c0_i32_0 : i32, i32
  }
  func.func @transform_5(%arg0: i32) -> (i32, i32) {
    %c0_i32 = arith.constant 0 : i32
    %c0_i32_0 = arith.constant 0 : i32
    %c0_i32_1 = arith.constant 0 : i32
    return %c0_i32, %c0_i32_0 : i32, i32
  }
  func.func @transform_6(%arg0: i32) -> (i32, i32) {
    %c0_i32 = arith.constant 0 : i32
    %c0_i32_0 = arith.constant 0 : i32
    return %arg0, %c0_i32 : i32, i32
  }
}

</mosaic_0001>

<llo_original>
// kernel: bottleneck_forward.4
$region0: #{bottleneck_forward.4}
  #allocation0 [shape = 'u32[]', space=smem, size = 0x4, offset = 0x4, fixed_abs, tag = 'smem constant byte address 0x4 - core index']
  #allocation1 [shape = 'u32[144,128]{1,0:T(1,128)}', space=vmem, size = 0x12000, scoped, tag = 'internal scratch']
  %s0 = inlined_call_operand.vmem [shape: bf16[512,4], index: 0, kind: input, shape index: {}]
  %s1 = inlined_call_operand.vmem [shape: bf16[4,4], index: 1, kind: input, shape index: {}]
  %s2 = inlined_call_operand.vmem [shape: bf16[512,4], index: 2, kind: output, shape index: {0}]
  %s3 = inlined_call_operand.vmem [shape: f32[2,2,4], index: 3, kind: output, shape index: {1}]
  %4 = xla_tuple %s2, %s3
  %s5 = sld [smem:[#allocation0]]
  $region49: #{bottleneck_forward.4} parent=0
    _
  %s7 = ssub.s32 1, %s5
  %s8 = scalar_select 0, %s7, %s5
  loop: start=0, step=1, limit=4
  $region2: #{bottleneck_forward.4} parent=0 // loop_pre_header
    _
  $region3: #{bottleneck_forward.4} parent=0 // loop_header
    %s10 = sphi 0, %s14
    %p11 = scmp.ge.s32.totalorder %s10, 4
    %s20 = sphi 0, %s22
    %s23 = sphi 0, %s20
    %s24 = sphi 0, %s23
    %s40 = sphi 0, %s24
    %s44 = sphi 0, %s44
    %s46 = sphi 0, %s44
    %s47 = sphi 0, %s46
    %s61 = sphi 0, %s47
    %s67 = sphi 0, %s69
    %s70 = sphi 0, %s67
    %s71 = sphi 0, %s70
    %s87 = sphi 0, %s71
    %s93 = sphi 0, %s95
    %s96 = sphi 0, %s93
    %s97 = sphi 0, %s96
    %s113 = sphi 0, %s97
  $region4: #{bottleneck_forward.4} parent=0 // loop_header_branch
    %13 = sbr.rel (%p11) target = $region8
  $region5: #{bottleneck_forward.4} parent=0 // loop_body
    %s15 = ssub.s32 %s10, 1
    %s16 = ssub.s32 %s10, 2
    %s17 = sadd.s32 %s10, 1
    %s18 = ssub.s32 %s10, %s17
    %p19 = scmp.eq.s32.totalorder %s18, 0
    %s21 = sadd.s32 %s20, 1
    %s22 = scalar_select %p19, %s20, %s21
    %p25 = pneg %p19
    %p26 = scmp.eq.s32.totalorder %s10, 1
    %p27 = por %p25, %p26
    %p28 = scmp.ne.s32.totalorder %s20, %s23
    %p29 = scmp.eq.s32.totalorder %s10, 0
    %p30 = por %p28, %p29
    %p31 = scmp.ne.s32.totalorder %s20, %s23
    %p32 = scmp.eq.s32.totalorder %s15, 1
    %p33 = por %p31, %p32
    %p34 = scmp.ne.s32.totalorder %s23, %s24
    %p35 = scmp.eq.s32.totalorder %s15, 0
    %p36 = por %p34, %p35
    %p37 = scmp.ne.s32.totalorder %s23, %s24
    %p38 = scmp.eq.s32.totalorder %s16, 1
    %p39 = por %p37, %p38
    %p41 = scmp.ne.s32.totalorder %s24, %s40
    %p42 = scmp.eq.s32.totalorder %s16, 0
    %p43 = por %p41, %p42
    %s45 = sadd.s32 %s44, 1
    %p48 = scmp.eq.s32.totalorder %s10, 1
    %p49 = scmp.ne.s32.totalorder %s44, %s46
    %p50 = scmp.eq.s32.totalorder %s10, 0
    %p51 = por %p49, %p50
    %p52 = scmp.ne.s32.totalorder %s44, %s46
    %p53 = scmp.eq.s32.totalorder %s15, 1
    %p54 = por %p52, %p53
    %p55 = scmp.ne.s32.totalorder %s46, %s47
    %p56 = scmp.eq.s32.totalorder %s15, 0
    %p57 = por %p55, %p56
    %p58 = scmp.ne.s32.totalorder %s46, %s47
    %p59 = scmp.eq.s32.totalorder %s16, 1
    %p60 = por %p58, %p59
    %p62 = scmp.ne.s32.totalorder %s47, %s61
    %p63 = scmp.eq.s32.totalorder %s16, 0
    %p64 = por %p62, %p63
    %s65 = ssub.s32 %s10, %s17
    %p66 = scmp.eq.s32.totalorder %s65, 0
    %s68 = sadd.s32 %s67, 1
    %s69 = scalar_select %p66, %s67, %s68
    %p72 = pneg %p66
    %p73 = scmp.eq.s32.totalorder %s10, 1
    %p74 = por %p72, %p73
    %p75 = scmp.ne.s32.totalorder %s67, %s70
    %p76 = scmp.eq.s32.totalorder %s10, 0
    %p77 = por %p75, %p76
    %p78 = scmp.ne.s32.totalorder %s67, %s70
    %p79 = scmp.eq.s32.totalorder %s15, 1
    %p80 = por %p78, %p79
    %p81 = scmp.ne.s32.totalorder %s70, %s71
    %p82 = scmp.eq.s32.totalorder %s15, 0
    %p83 = por %p81, %p82
    %p84 = scmp.ne.s32.totalorder %s70, %s71
    %p85 = scmp.eq.s32.totalorder %s16, 1
    %p86 = por %p84, %p85
    %p88 = scmp.ne.s32.totalorder %s71, %s87
    %p89 = scmp.eq.s32.totalorder %s16, 0
    %p90 = por %p88, %p89
    %s91 = ssub.s32 %s10, %s17
    %p92 = scmp.eq.s32.totalorder %s91, 0
    %s94 = sadd.s32 %s93, 1
    %s95 = scalar_select %p92, %s93, %s94
    %p98 = pneg %p92
    %p99 = scmp.eq.s32.totalorder %s10, 1
    %p100 = por %p98, %p99
    %p101 = scmp.ne.s32.totalorder %s93, %s96
    %p102 = scmp.eq.s32.totalorder %s10, 0
    %p103 = por %p101, %p102
    %p104 = scmp.ne.s32.totalorder %s93, %s96
    %p105 = scmp.eq.s32.totalorder %s15, 1
    %p106 = por %p104, %p105
    %p107 = scmp.ne.s32.totalorder %s96, %s97
    %p108 = scmp.eq.s32.totalorder %s15, 0
    %p109 = por %p107, %p108
    %p110 = scmp.ne.s32.totalorder %s96, %s97
    %p111 = scmp.eq.s32.totalorder %s16, 1
    %p112 = por %p110, %p111
    %p114 = scmp.ne.s32.totalorder %s97, %s113
    %p115 = scmp.eq.s32.totalorder %s16, 0
    %p116 = por %p114, %p115
    %p117 = scmp.le.s32.totalorder 1, %s10
    %p118 = scmp.lt.s32.totalorder %s10, 3
    %p119 = pnand %p117, %p118
    %p120 = pneg %p119
    // Predicated region
    $region9: #{bottleneck_forward.4} parent=5 // pred_check
      _
    $region10: #{bottleneck_forward.4} parent=5 // pred_check_branch
      %122 = sbr.rel (%p119) target = $region12
    $region11: #{bottleneck_forward.4} parent=5 // pred_region
      %s123 = ssub.s32 %s10, 1
      // Predicated region
      $region13: #{bottleneck_forward.4} parent=11 // pred_check
        %p124 = pneg %p57
      $region14: #{bottleneck_forward.4} parent=11 // pred_check_branch
        %126 = sbr.rel (%p124) target = $region16
      $region15: #{bottleneck_forward.4} parent=11 // pred_region
        _
      $region16: #{bottleneck_forward.4} parent=11 // pred_fallthru
        _
    $region12: #{bottleneck_forward.4} parent=5 // pred_fallthru
      _
    %p127 = scmp.lt.s32.totalorder %s10, 2
    // Predicated region
    $region17: #{bottleneck_forward.4} parent=5 // pred_check
      %p128 = pneg %p127
    $region18: #{bottleneck_forward.4} parent=5 // pred_check_branch
      %130 = sbr.rel (%p128) target = $region20
    $region19: #{bottleneck_forward.4} parent=5 // pred_region
      // Predicated region
      $region21: #{bottleneck_forward.4} parent=19 // pred_check
        %p131 = pneg %p30
      $region22: #{bottleneck_forward.4} parent=19 // pred_check_branch
        %133 = sbr.rel (%p131) target = $region24
      $region23: #{bottleneck_forward.4} parent=19 // pred_region
        %s134 = smul.u32 32, %s10
        %p135 = scmp.lt.s32.totalorder %s134, 63
        %s136 = scalar_select %p135, %s134, 63
        %s137 = smul.addr %s136, 4
        %s138 = scalar_lea.vmem %s0, %s137
        %s139 = smul.u32 32, %s10
      $region24: #{bottleneck_forward.4} parent=19 // pred_fallthru
        _
    $region20: #{bottleneck_forward.4} parent=5 // pred_fallthru
      _
    %p140 = scmp.le.s32.totalorder 1, %s10
    %p141 = scmp.lt.s32.totalorder %s10, 3
    %p142 = pnand %p140, %p141
    %p143 = pneg %p142
    // Predicated region
    $region25: #{bottleneck_forward.4} parent=5 // pred_check
      _
    $region26: #{bottleneck_forward.4} parent=5 // pred_check_branch
      %145 = sbr.rel (%p142) target = $region28
    $region27: #{bottleneck_forward.4} parent=5 // pred_region
      %s146 = ssub.s32 %s10, 1
      %s147 = smul.u32 32, %s15
      %p148 = scmp.lt.s32.totalorder %s147, 63
      %s149 = scalar_select %p148, %s147, 63
      %s150 = smul.addr %s149, 4
      %s151 = scalar_lea.vmem %s0, %s150
      %p152 = pneg %p36
      %p153 = pneg %p33
      %p154 = pneg %p57
      %p155 = pneg %p54
      %p156 = pneg %p83
      %p157 = pneg %p80
      %s158 = smul.u32 32, %s15
      %p159 = scmp.lt.s32.totalorder %s158, 63
      %s160 = scalar_select %p159, %s158, 63
      %s161 = smul.addr %s160, 4
      %s162 = scalar_lea.vmem %s2, %s161
      %p163 = pneg %p109
      %p164 = pneg %p106
      %p165 = scmp.lt.s32.totalorder %s15, 1
      %s166 = scalar_select %p165, %s15, 1
      %s167 = smul.addr %s166, 2
      %s168 = scalar_lea.vmem %s3, %s167
      %s169 = smul.u32 32, %s15
      %p170 = scmp.lt.s32.totalorder %s169, 63
      %s171 = scalar_select %p170, %s169, 63
      %s172 = smul.addr %s171, 4
      %s173 = scalar_lea.vmem %s0, %s172
      %s174 = smul.u32 32, %s15
      %s175 = smul.u32 32, %s15
      %p176 = scmp.lt.s32.totalorder %s175, 63
      %s177 = scalar_select %p176, %s175, 63
      %s178 = smul.addr %s177, 4
      %s179 = scalar_lea.vmem %s2, %s178
      %s180 = smul.u32 32, %s15
      %p181 = scmp.lt.s32.totalorder %s15, 1
      %s182 = scalar_select %p181, %s15, 1
      %s183 = smul.addr %s182, 2
      %s184 = scalar_lea.vmem %s3, %s183
      %v186 = vld [vmem:[%s173] sm:$0xf]
      %v187 = vld [vmem:[%s173 + $0x4] sm:$0xf]
      %v188 = vld [vmem:[%s173 + $0x8] sm:$0xf]
      %v189 = vld [vmem:[%s173 + $0xc] sm:$0xf]
      %v190 = vld [vmem:[%s173 + $0x10] sm:$0xf]
      %v191 = vld [vmem:[%s173 + $0x14] sm:$0xf]
      %v192 = vld [vmem:[%s173 + $0x18] sm:$0xf]
      %v193 = vld [vmem:[%s173 + $0x1c] sm:$0xf]
      %v194 = vld [vmem:[%s173 + $0x20] sm:$0xf]
      %v195 = vld [vmem:[%s173 + $0x24] sm:$0xf]
      %v196 = vld [vmem:[%s173 + $0x28] sm:$0xf]
      %v197 = vld [vmem:[%s173 + $0x2c] sm:$0xf]
      %v198 = vld [vmem:[%s173 + $0x30] sm:$0xf]
      %v199 = vld [vmem:[%s173 + $0x34] sm:$0xf]
      %v200 = vld [vmem:[%s173 + $0x38] sm:$0xf]
      %v201 = vld [vmem:[%s173 + $0x3c] sm:$0xf]
      %v202 = vld [vmem:[%s173 + $0x40] sm:$0xf]
      %v203 = vld [vmem:[%s173 + $0x44] sm:$0xf]
      %v204 = vld [vmem:[%s173 + $0x48] sm:$0xf]
      %v205 = vld [vmem:[%s173 + $0x4c] sm:$0xf]
      %v206 = vld [vmem:[%s173 + $0x50] sm:$0xf]
      %v207 = vld [vmem:[%s173 + $0x54] sm:$0xf]
      %v208 = vld [vmem:[%s173 + $0x58] sm:$0xf]
      %v209 = vld [vmem:[%s173 + $0x5c] sm:$0xf]
      %v210 = vld [vmem:[%s173 + $0x60] sm:$0xf]
      %v211 = vld [vmem:[%s173 + $0x64] sm:$0xf]
      %v212 = vld [vmem:[%s173 + $0x68] sm:$0xf]
      %v213 = vld [vmem:[%s173 + $0x6c] sm:$0xf]
      %v214 = vld [vmem:[%s173 + $0x70] sm:$0xf]
      %v215 = vld [vmem:[%s173 + $0x74] sm:$0xf]
      %v216 = vld [vmem:[%s173 + $0x78] sm:$0xf]
      %v217 = vld [vmem:[%s173 + $0x7c] sm:$0xf]
      %v218 = vld [vmem:[%s1] sm:$0x3]
      %v251 = vunpack.c.l.b16 %v186
      %v252 = vunpack.c.l.b16 %v187
      %v253 = vunpack.c.l.b16 %v188
      %v254 = vunpack.c.l.b16 %v189
      %v255 = vunpack.c.l.b16 %v190
      %v256 = vunpack.c.l.b16 %v191
      %v257 = vunpack.c.l.b16 %v192
      %v258 = vunpack.c.l.b16 %v193
      %v259 = vunpack.c.l.b16 %v194
      %v260 = vunpack.c.l.b16 %v195
      %v261 = vunpack.c.l.b16 %v196
      %v262 = vunpack.c.l.b16 %v197
      %v263 = vunpack.c.l.b16 %v198
      %v264 = vunpack.c.l.b16 %v199
      %v265 = vunpack.c.l.b16 %v200
      %v266 = vunpack.c.l.b16 %v201
      %v267 = vunpack.c.l.b16 %v202
      %v268 = vunpack.c.l.b16 %v203
      %v269 = vunpack.c.l.b16 %v204
      %v270 = vunpack.c.l.b16 %v205
      %v271 = vunpack.c.l.b16 %v206
      %v272 = vunpack.c.l.b16 %v207
      %v273 = vunpack.c.l.b16 %v208
      %v274 = vunpack.c.l.b16 %v209
      %v275 = vunpack.c.l.b16 %v210
      %v276 = vunpack.c.l.b16 %v211
      %v277 = vunpack.c.l.b16 %v212
      %v278 = vunpack.c.l.b16 %v213
      %v279 = vunpack.c.l.b16 %v214
      %v280 = vunpack.c.l.b16 %v215
      %v281 = vunpack.c.l.b16 %v216
      %v282 = vunpack.c.l.b16 %v217
      %v283 = vpack.c.b16 %v252, %v251
      %v284 = vpack.c.b16 %v254, %v253
      %v285 = vpack.c.b16 %v256, %v255
      %v286 = vpack.c.b16 %v258, %v257
      %v287 = vpack.c.b16 %v260, %v259
      %v288 = vpack.c.b16 %v262, %v261
      %v289 = vpack.c.b16 %v264, %v263
      %v290 = vpack.c.b16 %v266, %v265
      %v291 = vpack.c.b16 %v268, %v267
      %v292 = vpack.c.b16 %v270, %v269
      %v293 = vpack.c.b16 %v272, %v271
      %v294 = vpack.c.b16 %v274, %v273
      %v295 = vpack.c.b16 %v276, %v275
      %v296 = vpack.c.b16 %v278, %v277
      %v297 = vpack.c.b16 %v280, %v279
      %v298 = vpack.c.b16 %v282, %v281
      %vm299 = vcmask 31744
      %v301 = vsel %vm299, %v283, 0
      %v304 = vsel %vm299, %v284, 0
      %v307 = vsel %vm299, %v285, 0
      %v310 = vsel %vm299, %v286, 0
      %v313 = vsel %vm299, %v287, 0
      %v316 = vsel %vm299, %v288, 0
      %v319 = vsel %vm299, %v289, 0
      %v322 = vsel %vm299, %v290, 0
      %v325 = vsel %vm299, %v291, 0
      %v328 = vsel %vm299, %v292, 0
      %v331 = vsel %vm299, %v293, 0
      %v334 = vsel %vm299, %v294, 0
      %v337 = vsel %vm299, %v295, 0
      %v340 = vsel %vm299, %v296, 0
      %v343 = vsel %vm299, %v297, 0
      %v346 = vsel %vm299, %v298, 0
      %vm348 = vcmask 1041408
      %v350 = vsel %vm348, %v218, 0
      %352 = vmatprep.subr.bf16.mxu0 0
      %353 = vmatpush1.bf16.msra.mxu0 0
      %354 = vmatprep.subr.bf16.mxu0 0
      %355 = vmatpush1.bf16.msra.mxu0 0
      %356 = vmatprep.subr.bf16.mxu0 0
      %357 = vmatpush1.bf16.msra.mxu0 0
      %358 = vmatprep.subr.bf16.mxu0 0
      %359 = vmatpush1.bf16.msra.mxu0 0
      %360 = vmatprep.subr.bf16.mxu0 0
      %361 = vmatpush1.bf16.msra.mxu0 0
      %362 = vmatprep.subr.bf16.mxu0 0
      %363 = vmatpush1.bf16.msra.mxu0 0
      %364 = vmatprep.subr.bf16.mxu0 0
      %365 = vmatpush1.bf16.msra.mxu0 0
      %366 = vmatprep.subr.bf16.mxu0 0
      %367 = vmatpush1.bf16.msra.mxu0 %v350
      %368 = vmatprep.subr.bf16.mxu0 0
      %369 = vmatpush2.bf16.msra.mxu0 0
      %370 = vmatprep.subr.bf16.mxu0 0
      %371 = vmatpush2.bf16.msra.mxu0 0
      %372 = vmatprep.subr.bf16.mxu0 0
      %373 = vmatpush2.bf16.msra.mxu0 0
      %374 = vmatprep.subr.bf16.mxu0 0
      %375 = vmatpush2.bf16.msra.mxu0 0
      %376 = vmatprep.subr.bf16.mxu0 0
      %377 = vmatpush2.bf16.msra.mxu0 0
      %378 = vmatprep.subr.bf16.mxu0 0
      %379 = vmatpush2.bf16.msra.mxu0 0
      %380 = vmatprep.subr.bf16.mxu0 0
      %381 = vmatpush2.bf16.msra.mxu0 0
      %382 = vmatprep.subr.bf16.mxu0 0
      %383 = vmatpush2.bf16.msra.mxu0 0
      %384 = vmatprep.mubr.bf16.mxu0 0
      %385 = vmatmul.mubr.bf16.gmra.mxu0 %v301
      %v386 = vpop.f32.mrf.mxu0
      %v387 = vadd.f32 0.0, %v386
      %v388 = vpop.f32.mrf.mxu0
      %v389 = vpop.f32.mrf.mxu0
      %v390 = vadd.f32 0.0, %v389
      %v391 = vpop.f32.mrf.mxu0
      %392 = vmatprep.mubr.bf16.mxu0 0
      %393 = vmatmul.mubr.bf16.gmra.mxu0 %v304
      %v394 = vpop.f32.mrf.mxu0
      %v395 = vadd.f32 0.0, %v394
      %v396 = vpop.f32.mrf.mxu0
      %v397 = vpop.f32.mrf.mxu0
      %v398 = vadd.f32 0.0, %v397
      %v399 = vpop.f32.mrf.mxu0
      %400 = vmatprep.mubr.bf16.mxu0 0
      %401 = vmatmul.mubr.bf16.gmra.mxu0 %v307
      %v402 = vpop.f32.mrf.mxu0
      %v403 = vadd.f32 0.0, %v402
      %v404 = vpop.f32.mrf.mxu0
      %v405 = vpop.f32.mrf.mxu0
      %v406 = vadd.f32 0.0, %v405
      %v407 = vpop.f32.mrf.mxu0
      %408 = vmatprep.mubr.bf16.mxu0 0
      %409 = vmatmul.mubr.bf16.gmra.mxu0 %v310
      %v410 = vpop.f32.mrf.mxu0
      %v411 = vadd.f32 0.0, %v410
      %v412 = vpop.f32.mrf.mxu0
      %v413 = vpop.f32.mrf.mxu0
      %v414 = vadd.f32 0.0, %v413
      %v415 = vpop.f32.mrf.mxu0
      %416 = vmatprep.mubr.bf16.mxu0 0
      %417 = vmatmul.mubr.bf16.gmra.mxu0 %v313
      %v418 = vpop.f32.mrf.mxu0
      %v419 = vadd.f32 0.0, %v418
      %v420 = vpop.f32.mrf.mxu0
      %v421 = vpop.f32.mrf.mxu0
      %v422 = vadd.f32 0.0, %v421
      %v423 = vpop.f32.mrf.mxu0
      %424 = vmatprep.mubr.bf16.mxu0 0
      %425 = vmatmul.mubr.bf16.gmra.mxu0 %v316
      %v426 = vpop.f32.mrf.mxu0
      %v427 = vadd.f32 0.0, %v426
      %v428 = vpop.f32.mrf.mxu0
      %v429 = vpop.f32.mrf.mxu0
      %v430 = vadd.f32 0.0, %v429
      %v431 = vpop.f32.mrf.mxu0
      %432 = vmatprep.mubr.bf16.mxu0 0
      %433 = vmatmul.mubr.bf16.gmra.mxu0 %v319
      %v434 = vpop.f32.mrf.mxu0
      %v435 = vadd.f32 0.0, %v434
      %v436 = vpop.f32.mrf.mxu0
      %v437 = vpop.f32.mrf.mxu0
      %v438 = vadd.f32 0.0, %v437
      %v439 = vpop.f32.mrf.mxu0
      %440 = vmatprep.mubr.bf16.mxu0 0
      %441 = vmatmul.mubr.bf16.gmra.mxu0 %v322
      %v442 = vpop.f32.mrf.mxu0
      %v443 = vadd.f32 0.0, %v442
      %v444 = vpop.f32.mrf.mxu0
      %v445 = vpop.f32.mrf.mxu0
      %v446 = vadd.f32 0.0, %v445
      %v447 = vpop.f32.mrf.mxu0
      %448 = vmatprep.mubr.bf16.mxu0 0
      %449 = vmatmul.mubr.bf16.gmra.mxu0 %v325
      %v450 = vpop.f32.mrf.mxu0
      %v451 = vadd.f32 0.0, %v450
      %v452 = vpop.f32.mrf.mxu0
      %v453 = vpop.f32.mrf.mxu0
      %v454 = vadd.f32 0.0, %v453
      %v455 = vpop.f32.mrf.mxu0
      %456 = vmatprep.mubr.bf16.mxu0 0
      %457 = vmatmul.mubr.bf16.gmra.mxu0 %v328
      %v458 = vpop.f32.mrf.mxu0
      %v459 = vadd.f32 0.0, %v458
      %v460 = vpop.f32.mrf.mxu0
      %v461 = vpop.f32.mrf.mxu0
      %v462 = vadd.f32 0.0, %v461
      %v463 = vpop.f32.mrf.mxu0
      %464 = vmatprep.mubr.bf16.mxu0 0
      %465 = vmatmul.mubr.bf16.gmra.mxu0 %v331
      %v466 = vpop.f32.mrf.mxu0
      %v467 = vadd.f32 0.0, %v466
      %v468 = vpop.f32.mrf.mxu0
      %v469 = vpop.f32.mrf.mxu0
      %v470 = vadd.f32 0.0, %v469
      %v471 = vpop.f32.mrf.mxu0
      %472 = vmatprep.mubr.bf16.mxu0 0
      %473 = vmatmul.mubr.bf16.gmra.mxu0 %v334
      %v474 = vpop.f32.mrf.mxu0
      %v475 = vadd.f32 0.0, %v474
      %v476 = vpop.f32.mrf.mxu0
      %v477 = vpop.f32.mrf.mxu0
      %v478 = vadd.f32 0.0, %v477
      %v479 = vpop.f32.mrf.mxu0
      %480 = vmatprep.mubr.bf16.mxu0 0
      %481 = vmatmul.mubr.bf16.gmra.mxu0 %v337
      %v482 = vpop.f32.mrf.mxu0
      %v483 = vadd.f32 0.0, %v482
      %v484 = vpop.f32.mrf.mxu0
      %v485 = vpop.f32.mrf.mxu0
      %v486 = vadd.f32 0.0, %v485
      %v487 = vpop.f32.mrf.mxu0
      %488 = vmatprep.mubr.bf16.mxu0 0
      %489 = vmatmul.mubr.bf16.gmra.mxu0 %v340
      %v490 = vpop.f32.mrf.mxu0
      %v491 = vadd.f32 0.0, %v490
      %v492 = vpop.f32.mrf.mxu0
      %v493 = vpop.f32.mrf.mxu0
      %v494 = vadd.f32 0.0, %v493
      %v495 = vpop.f32.mrf.mxu0
      %496 = vmatprep.mubr.bf16.mxu0 0
      %497 = vmatmul.mubr.bf16.gmra.mxu0 %v343
      %v498 = vpop.f32.mrf.mxu0
      %v499 = vadd.f32 0.0, %v498
      %v500 = vpop.f32.mrf.mxu0
      %v501 = vpop.f32.mrf.mxu0
      %v502 = vadd.f32 0.0, %v501
      %v503 = vpop.f32.mrf.mxu0
      %504 = vmatprep.mubr.bf16.mxu0 0
      %505 = vmatmul.mubr.bf16.gmra.mxu0 %v346
      %v506 = vpop.f32.mrf.mxu0
      %v507 = vadd.f32 0.0, %v506
      %v508 = vpop.f32.mrf.mxu0
      %v509 = vpop.f32.mrf.mxu0
      %v510 = vadd.f32 0.0, %v509
      %v511 = vpop.f32.mrf.mxu0
      %512 = vdwg.mxu0
      %v513 = vpack.c.bf16 %v390, %v387
      %v514 = vpack.c.bf16 %v398, %v395
      %v515 = vpack.c.bf16 %v406, %v403
      %v516 = vpack.c.bf16 %v414, %v411
      %v517 = vpack.c.bf16 %v422, %v419
      %v518 = vpack.c.bf16 %v430, %v427
      %v519 = vpack.c.bf16 %v438, %v435
      %v520 = vpack.c.bf16 %v446, %v443
      %v521 = vpack.c.bf16 %v454, %v451
      %v522 = vpack.c.bf16 %v462, %v459
      %v523 = vpack.c.bf16 %v470, %v467
      %v524 = vpack.c.bf16 %v478, %v475
      %v525 = vpack.c.bf16 %v486, %v483
      %v526 = vpack.c.bf16 %v494, %v491
      %v527 = vpack.c.bf16 %v502, %v499
      %v528 = vpack.c.bf16 %v510, %v507
      %v545 = vunpack.c.l.b16 %v513
      %v546 = vunpack.c.h.b16 %v513
      %v547 = vunpack.c.l.b16 %v514
      %v548 = vunpack.c.h.b16 %v514
      %v549 = vunpack.c.l.b16 %v515
      %v550 = vunpack.c.h.b16 %v515
      %v551 = vunpack.c.l.b16 %v516
      %v552 = vunpack.c.h.b16 %v516
      %v553 = vunpack.c.l.b16 %v517
      %v554 = vunpack.c.h.b16 %v517
      %v555 = vunpack.c.l.b16 %v518
      %v556 = vunpack.c.h.b16 %v518
      %v557 = vunpack.c.l.b16 %v519
      %v558 = vunpack.c.h.b16 %v519
      %v559 = vunpack.c.l.b16 %v520
      %v560 = vunpack.c.h.b16 %v520
      %v561 = vunpack.c.l.b16 %v521
      %v562 = vunpack.c.h.b16 %v521
      %v563 = vunpack.c.l.b16 %v522
      %v564 = vunpack.c.h.b16 %v522
      %v565 = vunpack.c.l.b16 %v523
      %v566 = vunpack.c.h.b16 %v523
      %v567 = vunpack.c.l.b16 %v524
      %v568 = vunpack.c.h.b16 %v524
      %v569 = vunpack.c.l.b16 %v525
      %v570 = vunpack.c.h.b16 %v525
      %v571 = vunpack.c.l.b16 %v526
      %v572 = vunpack.c.h.b16 %v526
      %v573 = vunpack.c.l.b16 %v527
      %v574 = vunpack.c.h.b16 %v527
      %v575 = vunpack.c.l.b16 %v528
      %v576 = vunpack.c.h.b16 %v528
      %v577 = vpack.c.b16 %v545, %v545
      %v578 = vpack.c.b16 %v546, %v546
      %v579 = vpack.c.b16 %v547, %v547
      %v580 = vpack.c.b16 %v548, %v548
      %v581 = vpack.c.b16 %v549, %v549
      %v582 = vpack.c.b16 %v550, %v550
      %v583 = vpack.c.b16 %v551, %v551
      %v584 = vpack.c.b16 %v552, %v552
      %v585 = vpack.c.b16 %v553, %v553
      %v586 = vpack.c.b16 %v554, %v554
      %v587 = vpack.c.b16 %v555, %v555
      %v588 = vpack.c.b16 %v556, %v556
      %v589 = vpack.c.b16 %v557, %v557
      %v590 = vpack.c.b16 %v558, %v558
      %v591 = vpack.c.b16 %v559, %v559
      %v592 = vpack.c.b16 %v560, %v560
      %v593 = vpack.c.b16 %v561, %v561
      %v594 = vpack.c.b16 %v562, %v562
      %v595 = vpack.c.b16 %v563, %v563
      %v596 = vpack.c.b16 %v564, %v564
      %v597 = vpack.c.b16 %v565, %v565
      %v598 = vpack.c.b16 %v566, %v566
      %v599 = vpack.c.b16 %v567, %v567
      %v600 = vpack.c.b16 %v568, %v568
      %v601 = vpack.c.b16 %v569, %v569
      %v602 = vpack.c.b16 %v570, %v570
      %v603 = vpack.c.b16 %v571, %v571
      %v604 = vpack.c.b16 %v572, %v572
      %v605 = vpack.c.b16 %v573, %v573
      %v606 = vpack.c.b16 %v574, %v574
      %v607 = vpack.c.b16 %v575, %v575
      %v608 = vpack.c.b16 %v576, %v576
      %vm641 = vcmask 27648
      %642 = vst.msk [vmem:[%s179] sm:$0xf] %vm641, %v577
      %643 = vst.msk [vmem:[%s179 + $0x4] sm:$0xf] %vm641, %v578
      %644 = vst.msk [vmem:[%s179 + $0x8] sm:$0xf] %vm641, %v579
      %645 = vst.msk [vmem:[%s179 + $0xc] sm:$0xf] %vm641, %v580
      %646 = vst.msk [vmem:[%s179 + $0x10] sm:$0xf] %vm641, %v581
      %647 = vst.msk [vmem:[%s179 + $0x14] sm:$0xf] %vm641, %v582
      %648 = vst.msk [vmem:[%s179 + $0x18] sm:$0xf] %vm641, %v583
      %649 = vst.msk [vmem:[%s179 + $0x1c] sm:$0xf] %vm641, %v584
      %650 = vst.msk [vmem:[%s179 + $0x20] sm:$0xf] %vm641, %v585
      %651 = vst.msk [vmem:[%s179 + $0x24] sm:$0xf] %vm641, %v586
      %652 = vst.msk [vmem:[%s179 + $0x28] sm:$0xf] %vm641, %v587
      %653 = vst.msk [vmem:[%s179 + $0x2c] sm:$0xf] %vm641, %v588
      %654 = vst.msk [vmem:[%s179 + $0x30] sm:$0xf] %vm641, %v589
      %655 = vst.msk [vmem:[%s179 + $0x34] sm:$0xf] %vm641, %v590
      %656 = vst.msk [vmem:[%s179 + $0x38] sm:$0xf] %vm641, %v591
      %657 = vst.msk [vmem:[%s179 + $0x3c] sm:$0xf] %vm641, %v592
      %658 = vst.msk [vmem:[%s179 + $0x40] sm:$0xf] %vm641, %v593
      %659 = vst.msk [vmem:[%s179 + $0x44] sm:$0xf] %vm641, %v594
      %660 = vst.msk [vmem:[%s179 + $0x48] sm:$0xf] %vm641, %v595
      %661 = vst.msk [vmem:[%s179 + $0x4c] sm:$0xf] %vm641, %v596
      %662 = vst.msk [vmem:[%s179 + $0x50] sm:$0xf] %vm641, %v597
      %663 = vst.msk [vmem:[%s179 + $0x54] sm:$0xf] %vm641, %v598
      %664 = vst.msk [vmem:[%s179 + $0x58] sm:$0xf] %vm641, %v599
      %665 = vst.msk [vmem:[%s179 + $0x5c] sm:$0xf] %vm641, %v600
      %666 = vst.msk [vmem:[%s179 + $0x60] sm:$0xf] %vm641, %v601
      %667 = vst.msk [vmem:[%s179 + $0x64] sm:$0xf] %vm641, %v602
      %668 = vst.msk [vmem:[%s179 + $0x68] sm:$0xf] %vm641, %v603
      %669 = vst.msk [vmem:[%s179 + $0x6c] sm:$0xf] %vm641, %v604
      %670 = vst.msk [vmem:[%s179 + $0x70] sm:$0xf] %vm641, %v605
      %671 = vst.msk [vmem:[%s179 + $0x74] sm:$0xf] %vm641, %v606
      %672 = vst.msk [vmem:[%s179 + $0x78] sm:$0xf] %vm641, %v607
      %673 = vst.msk [vmem:[%s179 + $0x7c] sm:$0xf] %vm641, %v608
      %v674 = vsel %vm299, %v387, 0.0
      %v675 = vsel %vm299, %v390, 0.0
      %v676 = vadd.f32 %v674, %v675
      %v677 = vsel %vm299, %v395, 0.0
      %v678 = vadd.f32 %v676, %v677
      %v679 = vsel %vm299, %v398, 0.0
      %v680 = vadd.f32 %v678, %v679
      %v681 = vsel %vm299, %v403, 0.0
      %v682 = vadd.f32 %v680, %v681
      %v683 = vsel %vm299, %v406, 0.0
      %v684 = vadd.f32 %v682, %v683
      %v685 = vsel %vm299, %v411, 0.0
      %v686 = vadd.f32 %v684, %v685
      %v687 = vsel %vm299, %v414, 0.0
      %v688 = vadd.f32 %v686, %v687
      %v689 = vsel %vm299, %v419, 0.0
      %v690 = vadd.f32 %v688, %v689
      %v691 = vsel %vm299, %v422, 0.0
      %v692 = vadd.f32 %v690, %v691
      %v693 = vsel %vm299, %v427, 0.0
      %v694 = vadd.f32 %v692, %v693
      %v695 = vsel %vm299, %v430, 0.0
      %v696 = vadd.f32 %v694, %v695
      %v697 = vsel %vm299, %v435, 0.0
      %v698 = vadd.f32 %v696, %v697
      %v699 = vsel %vm299, %v438, 0.0
      %v700 = vadd.f32 %v698, %v699
      %v701 = vsel %vm299, %v443, 0.0
      %v702 = vadd.f32 %v700, %v701
      %v703 = vsel %vm299, %v446, 0.0
      %v704 = vadd.f32 %v702, %v703
      %v705 = vsel %vm299, %v451, 0.0
      %v706 = vadd.f32 %v704, %v705
      %v707 = vsel %vm299, %v454, 0.0
      %v708 = vadd.f32 %v706, %v707
      %v709 = vsel %vm299, %v459, 0.0
      %v710 = vadd.f32 %v708, %v709
      %v711 = vsel %vm299, %v462, 0.0
      %v712 = vadd.f32 %v710, %v711
      %v713 = vsel %vm299, %v467, 0.0
      %v714 = vadd.f32 %v712, %v713
      %v715 = vsel %vm299, %v470, 0.0
      %v716 = vadd.f32 %v714, %v715
      %v717 = vsel %vm299, %v475, 0.0
      %v718 = vadd.f32 %v716, %v717
      %v719 = vsel %vm299, %v478, 0.0
      %v720 = vadd.f32 %v718, %v719
      %v721 = vsel %vm299, %v483, 0.0
      %v722 = vadd.f32 %v720, %v721
      %v723 = vsel %vm299, %v486, 0.0
      %v724 = vadd.f32 %v722, %v723
      %v725 = vsel %vm299, %v491, 0.0
      %v726 = vadd.f32 %v724, %v725
      %v727 = vsel %vm299, %v494, 0.0
      %v728 = vadd.f32 %v726, %v727
      %v729 = vsel %vm299, %v499, 0.0
      %v730 = vadd.f32 %v728, %v729
      %v731 = vsel %vm299, %v502, 0.0
      %v732 = vadd.f32 %v730, %v731
      %v733 = vsel %vm299, %v507, 0.0
      %v734 = vadd.f32 %v732, %v733
      %v735 = vsel %vm299, %v510, 0.0
      %v736 = vadd.f32 %v734, %v735
      %v737 = vrot.slane %v736, 4
      %v738 = vadd.f32 %v736, %v737
      %v739 = vrot.slane %v738, 2
      %v740 = vadd.f32 %v738, %v739
      %v741 = vrot.slane %v740, 1
      %v742 = vadd.f32 %v740, %v741
      %v743 = vmul.f32 %v387, %v387
      %v744 = vmul.f32 %v390, %v390
      %v745 = vmul.f32 %v395, %v395
      %v746 = vmul.f32 %v398, %v398
      %v747 = vmul.f32 %v403, %v403
      %v748 = vmul.f32 %v406, %v406
      %v749 = vmul.f32 %v411, %v411
      %v750 = vmul.f32 %v414, %v414
      %v751 = vmul.f32 %v419, %v419
      %v752 = vmul.f32 %v422, %v422
      %v753 = vmul.f32 %v427, %v427
      %v754 = vmul.f32 %v430, %v430
      %v755 = vmul.f32 %v435, %v435
      %v756 = vmul.f32 %v438, %v438
      %v757 = vmul.f32 %v443, %v443
      %v758 = vmul.f32 %v446, %v446
      %v759 = vmul.f32 %v451, %v451
      %v760 = vmul.f32 %v454, %v454
      %v761 = vmul.f32 %v459, %v459
      %v762 = vmul.f32 %v462, %v462
      %v763 = vmul.f32 %v467, %v467
      %v764 = vmul.f32 %v470, %v470
      %v765 = vmul.f32 %v475, %v475
      %v766 = vmul.f32 %v478, %v478
      %v767 = vmul.f32 %v483, %v483
      %v768 = vmul.f32 %v486, %v486
      %v769 = vmul.f32 %v491, %v491
      %v770 = vmul.f32 %v494, %v494
      %v771 = vmul.f32 %v499, %v499
      %v772 = vmul.f32 %v502, %v502
      %v773 = vmul.f32 %v507, %v507
      %v774 = vmul.f32 %v510, %v510
      %v775 = vsel %vm299, %v743, 0.0
      %v776 = vsel %vm299, %v744, 0.0
      %v777 = vadd.f32 %v775, %v776
      %v778 = vsel %vm299, %v745, 0.0
      %v779 = vadd.f32 %v777, %v778
      %v780 = vsel %vm299, %v746, 0.0
      %v781 = vadd.f32 %v779, %v780
      %v782 = vsel %vm299, %v747, 0.0
      %v783 = vadd.f32 %v781, %v782
      %v784 = vsel %vm299, %v748, 0.0
      %v785 = vadd.f32 %v783, %v784
      %v786 = vsel %vm299, %v749, 0.0
      %v787 = vadd.f32 %v785, %v786
      %v788 = vsel %vm299, %v750, 0.0
      %v789 = vadd.f32 %v787, %v788
      %v790 = vsel %vm299, %v751, 0.0
      %v791 = vadd.f32 %v789, %v790
      %v792 = vsel %vm299, %v752, 0.0
      %v793 = vadd.f32 %v791, %v792
      %v794 = vsel %vm299, %v753, 0.0
      %v795 = vadd.f32 %v793, %v794
      %v796 = vsel %vm299, %v754, 0.0
      %v797 = vadd.f32 %v795, %v796
      %v798 = vsel %vm299, %v755, 0.0
      %v799 = vadd.f32 %v797, %v798
      %v800 = vsel %vm299, %v756, 0.0
      %v801 = vadd.f32 %v799, %v800
      %v802 = vsel %vm299, %v757, 0.0
      %v803 = vadd.f32 %v801, %v802
      %v804 = vsel %vm299, %v758, 0.0
      %v805 = vadd.f32 %v803, %v804
      %v806 = vsel %vm299, %v759, 0.0
      %v807 = vadd.f32 %v805, %v806
      %v808 = vsel %vm299, %v760, 0.0
      %v809 = vadd.f32 %v807, %v808
      %v810 = vsel %vm299, %v761, 0.0
      %v811 = vadd.f32 %v809, %v810
      %v812 = vsel %vm299, %v762, 0.0
      %v813 = vadd.f32 %v811, %v812
      %v814 = vsel %vm299, %v763, 0.0
      %v815 = vadd.f32 %v813, %v814
      %v816 = vsel %vm299, %v764, 0.0
      %v817 = vadd.f32 %v815, %v816
      %v818 = vsel %vm299, %v765, 0.0
      %v819 = vadd.f32 %v817, %v818
      %v820 = vsel %vm299, %v766, 0.0
      %v821 = vadd.f32 %v819, %v820
      %v822 = vsel %vm299, %v767, 0.0
      %v823 = vadd.f32 %v821, %v822
      %v824 = vsel %vm299, %v768, 0.0
      %v825 = vadd.f32 %v823, %v824
      %v826 = vsel %vm299, %v769, 0.0
      %v827 = vadd.f32 %v825, %v826
      %v828 = vsel %vm299, %v770, 0.0
      %v829 = vadd.f32 %v827, %v828
      %v830 = vsel %vm299, %v771, 0.0
      %v831 = vadd.f32 %v829, %v830
      %v832 = vsel %vm299, %v772, 0.0
      %v833 = vadd.f32 %v831, %v832
      %v834 = vsel %vm299, %v773, 0.0
      %v835 = vadd.f32 %v833, %v834
      %v836 = vsel %vm299, %v774, 0.0
      %v837 = vadd.f32 %v835, %v836
      %v838 = vrot.slane %v837, 4
      %v839 = vadd.f32 %v837, %v838
      %v840 = vrot.slane %v839, 2
      %v841 = vadd.f32 %v839, %v840
      %v842 = vrot.slane %v841, 1
      %v843 = vadd.f32 %v841, %v842
      %vm844 = vcmask 1040384
      %v845 = vsel %vm844, %v742, %v843
      %vm846 = vcmask 25600
      %847 = vst.msk [vmem:[%s184] sm:$0x3] %vm846, %v845
      %s848 = smul.u32 32, %s15
      %p849 = scmp.lt.s32.totalorder %s848, 63
      %s850 = scalar_select %p849, %s848, 63
      %s851 = smul.addr %s850, 4
      %s852 = scalar_lea.vmem %s2, %s851
      %p853 = scmp.lt.s32.totalorder %s15, 1
      %s854 = scalar_select %p853, %s15, 1
      %s855 = smul.addr %s854, 2
      %s856 = scalar_lea.vmem %s3, %s855
      // Predicated region
      $region29: #{bottleneck_forward.4} parent=27 // pred_check
        %p857 = pneg %p80
      $region30: #{bottleneck_forward.4} parent=27 // pred_check_branch
        %859 = sbr.rel (%p857) target = $region32
      $region31: #{bottleneck_forward.4} parent=27 // pred_region
        %s860 = smul.u32 32, %s15
      $region32: #{bottleneck_forward.4} parent=27 // pred_fallthru
        _
      // Predicated region
      $region33: #{bottleneck_forward.4} parent=27 // pred_check
        %p861 = pneg %p106
      $region34: #{bottleneck_forward.4} parent=27 // pred_check_branch
        %863 = sbr.rel (%p861) target = $region36
      $region35: #{bottleneck_forward.4} parent=27 // pred_region
        _
      $region36: #{bottleneck_forward.4} parent=27 // pred_fallthru
        _
    $region28: #{bottleneck_forward.4} parent=5 // pred_fallthru
      _
    %p864 = scmp.le.s32.totalorder 2, %s10
    // Predicated region
    $region37: #{bottleneck_forward.4} parent=5 // pred_check
      %p865 = pneg %p864
    $region38: #{bottleneck_forward.4} parent=5 // pred_check_branch
      %867 = sbr.rel (%p865) target = $region40
    $region39: #{bottleneck_forward.4} parent=5 // pred_region
      %s868 = ssub.s32 %s10, 2
      // Predicated region
      $region41: #{bottleneck_forward.4} parent=39 // pred_check
        %p869 = pneg %p86
      $region42: #{bottleneck_forward.4} parent=39 // pred_check_branch
        %871 = sbr.rel (%p869) target = $region44
      $region43: #{bottleneck_forward.4} parent=39 // pred_region
        %s872 = smul.u32 32, %s16
        %p873 = scmp.lt.s32.totalorder %s872, 63
        %s874 = scalar_select %p873, %s872, 63
        %s875 = smul.addr %s874, 4
        %s876 = scalar_lea.vmem %s2, %s875
      $region44: #{bottleneck_forward.4} parent=39 // pred_fallthru
        _
      // Predicated region
      $region45: #{bottleneck_forward.4} parent=39 // pred_check
        %p877 = pneg %p112
      $region46: #{bottleneck_forward.4} parent=39 // pred_check_branch
        %879 = sbr.rel (%p877) target = $region48
      $region47: #{bottleneck_forward.4} parent=39 // pred_region
        %p880 = scmp.lt.s32.totalorder %s16, 1
        %s881 = scalar_select %p880, %s16, 1
        %s882 = smul.addr %s881, 2
        %s883 = scalar_lea.vmem %s3, %s882
      $region48: #{bottleneck_forward.4} parent=39 // pred_fallthru
        _
    $region40: #{bottleneck_forward.4} parent=5 // pred_fallthru
      _
  $region6: #{bottleneck_forward.4} parent=0 // loop_footer
    %s14 = sadd.s32 1, %s10
  $region7: #{bottleneck_forward.4} parent=0 // loop_footer_branch
    %9 = sbr.rel target = $region3
  $region8: #{bottleneck_forward.4} parent=0 // loop_exit
    _

// kernel: bottleneck_forward.6
$region0: #{bottleneck_forward.6}
  #allocation0 [shape = 'u32[]', space=smem, size = 0x4, offset = 0x4, fixed_abs, tag = 'smem constant byte address 0x4 - core index']
  #allocation1 [shape = 'u32[144,128]{1,0:T(1,128)}', space=vmem, size = 0x12000, scoped, tag = 'internal scratch']
  %s0 = inlined_call_operand.vmem [shape: bf16[128,4], index: 0, kind: input, shape index: {}]
  %s1 = inlined_call_operand.vmem [shape: f32[1,4], index: 1, kind: input, shape index: {}]
  %s2 = inlined_call_operand.vmem [shape: f32[1,4], index: 2, kind: input, shape index: {}]
  %s3 = inlined_call_operand.vmem [shape: bf16[4,16], index: 3, kind: input, shape index: {}]
  %s4 = inlined_call_operand.vmem [shape: bf16[128,4], index: 4, kind: input, shape index: {}]
  %s5 = inlined_call_operand.vmem [shape: bf16[4,16], index: 5, kind: input, shape index: {}]
  %s6 = inlined_call_operand.vmem [shape: bf16[128,16], index: 6, kind: output, shape index: {0}]
  %s7 = inlined_call_operand.vmem [shape: bf16[128,16], index: 7, kind: output, shape index: {1}]
  %s8 = inlined_call_operand.vmem [shape: f32[2,2,16], index: 8, kind: output, shape index: {2}]
  %s9 = inlined_call_operand.vmem [shape: f32[2,2,16], index: 9, kind: output, shape index: {3}]
  %10 = xla_tuple %s6, %s7, %s8, %s9
  %s11 = sld [smem:[#allocation0]]
  $region81: #{bottleneck_forward.6} parent=0
    _
  %s13 = ssub.s32 1, %s11
  %s14 = scalar_select 0, %s13, %s11
  loop: start=0, step=1, limit=4
  $region2: #{bottleneck_forward.6} parent=0 // loop_pre_header
    _
  $region3: #{bottleneck_forward.6} parent=0 // loop_header
    %s16 = sphi 0, %s20
    %p17 = scmp.ge.s32.totalorder %s16, 4
    %s26 = sphi 0, %s28
    %s29 = sphi 0, %s26
    %s30 = sphi 0, %s29
    %s46 = sphi 0, %s30
    %s50 = sphi 0, %s50
    %s52 = sphi 0, %s50
    %s53 = sphi 0, %s52
    %s67 = sphi 0, %s53
    %s71 = sphi 0, %s71
    %s73 = sphi 0, %s71
    %s74 = sphi 0, %s73
    %s88 = sphi 0, %s74
    %s92 = sphi 0, %s92
    %s94 = sphi 0, %s92
    %s95 = sphi 0, %s94
    %s109 = sphi 0, %s95
    %s115 = sphi 0, %s117
    %s118 = sphi 0, %s115
    %s119 = sphi 0, %s118
    %s135 = sphi 0, %s119
    %s139 = sphi 0, %s139
    %s141 = sphi 0, %s139
    %s142 = sphi 0, %s141
    %s156 = sphi 0, %s142
    %s162 = sphi 0, %s164
    %s165 = sphi 0, %s162
    %s166 = sphi 0, %s165
    %s182 = sphi 0, %s166
    %s188 = sphi 0, %s190
    %s191 = sphi 0, %s188
    %s192 = sphi 0, %s191
    %s208 = sphi 0, %s192
    %s214 = sphi 0, %s216
    %s217 = sphi 0, %s214
    %s218 = sphi 0, %s217
    %s234 = sphi 0, %s218
    %s240 = sphi 0, %s242
    %s243 = sphi 0, %s240
    %s244 = sphi 0, %s243
    %s260 = sphi 0, %s244
  $region4: #{bottleneck_forward.6} parent=0 // loop_header_branch
    %19 = sbr.rel (%p17) target = $region8
  $region5: #{bottleneck_forward.6} parent=0 // loop_body
    %s21 = ssub.s32 %s16, 1
    %s22 = ssub.s32 %s16, 2
    %s23 = sadd.s32 %s16, 1
    %s24 = ssub.s32 %s16, %s23
    %p25 = scmp.eq.s32.totalorder %s24, 0
    %s27 = sadd.s32 %s26, 1
    %s28 = scalar_select %p25, %s26, %s27
    %p31 = pneg %p25
    %p32 = scmp.eq.s32.totalorder %s16, 1
    %p33 = por %p31, %p32
    %p34 = scmp.ne.s32.totalorder %s26, %s29
    %p35 = scmp.eq.s32.totalorder %s16, 0
    %p36 = por %p34, %p35
    %p37 = scmp.ne.s32.totalorder %s26, %s29
    %p38 = scmp.eq.s32.totalorder %s21, 1
    %p39 = por %p37, %p38
    %p40 = scmp.ne.s32.totalorder %s29, %s30
    %p41 = scmp.eq.s32.totalorder %s21, 0
    %p42 = por %p40, %p41
    %p43 = scmp.ne.s32.totalorder %s29, %s30
    %p44 = scmp.eq.s32.totalorder %s22, 1
    %p45 = por %p43, %p44
    %p47 = scmp.ne.s32.totalorder %s30, %s46
    %p48 = scmp.eq.s32.totalorder %s22, 0
    %p49 = por %p47, %p48
    %s51 = sadd.s32 %s50, 1
    %p54 = scmp.eq.s32.totalorder %s16, 1
    %p55 = scmp.ne.s32.totalorder %s50, %s52
    %p56 = scmp.eq.s32.totalorder %s16, 0
    %p57 = por %p55, %p56
    %p58 = scmp.ne.s32.totalorder %s50, %s52
    %p59 = scmp.eq.s32.totalorder %s21, 1
    %p60 = por %p58, %p59
    %p61 = scmp.ne.s32.totalorder %s52, %s53
    %p62 = scmp.eq.s32.totalorder %s21, 0
    %p63 = por %p61, %p62
    %p64 = scmp.ne.s32.totalorder %s52, %s53
    %p65 = scmp.eq.s32.totalorder %s22, 1
    %p66 = por %p64, %p65
    %p68 = scmp.ne.s32.totalorder %s53, %s67
    %p69 = scmp.eq.s32.totalorder %s22, 0
    %p70 = por %p68, %p69
    %s72 = sadd.s32 %s71, 1
    %p75 = scmp.eq.s32.totalorder %s16, 1
    %p76 = scmp.ne.s32.totalorder %s71, %s73
    %p77 = scmp.eq.s32.totalorder %s16, 0
    %p78 = por %p76, %p77
    %p79 = scmp.ne.s32.totalorder %s71, %s73
    %p80 = scmp.eq.s32.totalorder %s21, 1
    %p81 = por %p79, %p80
    %p82 = scmp.ne.s32.totalorder %s73, %s74
    %p83 = scmp.eq.s32.totalorder %s21, 0
    %p84 = por %p82, %p83
    %p85 = scmp.ne.s32.totalorder %s73, %s74
    %p86 = scmp.eq.s32.totalorder %s22, 1
    %p87 = por %p85, %p86
    %p89 = scmp.ne.s32.totalorder %s74, %s88
    %p90 = scmp.eq.s32.totalorder %s22, 0
    %p91 = por %p89, %p90
    %s93 = sadd.s32 %s92, 1
    %p96 = scmp.eq.s32.totalorder %s16, 1
    %p97 = scmp.ne.s32.totalorder %s92, %s94
    %p98 = scmp.eq.s32.totalorder %s16, 0
    %p99 = por %p97, %p98
    %p100 = scmp.ne.s32.totalorder %s92, %s94
    %p101 = scmp.eq.s32.totalorder %s21, 1
    %p102 = por %p100, %p101
    %p103 = scmp.ne.s32.totalorder %s94, %s95
    %p104 = scmp.eq.s32.totalorder %s21, 0
    %p105 = por %p103, %p104
    %p106 = scmp.ne.s32.totalorder %s94, %s95
    %p107 = scmp.eq.s32.totalorder %s22, 1
    %p108 = por %p106, %p107
    %p110 = scmp.ne.s32.totalorder %s95, %s109
    %p111 = scmp.eq.s32.totalorder %s22, 0
    %p112 = por %p110, %p111
    %s113 = ssub.s32 %s16, %s23
    %p114 = scmp.eq.s32.totalorder %s113, 0
    %s116 = sadd.s32 %s115, 1
    %s117 = scalar_select %p114, %s115, %s116
    %p120 = pneg %p114
    %p121 = scmp.eq.s32.totalorder %s16, 1
    %p122 = por %p120, %p121
    %p123 = scmp.ne.s32.totalorder %s115, %s118
    %p124 = scmp.eq.s32.totalorder %s16, 0
    %p125 = por %p123, %p124
    %p126 = scmp.ne.s32.totalorder %s115, %s118
    %p127 = scmp.eq.s32.totalorder %s21, 1
    %p128 = por %p126, %p127
    %p129 = scmp.ne.s32.totalorder %s118, %s119
    %p130 = scmp.eq.s32.totalorder %s21, 0
    %p131 = por %p129, %p130
    %p132 = scmp.ne.s32.totalorder %s118, %s119
    %p133 = scmp.eq.s32.totalorder %s22, 1
    %p134 = por %p132, %p133
    %p136 = scmp.ne.s32.totalorder %s119, %s135
    %p137 = scmp.eq.s32.totalorder %s22, 0
    %p138 = por %p136, %p137
    %s140 = sadd.s32 %s139, 1
    %p143 = scmp.eq.s32.totalorder %s16, 1
    %p144 = scmp.ne.s32.totalorder %s139, %s141
    %p145 = scmp.eq.s32.totalorder %s16, 0
    %p146 = por %p144, %p145
    %p147 = scmp.ne.s32.totalorder %s139, %s141
    %p148 = scmp.eq.s32.totalorder %s21, 1
    %p149 = por %p147, %p148
    %p150 = scmp.ne.s32.totalorder %s141, %s142
    %p151 = scmp.eq.s32.totalorder %s21, 0
    %p152 = por %p150, %p151
    %p153 = scmp.ne.s32.totalorder %s141, %s142
    %p154 = scmp.eq.s32.totalorder %s22, 1
    %p155 = por %p153, %p154
    %p157 = scmp.ne.s32.totalorder %s142, %s156
    %p158 = scmp.eq.s32.totalorder %s22, 0
    %p159 = por %p157, %p158
    %s160 = ssub.s32 %s16, %s23
    %p161 = scmp.eq.s32.totalorder %s160, 0
    %s163 = sadd.s32 %s162, 1
    %s164 = scalar_select %p161, %s162, %s163
    %p167 = pneg %p161
    %p168 = scmp.eq.s32.totalorder %s16, 1
    %p169 = por %p167, %p168
    %p170 = scmp.ne.s32.totalorder %s162, %s165
    %p171 = scmp.eq.s32.totalorder %s16, 0
    %p172 = por %p170, %p171
    %p173 = scmp.ne.s32.totalorder %s162, %s165
    %p174 = scmp.eq.s32.totalorder %s21, 1
    %p175 = por %p173, %p174
    %p176 = scmp.ne.s32.totalorder %s165, %s166
    %p177 = scmp.eq.s32.totalorder %s21, 0
    %p178 = por %p176, %p177
    %p179 = scmp.ne.s32.totalorder %s165, %s166
    %p180 = scmp.eq.s32.totalorder %s22, 1
    %p181 = por %p179, %p180
    %p183 = scmp.ne.s32.totalorder %s166, %s182
    %p184 = scmp.eq.s32.totalorder %s22, 0
    %p185 = por %p183, %p184
    %s186 = ssub.s32 %s16, %s23
    %p187 = scmp.eq.s32.totalorder %s186, 0
    %s189 = sadd.s32 %s188, 1
    %s190 = scalar_select %p187, %s188, %s189
    %p193 = pneg %p187
    %p194 = scmp.eq.s32.totalorder %s16, 1
    %p195 = por %p193, %p194
    %p196 = scmp.ne.s32.totalorder %s188, %s191
    %p197 = scmp.eq.s32.totalorder %s16, 0
    %p198 = por %p196, %p197
    %p199 = scmp.ne.s32.totalorder %s188, %s191
    %p200 = scmp.eq.s32.totalorder %s21, 1
    %p201 = por %p199, %p200
    %p202 = scmp.ne.s32.totalorder %s191, %s192
    %p203 = scmp.eq.s32.totalorder %s21, 0
    %p204 = por %p202, %p203
    %p205 = scmp.ne.s32.totalorder %s191, %s192
    %p206 = scmp.eq.s32.totalorder %s22, 1
    %p207 = por %p205, %p206
    %p209 = scmp.ne.s32.totalorder %s192, %s208
    %p210 = scmp.eq.s32.totalorder %s22, 0
    %p211 = por %p209, %p210
    %s212 = ssub.s32 %s16, %s23
    %p213 = scmp.eq.s32.totalorder %s212, 0
    %s215 = sadd.s32 %s214, 1
    %s216 = scalar_select %p213, %s214, %s215
    %p219 = pneg %p213
    %p220 = scmp.eq.s32.totalorder %s16, 1
    %p221 = por %p219, %p220
    %p222 = scmp.ne.s32.totalorder %s214, %s217
    %p223 = scmp.eq.s32.totalorder %s16, 0
    %p224 = por %p222, %p223
    %p225 = scmp.ne.s32.totalorder %s214, %s217
    %p226 = scmp.eq.s32.totalorder %s21, 1
    %p227 = por %p225, %p226
    %p228 = scmp.ne.s32.totalorder %s217, %s218
    %p229 = scmp.eq.s32.totalorder %s21, 0
    %p230 = por %p228, %p229
    %p231 = scmp.ne.s32.totalorder %s217, %s218
    %p232 = scmp.eq.s32.totalorder %s22, 1
    %p233 = por %p231, %p232
    %p235 = scmp.ne.s32.totalorder %s218, %s234
    %p236 = scmp.eq.s32.totalorder %s22, 0
    %p237 = por %p235, %p236
    %s238 = ssub.s32 %s16, %s23
    %p239 = scmp.eq.s32.totalorder %s238, 0
    %s241 = sadd.s32 %s240, 1
    %s242 = scalar_select %p239, %s240, %s241
    %p245 = pneg %p239
    %p246 = scmp.eq.s32.totalorder %s16, 1
    %p247 = por %p245, %p246
    %p248 = scmp.ne.s32.totalorder %s240, %s243
    %p249 = scmp.eq.s32.totalorder %s16, 0
    %p250 = por %p248, %p249
    %p251 = scmp.ne.s32.totalorder %s240, %s243
    %p252 = scmp.eq.s32.totalorder %s21, 1
    %p253 = por %p251, %p252
    %p254 = scmp.ne.s32.totalorder %s243, %s244
    %p255 = scmp.eq.s32.totalorder %s21, 0
    %p256 = por %p254, %p255
    %p257 = scmp.ne.s32.totalorder %s243, %s244
    %p258 = scmp.eq.s32.totalorder %s22, 1
    %p259 = por %p257, %p258
    %p261 = scmp.ne.s32.totalorder %s244, %s260
    %p262 = scmp.eq.s32.totalorder %s22, 0
    %p263 = por %p261, %p262
    %p264 = scmp.le.s32.totalorder 1, %s16
    %p265 = scmp.lt.s32.totalorder %s16, 3
    %p266 = pnand %p264, %p265
    %p267 = pneg %p266
    // Predicated region
    $region9: #{bottleneck_forward.6} parent=5 // pred_check
      _
    $region10: #{bottleneck_forward.6} parent=5 // pred_check_branch
      %269 = sbr.rel (%p266) target = $region12
    $region11: #{bottleneck_forward.6} parent=5 // pred_region
      %s270 = ssub.s32 %s16, 1
      // Predicated region
      $region13: #{bottleneck_forward.6} parent=11 // pred_check
        %p271 = pneg %p63
      $region14: #{bottleneck_forward.6} parent=11 // pred_check_branch
        %273 = sbr.rel (%p271) target = $region16
      $region15: #{bottleneck_forward.6} parent=11 // pred_region
        _
      $region16: #{bottleneck_forward.6} parent=11 // pred_fallthru
        _
      // Predicated region
      $region17: #{bottleneck_forward.6} parent=11 // pred_check
        %p274 = pneg %p84
      $region18: #{bottleneck_forward.6} parent=11 // pred_check_branch
        %276 = sbr.rel (%p274) target = $region20
      $region19: #{bottleneck_forward.6} parent=11 // pred_region
        _
      $region20: #{bottleneck_forward.6} parent=11 // pred_fallthru
        _
      // Predicated region
      $region21: #{bottleneck_forward.6} parent=11 // pred_check
        %p277 = pneg %p105
      $region22: #{bottleneck_forward.6} parent=11 // pred_check_branch
        %279 = sbr.rel (%p277) target = $region24
      $region23: #{bottleneck_forward.6} parent=11 // pred_region
        _
      $region24: #{bottleneck_forward.6} parent=11 // pred_fallthru
        _
      // Predicated region
      $region25: #{bottleneck_forward.6} parent=11 // pred_check
        %p280 = pneg %p152
      $region26: #{bottleneck_forward.6} parent=11 // pred_check_branch
        %282 = sbr.rel (%p280) target = $region28
      $region27: #{bottleneck_forward.6} parent=11 // pred_region
        _
      $region28: #{bottleneck_forward.6} parent=11 // pred_fallthru
        _
    $region12: #{bottleneck_forward.6} parent=5 // pred_fallthru
      _
    %p283 = scmp.lt.s32.totalorder %s16, 2
    // Predicated region
    $region29: #{bottleneck_forward.6} parent=5 // pred_check
      %p284 = pneg %p283
    $region30: #{bottleneck_forward.6} parent=5 // pred_check_branch
      %286 = sbr.rel (%p284) target = $region32
    $region31: #{bottleneck_forward.6} parent=5 // pred_region
      // Predicated region
      $region33: #{bottleneck_forward.6} parent=31 // pred_check
        %p287 = pneg %p36
      $region34: #{bottleneck_forward.6} parent=31 // pred_check_branch
        %289 = sbr.rel (%p287) target = $region36
      $region35: #{bottleneck_forward.6} parent=31 // pred_region
        %s290 = smul.u32 8, %s16
        %p291 = scmp.lt.s32.totalorder %s290, 15
        %s292 = scalar_select %p291, %s290, 15
        %s293 = smul.addr %s292, 4
        %s294 = scalar_lea.vmem %s0, %s293
        %s295 = smul.u32 8, %s16
      $region36: #{bottleneck_forward.6} parent=31 // pred_fallthru
        _
      // Predicated region
      $region37: #{bottleneck_forward.6} parent=31 // pred_check
        %p296 = pneg %p125
      $region38: #{bottleneck_forward.6} parent=31 // pred_check_branch
        %298 = sbr.rel (%p296) target = $region40
      $region39: #{bottleneck_forward.6} parent=31 // pred_region
        %s299 = smul.u32 8, %s16
        %p300 = scmp.lt.s32.totalorder %s299, 15
        %s301 = scalar_select %p300, %s299, 15
        %s302 = smul.addr %s301, 4
        %s303 = scalar_lea.vmem %s4, %s302
        %s304 = smul.u32 8, %s16
      $region40: #{bottleneck_forward.6} parent=31 // pred_fallthru
        _
    $region32: #{bottleneck_forward.6} parent=5 // pred_fallthru
      _
    %p305 = scmp.le.s32.totalorder 1, %s16
    %p306 = scmp.lt.s32.totalorder %s16, 3
    %p307 = pnand %p305, %p306
    %p308 = pneg %p307
    // Predicated region
    $region41: #{bottleneck_forward.6} parent=5 // pred_check
      _
    $region42: #{bottleneck_forward.6} parent=5 // pred_check_branch
      %310 = sbr.rel (%p307) target = $region44
    $region43: #{bottleneck_forward.6} parent=5 // pred_region
      %s311 = ssub.s32 %s16, 1
      %s312 = smul.u32 8, %s21
      %p313 = scmp.lt.s32.totalorder %s312, 15
      %s314 = scalar_select %p313, %s312, 15
      %s315 = smul.addr %s314, 4
      %s316 = scalar_lea.vmem %s0, %s315
      %p317 = pneg %p42
      %p318 = pneg %p39
      %p319 = pneg %p63
      %p320 = pneg %p60
      %p321 = pneg %p84
      %p322 = pneg %p81
      %p323 = pneg %p105
      %p324 = pneg %p102
      %s325 = smul.u32 8, %s21
      %p326 = scmp.lt.s32.totalorder %s325, 15
      %s327 = scalar_select %p326, %s325, 15
      %s328 = smul.addr %s327, 4
      %s329 = scalar_lea.vmem %s4, %s328
      %p330 = pneg %p131
      %p331 = pneg %p128
      %p332 = pneg %p152
      %p333 = pneg %p149
      %p334 = pneg %p178
      %p335 = pneg %p175
      %s336 = smul.u32 8, %s21
      %p337 = scmp.lt.s32.totalorder %s336, 15
      %s338 = scalar_select %p337, %s336, 15
      %s339 = smul.addr %s338, 4
      %s340 = scalar_lea.vmem %s6, %s339
      %p341 = pneg %p204
      %p342 = pneg %p201
      %s343 = smul.u32 8, %s21
      %p344 = scmp.lt.s32.totalorder %s343, 15
      %s345 = scalar_select %p344, %s343, 15
      %s346 = smul.addr %s345, 4
      %s347 = scalar_lea.vmem %s7, %s346
      %p348 = pneg %p230
      %p349 = pneg %p227
      %p350 = scmp.lt.s32.totalorder %s21, 1
      %s351 = scalar_select %p350, %s21, 1
      %s352 = smul.addr %s351, 2
      %s353 = scalar_lea.vmem %s8, %s352
      %p354 = pneg %p256
      %p355 = pneg %p253
      %p356 = scmp.lt.s32.totalorder %s21, 1
      %s357 = scalar_select %p356, %s21, 1
      %s358 = smul.addr %s357, 2
      %s359 = scalar_lea.vmem %s9, %s358
      %s360 = smul.u32 8, %s21
      %p361 = scmp.lt.s32.totalorder %s360, 15
      %s362 = scalar_select %p361, %s360, 15
      %s363 = smul.addr %s362, 4
      %s364 = scalar_lea.vmem %s0, %s363
      %s365 = smul.u32 8, %s21
      %s366 = smul.u32 8, %s21
      %p367 = scmp.lt.s32.totalorder %s366, 15
      %s368 = scalar_select %p367, %s366, 15
      %s369 = smul.addr %s368, 4
      %s370 = scalar_lea.vmem %s4, %s369
      %s371 = smul.u32 8, %s21
      %s372 = smul.u32 8, %s21
      %p373 = scmp.lt.s32.totalorder %s372, 15
      %s374 = scalar_select %p373, %s372, 15
      %s375 = smul.addr %s374, 4
      %s376 = scalar_lea.vmem %s6, %s375
      %s377 = smul.u32 8, %s21
      %s378 = smul.u32 8, %s21
      %p379 = scmp.lt.s32.totalorder %s378, 15
      %s380 = scalar_select %p379, %s378, 15
      %s381 = smul.addr %s380, 4
      %s382 = scalar_lea.vmem %s7, %s381
      %s383 = smul.u32 8, %s21
      %p384 = scmp.lt.s32.totalorder %s21, 1
      %s385 = scalar_select %p384, %s21, 1
      %s386 = smul.addr %s385, 2
      %s387 = scalar_lea.vmem %s8, %s386
      %p388 = scmp.lt.s32.totalorder %s21, 1
      %s389 = scalar_select %p388, %s21, 1
      %s390 = smul.addr %s389, 2
      %s391 = scalar_lea.vmem %s9, %s390
      %v393 = vld [vmem:[%s364] sm:$0xf]
      %v394 = vld [vmem:[%s364 + $0x4] sm:$0xf]
      %v395 = vld [vmem:[%s364 + $0x8] sm:$0xf]
      %v396 = vld [vmem:[%s364 + $0xc] sm:$0xf]
      %v397 = vld [vmem:[%s364 + $0x10] sm:$0xf]
      %v398 = vld [vmem:[%s364 + $0x14] sm:$0xf]
      %v399 = vld [vmem:[%s364 + $0x18] sm:$0xf]
      %v400 = vld [vmem:[%s364 + $0x1c] sm:$0xf]
      %v401 = vunpack.c.l.bf16 %v393
      %v402 = vunpack.c.l.bf16 %v394
      %v403 = vunpack.c.l.bf16 %v395
      %v404 = vunpack.c.l.bf16 %v396
      %v405 = vunpack.c.l.bf16 %v397
      %v406 = vunpack.c.l.bf16 %v398
      %v407 = vunpack.c.l.bf16 %v399
      %v408 = vunpack.c.l.bf16 %v400
      %v409 = vld [vmem:[%s1] sm:$0x1]
      %v411 = vlaneseq
      %v412 = vshrl.u32 %v411, 7
      %v413 = vsub.s32 0, %v412
      %v414 = vrot.slane %v409, %v413
      %v416 = vmul.f32 %v401, %v414
      %v417 = vmul.f32 %v402, %v414
      %v418 = vmul.f32 %v403, %v414
      %v419 = vmul.f32 %v404, %v414
      %v420 = vmul.f32 %v405, %v414
      %v421 = vmul.f32 %v406, %v414
      %v422 = vmul.f32 %v407, %v414
      %v423 = vmul.f32 %v408, %v414
      %v424 = vld [vmem:[%s2] sm:$0x1]
      %v426 = vlaneseq
      %v427 = vshrl.u32 %v426, 7
      %v428 = vsub.s32 0, %v427
      %v429 = vrot.slane %v424, %v428
      %v431 = vadd.f32 %v416, %v429
      %v432 = vadd.f32 %v417, %v429
      %v433 = vadd.f32 %v418, %v429
      %v434 = vadd.f32 %v419, %v429
      %v435 = vadd.f32 %v420, %v429
      %v436 = vadd.f32 %v421, %v429
      %v437 = vadd.f32 %v422, %v429
      %v438 = vadd.f32 %v423, %v429
      %v439 = vmax.f32 %v431, 0.0
      %v440 = vmax.f32 %v432, 0.0
      %v441 = vmax.f32 %v433, 0.0
      %v442 = vmax.f32 %v434, 0.0
      %v443 = vmax.f32 %v435, 0.0
      %v444 = vmax.f32 %v436, 0.0
      %v445 = vmax.f32 %v437, 0.0
      %v446 = vmax.f32 %v438, 0.0
      %v447 = vpack.c.bf16 %v440, %v439
      %v448 = vpack.c.bf16 %v442, %v441
      %v449 = vpack.c.bf16 %v444, %v443
      %v450 = vpack.c.bf16 %v446, %v445
      %v451 = vld [vmem:[%s3] sm:$0x3]
      %vm452 = vcmask 31744
      %v454 = vsel %vm452, %v447, 0
      %v457 = vsel %vm452, %v448, 0
      %v460 = vsel %vm452, %v449, 0
      %v463 = vsel %vm452, %v450, 0
      %vm465 = vcmask 1041408
      %v467 = vsel %vm465, %v451, 0
      %469 = vmatprep.subr.bf16.mxu0 0
      %470 = vmatpush1.bf16.msra.mxu0 0
      %471 = vmatprep.subr.bf16.mxu0 0
      %472 = vmatpush1.bf16.msra.mxu0 0
      %473 = vmatprep.subr.bf16.mxu0 0
      %474 = vmatpush1.bf16.msra.mxu0 0
      %475 = vmatprep.subr.bf16.mxu0 0
      %476 = vmatpush1.bf16.msra.mxu0 0
      %477 = vmatprep.subr.bf16.mxu0 0
      %478 = vmatpush1.bf16.msra.mxu0 0
      %479 = vmatprep.subr.bf16.mxu0 0
      %480 = vmatpush1.bf16.msra.mxu0 0
      %481 = vmatprep.subr.bf16.mxu0 0
      %482 = vmatpush1.bf16.msra.mxu0 0
      %483 = vmatprep.subr.bf16.mxu0 0
      %484 = vmatpush1.bf16.msra.mxu0 %v467
      %485 = vmatprep.subr.bf16.mxu0 0
      %486 = vmatpush2.bf16.msra.mxu0 0
      %487 = vmatprep.subr.bf16.mxu0 0
      %488 = vmatpush2.bf16.msra.mxu0 0
      %489 = vmatprep.subr.bf16.mxu0 0
      %490 = vmatpush2.bf16.msra.mxu0 0
      %491 = vmatprep.subr.bf16.mxu0 0
      %492 = vmatpush2.bf16.msra.mxu0 0
      %493 = vmatprep.subr.bf16.mxu0 0
      %494 = vmatpush2.bf16.msra.mxu0 0
      %495 = vmatprep.subr.bf16.mxu0 0
      %496 = vmatpush2.bf16.msra.mxu0 0
      %497 = vmatprep.subr.bf16.mxu0 0
      %498 = vmatpush2.bf16.msra.mxu0 0
      %499 = vmatprep.subr.bf16.mxu0 0
      %500 = vmatpush2.bf16.msra.mxu0 0
      %501 = vmatprep.mubr.bf16.mxu0 0
      %502 = vmatmul.mubr.bf16.gmra.mxu0 %v454
      %v503 = vpop.f32.mrf.mxu0
      %v504 = vadd.f32 0.0, %v503
      %v505 = vpop.f32.mrf.mxu0
      %v506 = vpop.f32.mrf.mxu0
      %v507 = vadd.f32 0.0, %v506
      %v508 = vpop.f32.mrf.mxu0
      %509 = vmatprep.mubr.bf16.mxu0 0
      %510 = vmatmul.mubr.bf16.gmra.mxu0 %v457
      %v511 = vpop.f32.mrf.mxu0
      %v512 = vadd.f32 0.0, %v511
      %v513 = vpop.f32.mrf.mxu0
      %v514 = vpop.f32.mrf.mxu0
      %v515 = vadd.f32 0.0, %v514
      %v516 = vpop.f32.mrf.mxu0
      %517 = vmatprep.mubr.bf16.mxu0 0
      %518 = vmatmul.mubr.bf16.gmra.mxu0 %v460
      %v519 = vpop.f32.mrf.mxu0
      %v520 = vadd.f32 0.0, %v519
      %v521 = vpop.f32.mrf.mxu0
      %v522 = vpop.f32.mrf.mxu0
      %v523 = vadd.f32 0.0, %v522
      %v524 = vpop.f32.mrf.mxu0
      %525 = vmatprep.mubr.bf16.mxu0 0
      %526 = vmatmul.mubr.bf16.gmra.mxu0 %v463
      %v527 = vpop.f32.mrf.mxu0
      %v528 = vadd.f32 0.0, %v527
      %v529 = vpop.f32.mrf.mxu0
      %v530 = vpop.f32.mrf.mxu0
      %v531 = vadd.f32 0.0, %v530
      %v532 = vpop.f32.mrf.mxu0
      %533 = vdwg.mxu0
      %v534 = vld [vmem:[%s370] sm:$0xf]
      %v535 = vld [vmem:[%s370 + $0x4] sm:$0xf]
      %v536 = vld [vmem:[%s370 + $0x8] sm:$0xf]
      %v537 = vld [vmem:[%s370 + $0xc] sm:$0xf]
      %v538 = vld [vmem:[%s370 + $0x10] sm:$0xf]
      %v539 = vld [vmem:[%s370 + $0x14] sm:$0xf]
      %v540 = vld [vmem:[%s370 + $0x18] sm:$0xf]
      %v541 = vld [vmem:[%s370 + $0x1c] sm:$0xf]
      %v542 = vld [vmem:[%s5] sm:$0x3]
      %v551 = vunpack.c.l.b16 %v534
      %v552 = vunpack.c.l.b16 %v535
      %v553 = vunpack.c.l.b16 %v536
      %v554 = vunpack.c.l.b16 %v537
      %v555 = vunpack.c.l.b16 %v538
      %v556 = vunpack.c.l.b16 %v539
      %v557 = vunpack.c.l.b16 %v540
      %v558 = vunpack.c.l.b16 %v541
      %v559 = vpack.c.b16 %v552, %v551
      %v560 = vpack.c.b16 %v554, %v553
      %v561 = vpack.c.b16 %v556, %v555
      %v562 = vpack.c.b16 %v558, %v557
      %v564 = vsel %vm452, %v559, 0
      %v567 = vsel %vm452, %v560, 0
      %v570 = vsel %vm452, %v561, 0
      %v573 = vsel %vm452, %v562, 0
      %v576 = vsel %vm465, %v542, 0
      %578 = vmatprep.subr.bf16.mxu0 0
      %579 = vmatpush1.bf16.msra.mxu0 0
      %580 = vmatprep.subr.bf16.mxu0 0
      %581 = vmatpush1.bf16.msra.mxu0 0
      %582 = vmatprep.subr.bf16.mxu0 0
      %583 = vmatpush1.bf16.msra.mxu0 0
      %584 = vmatprep.subr.bf16.mxu0 0
      %585 = vmatpush1.bf16.msra.mxu0 0
      %586 = vmatprep.subr.bf16.mxu0 0
      %587 = vmatpush1.bf16.msra.mxu0 0
      %588 = vmatprep.subr.bf16.mxu0 0
      %589 = vmatpush1.bf16.msra.mxu0 0
      %590 = vmatprep.subr.bf16.mxu0 0
      %591 = vmatpush1.bf16.msra.mxu0 0
      %592 = vmatprep.subr.bf16.mxu0 0
      %593 = vmatpush1.bf16.msra.mxu0 %v576
      %594 = vmatprep.subr.bf16.mxu0 0
      %595 = vmatpush2.bf16.msra.mxu0 0
      %596 = vmatprep.subr.bf16.mxu0 0
      %597 = vmatpush2.bf16.msra.mxu0 0
      %598 = vmatprep.subr.bf16.mxu0 0
      %599 = vmatpush2.bf16.msra.mxu0 0
      %600 = vmatprep.subr.bf16.mxu0 0
      %601 = vmatpush2.bf16.msra.mxu0 0
      %602 = vmatprep.subr.bf16.mxu0 0
      %603 = vmatpush2.bf16.msra.mxu0 0
      %604 = vmatprep.subr.bf16.mxu0 0
      %605 = vmatpush2.bf16.msra.mxu0 0
      %606 = vmatprep.subr.bf16.mxu0 0
      %607 = vmatpush2.bf16.msra.mxu0 0
      %608 = vmatprep.subr.bf16.mxu0 0
      %609 = vmatpush2.bf16.msra.mxu0 0
      %610 = vmatprep.mubr.bf16.mxu0 0
      %611 = vmatmul.mubr.bf16.gmra.mxu0 %v564
      %v612 = vpop.f32.mrf.mxu0
      %v613 = vadd.f32 0.0, %v612
      %v614 = vpop.f32.mrf.mxu0
      %v615 = vpop.f32.mrf.mxu0
      %v616 = vadd.f32 0.0, %v615
      %v617 = vpop.f32.mrf.mxu0
      %618 = vmatprep.mubr.bf16.mxu0 0
      %619 = vmatmul.mubr.bf16.gmra.mxu0 %v567
      %v620 = vpop.f32.mrf.mxu0
      %v621 = vadd.f32 0.0, %v620
      %v622 = vpop.f32.mrf.mxu0
      %v623 = vpop.f32.mrf.mxu0
      %v624 = vadd.f32 0.0, %v623
      %v625 = vpop.f32.mrf.mxu0
      %626 = vmatprep.mubr.bf16.mxu0 0
      %627 = vmatmul.mubr.bf16.gmra.mxu0 %v570
      %v628 = vpop.f32.mrf.mxu0
      %v629 = vadd.f32 0.0, %v628
      %v630 = vpop.f32.mrf.mxu0
      %v631 = vpop.f32.mrf.mxu0
      %v632 = vadd.f32 0.0, %v631
      %v633 = vpop.f32.mrf.mxu0
      %634 = vmatprep.mubr.bf16.mxu0 0
      %635 = vmatmul.mubr.bf16.gmra.mxu0 %v573
      %v636 = vpop.f32.mrf.mxu0
      %v637 = vadd.f32 0.0, %v636
      %v638 = vpop.f32.mrf.mxu0
      %v639 = vpop.f32.mrf.mxu0
      %v640 = vadd.f32 0.0, %v639
      %v641 = vpop.f32.mrf.mxu0
      %642 = vdwg.mxu0
      %v643 = vpack.c.bf16 %v507, %v504
      %v644 = vpack.c.bf16 %v515, %v512
      %v645 = vpack.c.bf16 %v523, %v520
      %v646 = vpack.c.bf16 %v531, %v528
      %v651 = vunpack.c.l.b16 %v643
      %v652 = vunpack.c.h.b16 %v643
      %v653 = vunpack.c.l.b16 %v644
      %v654 = vunpack.c.h.b16 %v644
      %v655 = vunpack.c.l.b16 %v645
      %v656 = vunpack.c.h.b16 %v645
      %v657 = vunpack.c.l.b16 %v646
      %v658 = vunpack.c.h.b16 %v646
      %v659 = vpack.c.b16 %v651, %v651
      %v660 = vpack.c.b16 %v652, %v652
      %v661 = vpack.c.b16 %v653, %v653
      %v662 = vpack.c.b16 %v654, %v654
      %v663 = vpack.c.b16 %v655, %v655
      %v664 = vpack.c.b16 %v656, %v656
      %v665 = vpack.c.b16 %v657, %v657
      %v666 = vpack.c.b16 %v658, %v658
      %vm675 = vcmask 125952
      %676 = vst.msk [vmem:[%s376] sm:$0xf] %vm675, %v659
      %677 = vst.msk [vmem:[%s376 + $0x4] sm:$0xf] %vm675, %v660
      %678 = vst.msk [vmem:[%s376 + $0x8] sm:$0xf] %vm675, %v661
      %679 = vst.msk [vmem:[%s376 + $0xc] sm:$0xf] %vm675, %v662
      %680 = vst.msk [vmem:[%s376 + $0x10] sm:$0xf] %vm675, %v663
      %681 = vst.msk [vmem:[%s376 + $0x14] sm:$0xf] %vm675, %v664
      %682 = vst.msk [vmem:[%s376 + $0x18] sm:$0xf] %vm675, %v665
      %683 = vst.msk [vmem:[%s376 + $0x1c] sm:$0xf] %vm675, %v666
      %v684 = vpack.c.bf16 %v616, %v613
      %v685 = vpack.c.bf16 %v624, %v621
      %v686 = vpack.c.bf16 %v632, %v629
      %v687 = vpack.c.bf16 %v640, %v637
      %v692 = vunpack.c.l.b16 %v684
      %v693 = vunpack.c.h.b16 %v684
      %v694 = vunpack.c.l.b16 %v685
      %v695 = vunpack.c.h.b16 %v685
      %v696 = vunpack.c.l.b16 %v686
      %v697 = vunpack.c.h.b16 %v686
      %v698 = vunpack.c.l.b16 %v687
      %v699 = vunpack.c.h.b16 %v687
      %v700 = vpack.c.b16 %v692, %v692
      %v701 = vpack.c.b16 %v693, %v693
      %v702 = vpack.c.b16 %v694, %v694
      %v703 = vpack.c.b16 %v695, %v695
      %v704 = vpack.c.b16 %v696, %v696
      %v705 = vpack.c.b16 %v697, %v697
      %v706 = vpack.c.b16 %v698, %v698
      %v707 = vpack.c.b16 %v699, %v699
      %716 = vst.msk [vmem:[%s382] sm:$0xf] %vm675, %v700
      %717 = vst.msk [vmem:[%s382 + $0x4] sm:$0xf] %vm675, %v701
      %718 = vst.msk [vmem:[%s382 + $0x8] sm:$0xf] %vm675, %v702
      %719 = vst.msk [vmem:[%s382 + $0xc] sm:$0xf] %vm675, %v703
      %720 = vst.msk [vmem:[%s382 + $0x10] sm:$0xf] %vm675, %v704
      %721 = vst.msk [vmem:[%s382 + $0x14] sm:$0xf] %vm675, %v705
      %722 = vst.msk [vmem:[%s382 + $0x18] sm:$0xf] %vm675, %v706
      %723 = vst.msk [vmem:[%s382 + $0x1c] sm:$0xf] %vm675, %v707
      %vm724 = vcmask 130048
      %v725 = vsel %vm724, %v504, 0.0
      %v726 = vsel %vm724, %v507, 0.0
      %v727 = vadd.f32 %v725, %v726
      %v728 = vsel %vm724, %v512, 0.0
      %v729 = vadd.f32 %v727, %v728
      %v730 = vsel %vm724, %v515, 0.0
      %v731 = vadd.f32 %v729, %v730
      %v732 = vsel %vm724, %v520, 0.0
      %v733 = vadd.f32 %v731, %v732
      %v734 = vsel %vm724, %v523, 0.0
      %v735 = vadd.f32 %v733, %v734
      %v736 = vsel %vm724, %v528, 0.0
      %v737 = vadd.f32 %v735, %v736
      %v738 = vsel %vm724, %v531, 0.0
      %v739 = vadd.f32 %v737, %v738
      %v740 = vrot.slane %v739, 4
      %v741 = vadd.f32 %v739, %v740
      %v742 = vrot.slane %v741, 2
      %v743 = vadd.f32 %v741, %v742
      %v744 = vrot.slane %v743, 1
      %v745 = vadd.f32 %v743, %v744
      %v746 = vmul.f32 %v504, %v504
      %v747 = vmul.f32 %v507, %v507
      %v748 = vmul.f32 %v512, %v512
      %v749 = vmul.f32 %v515, %v515
      %v750 = vmul.f32 %v520, %v520
      %v751 = vmul.f32 %v523, %v523
      %v752 = vmul.f32 %v528, %v528
      %v753 = vmul.f32 %v531, %v531
      %v754 = vsel %vm724, %v746, 0.0
      %v755 = vsel %vm724, %v747, 0.0
      %v756 = vadd.f32 %v754, %v755
      %v757 = vsel %vm724, %v748, 0.0
      %v758 = vadd.f32 %v756, %v757
      %v759 = vsel %vm724, %v749, 0.0
      %v760 = vadd.f32 %v758, %v759
      %v761 = vsel %vm724, %v750, 0.0
      %v762 = vadd.f32 %v760, %v761
      %v763 = vsel %vm724, %v751, 0.0
      %v764 = vadd.f32 %v762, %v763
      %v765 = vsel %vm724, %v752, 0.0
      %v766 = vadd.f32 %v764, %v765
      %v767 = vsel %vm724, %v753, 0.0
      %v768 = vadd.f32 %v766, %v767
      %v769 = vrot.slane %v768, 4
      %v770 = vadd.f32 %v768, %v769
      %v771 = vrot.slane %v770, 2
      %v772 = vadd.f32 %v770, %v771
      %v773 = vrot.slane %v772, 1
      %v774 = vadd.f32 %v772, %v773
      %vm775 = vcmask 1040384
      %v776 = vsel %vm775, %v745, %v774
      %vm777 = vcmask 123904
      %778 = vst.msk [vmem:[%s387] sm:$0x3] %vm777, %v776
      %v779 = vsel %vm724, %v613, 0.0
      %v780 = vsel %vm724, %v616, 0.0
      %v781 = vadd.f32 %v779, %v780
      %v782 = vsel %vm724, %v621, 0.0
      %v783 = vadd.f32 %v781, %v782
      %v784 = vsel %vm724, %v624, 0.0
      %v785 = vadd.f32 %v783, %v784
      %v786 = vsel %vm724, %v629, 0.0
      %v787 = vadd.f32 %v785, %v786
      %v788 = vsel %vm724, %v632, 0.0
      %v789 = vadd.f32 %v787, %v788
      %v790 = vsel %vm724, %v637, 0.0
      %v791 = vadd.f32 %v789, %v790
      %v792 = vsel %vm724, %v640, 0.0
      %v793 = vadd.f32 %v791, %v792
      %v794 = vrot.slane %v793, 4
      %v795 = vadd.f32 %v793, %v794
      %v796 = vrot.slane %v795, 2
      %v797 = vadd.f32 %v795, %v796
      %v798 = vrot.slane %v797, 1
      %v799 = vadd.f32 %v797, %v798
      %v800 = vmul.f32 %v613, %v613
      %v801 = vmul.f32 %v616, %v616
      %v802 = vmul.f32 %v621, %v621
      %v803 = vmul.f32 %v624, %v624
      %v804 = vmul.f32 %v629, %v629
      %v805 = vmul.f32 %v632, %v632
      %v806 = vmul.f32 %v637, %v637
      %v807 = vmul.f32 %v640, %v640
      %v808 = vsel %vm724, %v800, 0.0
      %v809 = vsel %vm724, %v801, 0.0
      %v810 = vadd.f32 %v808, %v809
      %v811 = vsel %vm724, %v802, 0.0
      %v812 = vadd.f32 %v810, %v811
      %v813 = vsel %vm724, %v803, 0.0
      %v814 = vadd.f32 %v812, %v813
      %v815 = vsel %vm724, %v804, 0.0
      %v816 = vadd.f32 %v814, %v815
      %v817 = vsel %vm724, %v805, 0.0
      %v818 = vadd.f32 %v816, %v817
      %v819 = vsel %vm724, %v806, 0.0
      %v820 = vadd.f32 %v818, %v819
      %v821 = vsel %vm724, %v807, 0.0
      %v822 = vadd.f32 %v820, %v821
      %v823 = vrot.slane %v822, 4
      %v824 = vadd.f32 %v822, %v823
      %v825 = vrot.slane %v824, 2
      %v826 = vadd.f32 %v824, %v825
      %v827 = vrot.slane %v826, 1
      %v828 = vadd.f32 %v826, %v827
      %v829 = vsel %vm775, %v799, %v828
      %830 = vst.msk [vmem:[%s391] sm:$0x3] %vm777, %v829
      %s831 = smul.u32 8, %s21
      %p832 = scmp.lt.s32.totalorder %s831, 15
      %s833 = scalar_select %p832, %s831, 15
      %s834 = smul.addr %s833, 4
      %s835 = scalar_lea.vmem %s6, %s834
      %s836 = smul.u32 8, %s21
      %p837 = scmp.lt.s32.totalorder %s836, 15
      %s838 = scalar_select %p837, %s836, 15
      %s839 = smul.addr %s838, 4
      %s840 = scalar_lea.vmem %s7, %s839
      %p841 = scmp.lt.s32.totalorder %s21, 1
      %s842 = scalar_select %p841, %s21, 1
      %s843 = smul.addr %s842, 2
      %s844 = scalar_lea.vmem %s8, %s843
      %p845 = scmp.lt.s32.totalorder %s21, 1
      %s846 = scalar_select %p845, %s21, 1
      %s847 = smul.addr %s846, 2
      %s848 = scalar_lea.vmem %s9, %s847
      // Predicated region
      $region45: #{bottleneck_forward.6} parent=43 // pred_check
        %p849 = pneg %p175
      $region46: #{bottleneck_forward.6} parent=43 // pred_check_branch
        %851 = sbr.rel (%p849) target = $region48
      $region47: #{bottleneck_forward.6} parent=43 // pred_region
        %s852 = smul.u32 8, %s21
      $region48: #{bottleneck_forward.6} parent=43 // pred_fallthru
        _
      // Predicated region
      $region49: #{bottleneck_forward.6} parent=43 // pred_check
        %p853 = pneg %p201
      $region50: #{bottleneck_forward.6} parent=43 // pred_check_branch
        %855 = sbr.rel (%p853) target = $region52
      $region51: #{bottleneck_forward.6} parent=43 // pred_region
        %s856 = smul.u32 8, %s21
      $region52: #{bottleneck_forward.6} parent=43 // pred_fallthru
        _
      // Predicated region
      $region53: #{bottleneck_forward.6} parent=43 // pred_check
        %p857 = pneg %p227
      $region54: #{bottleneck_forward.6} parent=43 // pred_check_branch
        %859 = sbr.rel (%p857) target = $region56
      $region55: #{bottleneck_forward.6} parent=43 // pred_region
        _
      $region56: #{bottleneck_forward.6} parent=43 // pred_fallthru
        _
      // Predicated region
      $region57: #{bottleneck_forward.6} parent=43 // pred_check
        %p860 = pneg %p253
      $region58: #{bottleneck_forward.6} parent=43 // pred_check_branch
        %862 = sbr.rel (%p860) target = $region60
      $region59: #{bottleneck_forward.6} parent=43 // pred_region
        _
      $region60: #{bottleneck_forward.6} parent=43 // pred_fallthru
        _
    $region44: #{bottleneck_forward.6} parent=5 // pred_fallthru
      _
    %p863 = scmp.le.s32.totalorder 2, %s16
    // Predicated region
    $region61: #{bottleneck_forward.6} parent=5 // pred_check
      %p864 = pneg %p863
    $region62: #{bottleneck_forward.6} parent=5 // pred_check_branch
      %866 = sbr.rel (%p864) target = $region64
    $region63: #{bottleneck_forward.6} parent=5 // pred_region
      %s867 = ssub.s32 %s16, 2
      // Predicated region
      $region65: #{bottleneck_forward.6} parent=63 // pred_check
        %p868 = pneg %p181
      $region66: #{bottleneck_forward.6} parent=63 // pred_check_branch
        %870 = sbr.rel (%p868) target = $region68
      $region67: #{bottleneck_forward.6} parent=63 // pred_region
        %s871 = smul.u32 8, %s22
        %p872 = scmp.lt.s32.totalorder %s871, 15
        %s873 = scalar_select %p872, %s871, 15
        %s874 = smul.addr %s873, 4
        %s875 = scalar_lea.vmem %s6, %s874
      $region68: #{bottleneck_forward.6} parent=63 // pred_fallthru
        _
      // Predicated region
      $region69: #{bottleneck_forward.6} parent=63 // pred_check
        %p876 = pneg %p207
      $region70: #{bottleneck_forward.6} parent=63 // pred_check_branch
        %878 = sbr.rel (%p876) target = $region72
      $region71: #{bottleneck_forward.6} parent=63 // pred_region
        %s879 = smul.u32 8, %s22
        %p880 = scmp.lt.s32.totalorder %s879, 15
        %s881 = scalar_select %p880, %s879, 15
        %s882 = smul.addr %s881, 4
        %s883 = scalar_lea.vmem %s7, %s882
      $region72: #{bottleneck_forward.6} parent=63 // pred_fallthru
        _
      // Predicated region
      $region73: #{bottleneck_forward.6} parent=63 // pred_check
        %p884 = pneg %p233
      $region74: #{bottleneck_forward.6} parent=63 // pred_check_branch
        %886 = sbr.rel (%p884) target = $region76
      $region75: #{bottleneck_forward.6} parent=63 // pred_region
        %p887 = scmp.lt.s32.totalorder %s22, 1
        %s888 = scalar_select %p887, %s22, 1
        %s889 = smul.addr %s888, 2
        %s890 = scalar_lea.vmem %s8, %s889
      $region76: #{bottleneck_forward.6} parent=63 // pred_fallthru
        _
      // Predicated region
      $region77: #{bottleneck_forward.6} parent=63 // pred_check
        %p891 = pneg %p259
      $region78: #{bottleneck_forward.6} parent=63 // pred_check_branch
        %893 = sbr.rel (%p891) target = $region80
      $region79: #{bottleneck_forward.6} parent=63 // pred_region
        %p894 = scmp.lt.s32.totalorder %s22, 1
        %s895 = scalar_select %p894, %s22, 1
        %s896 = smul.addr %s895, 2
        %s897 = scalar_lea.vmem %s9, %s896
      $region80: #{bottleneck_forward.6} parent=63 // pred_fallthru
        _
    $region64: #{bottleneck_forward.6} parent=5 // pred_fallthru
      _
  $region6: #{bottleneck_forward.6} parent=0 // loop_footer
    %s20 = sadd.s32 1, %s16
  $region7: #{bottleneck_forward.6} parent=0 // loop_footer_branch
    %15 = sbr.rel target = $region3
  $region8: #{bottleneck_forward.6} parent=0 // loop_exit
    _

// kernel: bottleneck_forward.7
$region0: #{bottleneck_forward.7}
  #allocation0 [shape = 'u32[]', space=smem, size = 0x4, offset = 0x4, fixed_abs, tag = 'smem constant byte address 0x4 - core index']
  #allocation1 [shape = 'u32[144,128]{1,0:T(1,128)}', space=vmem, size = 0x12000, scoped, tag = 'internal scratch']
  %s0 = inlined_call_operand.vmem [shape: bf16[128,16], index: 0, kind: input, shape index: {}]
  %s1 = inlined_call_operand.vmem [shape: bf16[128,16], index: 1, kind: input, shape index: {}]
  %s2 = inlined_call_operand.vmem [shape: f32[1,16], index: 2, kind: input, shape index: {}]
  %s3 = inlined_call_operand.vmem [shape: f32[1,16], index: 3, kind: input, shape index: {}]
  %s4 = inlined_call_operand.vmem [shape: f32[1,16], index: 4, kind: input, shape index: {}]
  %s5 = inlined_call_operand.vmem [shape: f32[1,16], index: 5, kind: input, shape index: {}]
  %s6 = inlined_call_operand.hbm [shape: f32[128,16], index: 6, kind: output, shape index: {}]
  %s7 = sld [smem:[#allocation0]]
  $region57: #{bottleneck_forward.7} parent=0
    _
  %s9 = ssub.s32 1, %s7
  %s10 = scalar_select 0, %s9, %s7
  $region1: #{bottleneck_forward.7} parent=0
    #allocation2 [shape = 'u8[65536]{0}', space=vmem, size = 0x10000, scoped, tag = 'output window, operand 0']
    #allocation3 [shape = 's32[2]{0}', space=sflag, size = 0x8, scoped, tag = 'scoped memory for bottleneck_forward.7']
    %11 = vsyncpa [#allocation3], 0
    %s12 = scalar_lea.sflag [#allocation3], 1
    %13 = vsyncpa %s12, 0
    loop: start=0, step=1, limit=4
    $region2: #{bottleneck_forward.7} parent=1 // loop_pre_header
      _
    $region3: #{bottleneck_forward.7} parent=1 // loop_header
      %s15 = sphi 0, %s19
      %p16 = scmp.ge.s32.totalorder %s15, 4
      %s25 = sphi 0, %s27
      %s28 = sphi 0, %s25
      %s29 = sphi 0, %s28
      %s45 = sphi 0, %s29
      %s51 = sphi 0, %s53
      %s54 = sphi 0, %s51
      %s55 = sphi 0, %s54
      %s71 = sphi 0, %s55
      %s75 = sphi 0, %s75
      %s77 = sphi 0, %s75
      %s78 = sphi 0, %s77
      %s92 = sphi 0, %s78
      %s96 = sphi 0, %s96
      %s98 = sphi 0, %s96
      %s99 = sphi 0, %s98
      %s113 = sphi 0, %s99
      %s117 = sphi 0, %s117
      %s119 = sphi 0, %s117
      %s120 = sphi 0, %s119
      %s134 = sphi 0, %s120
      %s138 = sphi 0, %s138
      %s140 = sphi 0, %s138
      %s141 = sphi 0, %s140
      %s155 = sphi 0, %s141
      %s161 = sphi 0, %s163
      %s164 = sphi 0, %s161
      %s165 = sphi 0, %s164
      %s181 = sphi 0, %s165
    $region4: #{bottleneck_forward.7} parent=1 // loop_header_branch
      %18 = sbr.rel (%p16) target = $region8
    $region5: #{bottleneck_forward.7} parent=1 // loop_body
      %s20 = ssub.s32 %s15, 1
      %s21 = ssub.s32 %s15, 2
      %s22 = sadd.s32 %s15, 1
      %s23 = ssub.s32 %s15, %s22
      %p24 = scmp.eq.s32.totalorder %s23, 0
      %s26 = sadd.s32 %s25, 1
      %s27 = scalar_select %p24, %s25, %s26
      %p30 = pneg %p24
      %p31 = scmp.eq.s32.totalorder %s15, 1
      %p32 = por %p30, %p31
      %p33 = scmp.ne.s32.totalorder %s25, %s28
      %p34 = scmp.eq.s32.totalorder %s15, 0
      %p35 = por %p33, %p34
      %p36 = scmp.ne.s32.totalorder %s25, %s28
      %p37 = scmp.eq.s32.totalorder %s20, 1
      %p38 = por %p36, %p37
      %p39 = scmp.ne.s32.totalorder %s28, %s29
      %p40 = scmp.eq.s32.totalorder %s20, 0
      %p41 = por %p39, %p40
      %p42 = scmp.ne.s32.totalorder %s28, %s29
      %p43 = scmp.eq.s32.totalorder %s21, 1
      %p44 = por %p42, %p43
      %p46 = scmp.ne.s32.totalorder %s29, %s45
      %p47 = scmp.eq.s32.totalorder %s21, 0
      %p48 = por %p46, %p47
      %s49 = ssub.s32 %s15, %s22
      %p50 = scmp.eq.s32.totalorder %s49, 0
      %s52 = sadd.s32 %s51, 1
      %s53 = scalar_select %p50, %s51, %s52
      %p56 = pneg %p50
      %p57 = scmp.eq.s32.totalorder %s15, 1
      %p58 = por %p56, %p57
      %p59 = scmp.ne.s32.totalorder %s51, %s54
      %p60 = scmp.eq.s32.totalorder %s15, 0
      %p61 = por %p59, %p60
      %p62 = scmp.ne.s32.totalorder %s51, %s54
      %p63 = scmp.eq.s32.totalorder %s20, 1
      %p64 = por %p62, %p63
      %p65 = scmp.ne.s32.totalorder %s54, %s55
      %p66 = scmp.eq.s32.totalorder %s20, 0
      %p67 = por %p65, %p66
      %p68 = scmp.ne.s32.totalorder %s54, %s55
      %p69 = scmp.eq.s32.totalorder %s21, 1
      %p70 = por %p68, %p69
      %p72 = scmp.ne.s32.totalorder %s55, %s71
      %p73 = scmp.eq.s32.totalorder %s21, 0
      %p74 = por %p72, %p73
      %s76 = sadd.s32 %s75, 1
      %p79 = scmp.eq.s32.totalorder %s15, 1
      %p80 = scmp.ne.s32.totalorder %s75, %s77
      %p81 = scmp.eq.s32.totalorder %s15, 0
      %p82 = por %p80, %p81
      %p83 = scmp.ne.s32.totalorder %s75, %s77
      %p84 = scmp.eq.s32.totalorder %s20, 1
      %p85 = por %p83, %p84
      %p86 = scmp.ne.s32.totalorder %s77, %s78
      %p87 = scmp.eq.s32.totalorder %s20, 0
      %p88 = por %p86, %p87
      %p89 = scmp.ne.s32.totalorder %s77, %s78
      %p90 = scmp.eq.s32.totalorder %s21, 1
      %p91 = por %p89, %p90
      %p93 = scmp.ne.s32.totalorder %s78, %s92
      %p94 = scmp.eq.s32.totalorder %s21, 0
      %p95 = por %p93, %p94
      %s97 = sadd.s32 %s96, 1
      %p100 = scmp.eq.s32.totalorder %s15, 1
      %p101 = scmp.ne.s32.totalorder %s96, %s98
      %p102 = scmp.eq.s32.totalorder %s15, 0
      %p103 = por %p101, %p102
      %p104 = scmp.ne.s32.totalorder %s96, %s98
      %p105 = scmp.eq.s32.totalorder %s20, 1
      %p106 = por %p104, %p105
      %p107 = scmp.ne.s32.totalorder %s98, %s99
      %p108 = scmp.eq.s32.totalorder %s20, 0
      %p109 = por %p107, %p108
      %p110 = scmp.ne.s32.totalorder %s98, %s99
      %p111 = scmp.eq.s32.totalorder %s21, 1
      %p112 = por %p110, %p111
      %p114 = scmp.ne.s32.totalorder %s99, %s113
      %p115 = scmp.eq.s32.totalorder %s21, 0
      %p116 = por %p114, %p115
      %s118 = sadd.s32 %s117, 1
      %p121 = scmp.eq.s32.totalorder %s15, 1
      %p122 = scmp.ne.s32.totalorder %s117, %s119
      %p123 = scmp.eq.s32.totalorder %s15, 0
      %p124 = por %p122, %p123
      %p125 = scmp.ne.s32.totalorder %s117, %s119
      %p126 = scmp.eq.s32.totalorder %s20, 1
      %p127 = por %p125, %p126
      %p128 = scmp.ne.s32.totalorder %s119, %s120
      %p129 = scmp.eq.s32.totalorder %s20, 0
      %p130 = por %p128, %p129
      %p131 = scmp.ne.s32.totalorder %s119, %s120
      %p132 = scmp.eq.s32.totalorder %s21, 1
      %p133 = por %p131, %p132
      %p135 = scmp.ne.s32.totalorder %s120, %s134
      %p136 = scmp.eq.s32.totalorder %s21, 0
      %p137 = por %p135, %p136
      %s139 = sadd.s32 %s138, 1
      %p142 = scmp.eq.s32.totalorder %s15, 1
      %p143 = scmp.ne.s32.totalorder %s138, %s140
      %p144 = scmp.eq.s32.totalorder %s15, 0
      %p145 = por %p143, %p144
      %p146 = scmp.ne.s32.totalorder %s138, %s140
      %p147 = scmp.eq.s32.totalorder %s20, 1
      %p148 = por %p146, %p147
      %p149 = scmp.ne.s32.totalorder %s140, %s141
      %p150 = scmp.eq.s32.totalorder %s20, 0
      %p151 = por %p149, %p150
      %p152 = scmp.ne.s32.totalorder %s140, %s141
      %p153 = scmp.eq.s32.totalorder %s21, 1
      %p154 = por %p152, %p153
      %p156 = scmp.ne.s32.totalorder %s141, %s155
      %p157 = scmp.eq.s32.totalorder %s21, 0
      %p158 = por %p156, %p157
      %s159 = ssub.s32 %s15, %s22
      %p160 = scmp.eq.s32.totalorder %s159, 0
      %s162 = sadd.s32 %s161, 1
      %s163 = scalar_select %p160, %s161, %s162
      %p166 = pneg %p160
      %p167 = scmp.eq.s32.totalorder %s15, 1
      %p168 = por %p166, %p167
      %p169 = scmp.ne.s32.totalorder %s161, %s164
      %p170 = scmp.eq.s32.totalorder %s15, 0
      %p171 = por %p169, %p170
      %p172 = scmp.ne.s32.totalorder %s161, %s164
      %p173 = scmp.eq.s32.totalorder %s20, 1
      %p174 = por %p172, %p173
      %p175 = scmp.ne.s32.totalorder %s164, %s165
      %p176 = scmp.eq.s32.totalorder %s20, 0
      %p177 = por %p175, %p176
      %p178 = scmp.ne.s32.totalorder %s164, %s165
      %p179 = scmp.eq.s32.totalorder %s21, 1
      %p180 = por %p178, %p179
      %p182 = scmp.ne.s32.totalorder %s165, %s181
      %p183 = scmp.eq.s32.totalorder %s21, 0
      %p184 = por %p182, %p183
      %p185 = scmp.le.s32.totalorder 1, %s15
      %p186 = scmp.lt.s32.totalorder %s15, 3
      %p187 = pnand %p185, %p186
      %p188 = pneg %p187
      // Predicated region
      $region9: #{bottleneck_forward.7} parent=5 // pred_check
        _
      $region10: #{bottleneck_forward.7} parent=5 // pred_check_branch
        %190 = sbr.rel (%p187) target = $region12
      $region11: #{bottleneck_forward.7} parent=5 // pred_region
        %s191 = ssub.s32 %s15, 1
        // Predicated region
        $region13: #{bottleneck_forward.7} parent=11 // pred_check
          %p192 = pneg %p88
        $region14: #{bottleneck_forward.7} parent=11 // pred_check_branch
          %194 = sbr.rel (%p192) target = $region16
        $region15: #{bottleneck_forward.7} parent=11 // pred_region
          _
        $region16: #{bottleneck_forward.7} parent=11 // pred_fallthru
          _
        // Predicated region
        $region17: #{bottleneck_forward.7} parent=11 // pred_check
          %p195 = pneg %p109
        $region18: #{bottleneck_forward.7} parent=11 // pred_check_branch
          %197 = sbr.rel (%p195) target = $region20
        $region19: #{bottleneck_forward.7} parent=11 // pred_region
          _
        $region20: #{bottleneck_forward.7} parent=11 // pred_fallthru
          _
        // Predicated region
        $region21: #{bottleneck_forward.7} parent=11 // pred_check
          %p198 = pneg %p130
        $region22: #{bottleneck_forward.7} parent=11 // pred_check_branch
          %200 = sbr.rel (%p198) target = $region24
        $region23: #{bottleneck_forward.7} parent=11 // pred_region
          _
        $region24: #{bottleneck_forward.7} parent=11 // pred_fallthru
          _
        // Predicated region
        $region25: #{bottleneck_forward.7} parent=11 // pred_check
          %p201 = pneg %p151
        $region26: #{bottleneck_forward.7} parent=11 // pred_check_branch
          %203 = sbr.rel (%p201) target = $region28
        $region27: #{bottleneck_forward.7} parent=11 // pred_region
          _
        $region28: #{bottleneck_forward.7} parent=11 // pred_fallthru
          _
      $region12: #{bottleneck_forward.7} parent=5 // pred_fallthru
        _
      %p204 = scmp.lt.s32.totalorder %s15, 2
      // Predicated region
      $region29: #{bottleneck_forward.7} parent=5 // pred_check
        %p205 = pneg %p204
      $region30: #{bottleneck_forward.7} parent=5 // pred_check_branch
        %207 = sbr.rel (%p205) target = $region32
      $region31: #{bottleneck_forward.7} parent=5 // pred_region
        // Predicated region
        $region33: #{bottleneck_forward.7} parent=31 // pred_check
          %p208 = pneg %p35
        $region34: #{bottleneck_forward.7} parent=31 // pred_check_branch
          %210 = sbr.rel (%p208) target = $region36
        $region35: #{bottleneck_forward.7} parent=31 // pred_region
          %s211 = smul.u32 8, %s15
          %p212 = scmp.lt.s32.totalorder %s211, 15
          %s213 = scalar_select %p212, %s211, 15
          %s214 = smul.addr %s213, 4
          %s215 = scalar_lea.vmem %s0, %s214
          %s216 = smul.u32 8, %s15
        $region36: #{bottleneck_forward.7} parent=31 // pred_fallthru
          _
        // Predicated region
        $region37: #{bottleneck_forward.7} parent=31 // pred_check
          %p217 = pneg %p61
        $region38: #{bottleneck_forward.7} parent=31 // pred_check_branch
          %219 = sbr.rel (%p217) target = $region40
        $region39: #{bottleneck_forward.7} parent=31 // pred_region
          %s220 = smul.u32 8, %s15
          %p221 = scmp.lt.s32.totalorder %s220, 15
          %s222 = scalar_select %p221, %s220, 15
          %s223 = smul.addr %s222, 4
          %s224 = scalar_lea.vmem %s1, %s223
          %s225 = smul.u32 8, %s15
        $region40: #{bottleneck_forward.7} parent=31 // pred_fallthru
          _
      $region32: #{bottleneck_forward.7} parent=5 // pred_fallthru
        _
      %p226 = scmp.le.s32.totalorder 1, %s15
      %p227 = scmp.lt.s32.totalorder %s15, 3
      %p228 = pnand %p226, %p227
      %p229 = pneg %p228
      // Predicated region
      $region41: #{bottleneck_forward.7} parent=5 // pred_check
        _
      $region42: #{bottleneck_forward.7} parent=5 // pred_check_branch
        %231 = sbr.rel (%p228) target = $region44
      $region43: #{bottleneck_forward.7} parent=5 // pred_region
        %s232 = ssub.s32 %s15, 1
        %s233 = smul.u32 8, %s20
        %p234 = scmp.lt.s32.totalorder %s233, 15
        %s235 = scalar_select %p234, %s233, 15
        %s236 = smul.addr %s235, 4
        %s237 = scalar_lea.vmem %s0, %s236
        %p238 = pneg %p41
        %p239 = pneg %p38
        %s240 = smul.u32 8, %s20
        %p241 = scmp.lt.s32.totalorder %s240, 15
        %s242 = scalar_select %p241, %s240, 15
        %s243 = smul.addr %s242, 4
        %s244 = scalar_lea.vmem %s1, %s243
        %p245 = pneg %p67
        %p246 = pneg %p64
        %p247 = pneg %p88
        %p248 = pneg %p85
        %p249 = pneg %p109
        %p250 = pneg %p106
        %p251 = pneg %p130
        %p252 = pneg %p127
        %p253 = pneg %p151
        %p254 = pneg %p148
        %p255 = pneg %p177
        %p256 = pneg %p174
        %s257 = sand.u32 %s164, 1
        %s258 = scalar_lea.sflag [#allocation3], %s257
        %s259 = sand.u32 %s164, 1
        %s260 = smul.addr %s259, 64
        %s261 = scalar_lea.vmem [#allocation2], %s260
        %s262 = smul.u32 8, %s20
        %p263 = scmp.lt.s32.totalorder %s262, 15
        %s264 = scalar_select %p263, %s262, 15
        %s265 = smul.addr %s264, 4
        %s266 = scalar_lea.vmem %s0, %s265
        %s267 = smul.u32 8, %s20
        %s268 = smul.u32 8, %s20
        %p269 = scmp.lt.s32.totalorder %s268, 15
        %s270 = scalar_select %p269, %s268, 15
        %s271 = smul.addr %s270, 4
        %s272 = scalar_lea.vmem %s1, %s271
        %s273 = smul.u32 8, %s20
        %s274 = smul.u32 8, %s20
        %v275 = vld [vmem:[%s266] sm:$0xf]
        %v276 = vld [vmem:[%s266 + $0x4] sm:$0xf]
        %v277 = vld [vmem:[%s266 + $0x8] sm:$0xf]
        %v278 = vld [vmem:[%s266 + $0xc] sm:$0xf]
        %v279 = vld [vmem:[%s266 + $0x10] sm:$0xf]
        %v280 = vld [vmem:[%s266 + $0x14] sm:$0xf]
        %v281 = vld [vmem:[%s266 + $0x18] sm:$0xf]
        %v282 = vld [vmem:[%s266 + $0x1c] sm:$0xf]
        %v283 = vunpack.c.l.bf16 %v275
        %v284 = vunpack.c.l.bf16 %v276
        %v285 = vunpack.c.l.bf16 %v277
        %v286 = vunpack.c.l.bf16 %v278
        %v287 = vunpack.c.l.bf16 %v279
        %v288 = vunpack.c.l.bf16 %v280
        %v289 = vunpack.c.l.bf16 %v281
        %v290 = vunpack.c.l.bf16 %v282
        %v291 = vld [vmem:[%s2] sm:$0x1]
        %v293 = vlaneseq
        %v294 = vshrl.u32 %v293, 7
        %v295 = vsub.s32 0, %v294
        %v296 = vrot.slane %v291, %v295
        %v298 = vmul.f32 %v283, %v296
        %v299 = vmul.f32 %v284, %v296
        %v300 = vmul.f32 %v285, %v296
        %v301 = vmul.f32 %v286, %v296
        %v302 = vmul.f32 %v287, %v296
        %v303 = vmul.f32 %v288, %v296
        %v304 = vmul.f32 %v289, %v296
        %v305 = vmul.f32 %v290, %v296
        %v306 = vld [vmem:[%s3] sm:$0x1]
        %v308 = vlaneseq
        %v309 = vshrl.u32 %v308, 7
        %v310 = vsub.s32 0, %v309
        %v311 = vrot.slane %v306, %v310
        %v313 = vadd.f32 %v298, %v311
        %v314 = vadd.f32 %v299, %v311
        %v315 = vadd.f32 %v300, %v311
        %v316 = vadd.f32 %v301, %v311
        %v317 = vadd.f32 %v302, %v311
        %v318 = vadd.f32 %v303, %v311
        %v319 = vadd.f32 %v304, %v311
        %v320 = vadd.f32 %v305, %v311
        %v321 = vld [vmem:[%s272] sm:$0xf]
        %v322 = vld [vmem:[%s272 + $0x4] sm:$0xf]
        %v323 = vld [vmem:[%s272 + $0x8] sm:$0xf]
        %v324 = vld [vmem:[%s272 + $0xc] sm:$0xf]
        %v325 = vld [vmem:[%s272 + $0x10] sm:$0xf]
        %v326 = vld [vmem:[%s272 + $0x14] sm:$0xf]
        %v327 = vld [vmem:[%s272 + $0x18] sm:$0xf]
        %v328 = vld [vmem:[%s272 + $0x1c] sm:$0xf]
        %v329 = vunpack.c.l.bf16 %v321
        %v330 = vunpack.c.l.bf16 %v322
        %v331 = vunpack.c.l.bf16 %v323
        %v332 = vunpack.c.l.bf16 %v324
        %v333 = vunpack.c.l.bf16 %v325
        %v334 = vunpack.c.l.bf16 %v326
        %v335 = vunpack.c.l.bf16 %v327
        %v336 = vunpack.c.l.bf16 %v328
        %v337 = vld [vmem:[%s4] sm:$0x1]
        %v339 = vlaneseq
        %v340 = vshrl.u32 %v339, 7
        %v341 = vsub.s32 0, %v340
        %v342 = vrot.slane %v337, %v341
        %v344 = vmul.f32 %v329, %v342
        %v345 = vmul.f32 %v330, %v342
        %v346 = vmul.f32 %v331, %v342
        %v347 = vmul.f32 %v332, %v342
        %v348 = vmul.f32 %v333, %v342
        %v349 = vmul.f32 %v334, %v342
        %v350 = vmul.f32 %v335, %v342
        %v351 = vmul.f32 %v336, %v342
        %v352 = vadd.f32 %v313, %v344
        %v353 = vadd.f32 %v314, %v345
        %v354 = vadd.f32 %v315, %v346
        %v355 = vadd.f32 %v316, %v347
        %v356 = vadd.f32 %v317, %v348
        %v357 = vadd.f32 %v318, %v349
        %v358 = vadd.f32 %v319, %v350
        %v359 = vadd.f32 %v320, %v351
        %v360 = vld [vmem:[%s5] sm:$0x1]
        %v362 = vlaneseq
        %v363 = vshrl.u32 %v362, 7
        %v364 = vsub.s32 0, %v363
        %v365 = vrot.slane %v360, %v364
        %v367 = vadd.f32 %v352, %v365
        %v368 = vadd.f32 %v353, %v365
        %v369 = vadd.f32 %v354, %v365
        %v370 = vadd.f32 %v355, %v365
        %v371 = vadd.f32 %v356, %v365
        %v372 = vadd.f32 %v357, %v365
        %v373 = vadd.f32 %v358, %v365
        %v374 = vadd.f32 %v359, %v365
        %v375 = vmax.f32 %v367, 0.0
        %v376 = vmax.f32 %v368, 0.0
        %v377 = vmax.f32 %v369, 0.0
        %v378 = vmax.f32 %v370, 0.0
        %v379 = vmax.f32 %v371, 0.0
        %v380 = vmax.f32 %v372, 0.0
        %v381 = vmax.f32 %v373, 0.0
        %v382 = vmax.f32 %v374, 0.0
        %vm383 = vcmask 130048
        %384 = vst.msk [vmem:[%s261] sm:$0xff] %vm383, %v375
        %385 = vst.msk [vmem:[%s261 + $0x8] sm:$0xff] %vm383, %v376
        %386 = vst.msk [vmem:[%s261 + $0x10] sm:$0xff] %vm383, %v377
        %387 = vst.msk [vmem:[%s261 + $0x18] sm:$0xff] %vm383, %v378
        %388 = vst.msk [vmem:[%s261 + $0x20] sm:$0xff] %vm383, %v379
        %389 = vst.msk [vmem:[%s261 + $0x28] sm:$0xff] %vm383, %v380
        %390 = vst.msk [vmem:[%s261 + $0x30] sm:$0xff] %vm383, %v381
        %391 = vst.msk [vmem:[%s261 + $0x38] sm:$0xff] %vm383, %v382
        %s392 = sand.u32 %s164, 1
        %s393 = scalar_lea.sflag [#allocation3], %s392
        %s394 = sand.u32 %s164, 1
        %s395 = smul.addr %s394, 64
        %s396 = scalar_lea.vmem [#allocation2], %s395
        // Predicated region
        $region45: #{bottleneck_forward.7} parent=43 // pred_check
          %p397 = pneg %p174
        $region46: #{bottleneck_forward.7} parent=43 // pred_check_branch
          %399 = sbr.rel (%p397) target = $region48
        $region47: #{bottleneck_forward.7} parent=43 // pred_region
          %s400 = smul.u32 8, %s20
          %s402 = ssub.s32 1024, 1024
          %403 = vsyncadd %s393, %s402
          %s404 = smul.addr %s400, 128
          %s405 = scalar_lea.hbm %s6, %s404
          %s406 = sshll.u32 %s396, 4
          %s407 = int_to_ptr.vmem [resolvable:$true] %s406
          %412 = dma.vmem_to_hbm [thread:$0]  %s407, 1024, %s405, %s393, 128, 128, 8
        $region48: #{bottleneck_forward.7} parent=43 // pred_fallthru
          _
      $region44: #{bottleneck_forward.7} parent=5 // pred_fallthru
        _
      %p413 = scmp.le.s32.totalorder 2, %s15
      // Predicated region
      $region49: #{bottleneck_forward.7} parent=5 // pred_check
        %p414 = pneg %p413
      $region50: #{bottleneck_forward.7} parent=5 // pred_check_branch
        %416 = sbr.rel (%p414) target = $region52
      $region51: #{bottleneck_forward.7} parent=5 // pred_region
        %s417 = ssub.s32 %s15, 2
        // Predicated region
        $region53: #{bottleneck_forward.7} parent=51 // pred_check
          %p418 = pneg %p180
        $region54: #{bottleneck_forward.7} parent=51 // pred_check_branch
          %420 = sbr.rel (%p418) target = $region56
        $region55: #{bottleneck_forward.7} parent=51 // pred_region
          %s421 = sand.u32 %s165, 1
          %s422 = scalar_lea.sflag [#allocation3], %s421
          %s423 = sand.u32 %s165, 1
          %s424 = smul.addr %s423, 64
          %s425 = scalar_lea.vmem [#allocation2], %s424
          %426 = dma.done %s422, 1024
        $region56: #{bottleneck_forward.7} parent=51 // pred_fallthru
          _
      $region52: #{bottleneck_forward.7} parent=5 // pred_fallthru
        _
    $region6: #{bottleneck_forward.7} parent=1 // loop_footer
      %s19 = sadd.s32 1, %s15
    $region7: #{bottleneck_forward.7} parent=1 // loop_footer_branch
      %14 = sbr.rel target = $region3
    $region8: #{bottleneck_forward.7} parent=1 // loop_exit
      _
    %427 = vsyncpa [#allocation3], 1
    %s428 = scalar_lea.sflag [#allocation3], 1
    %429 = vsyncpa %s428, 1

// kernel: bottleneck_forward.5
$region0: #{bottleneck_forward.5}
  #allocation0 [shape = 'u32[]', space=smem, size = 0x4, offset = 0x4, fixed_abs, tag = 'smem constant byte address 0x4 - core index']
  #allocation1 [shape = 'u32[144,128]{1,0:T(1,128)}', space=vmem, size = 0x12000, scoped, tag = 'internal scratch']
  %s0 = inlined_call_operand.vmem [shape: bf16[4,2,9,9,4], index: 0, kind: input, shape index: {}]
  %s1 = inlined_call_operand.vmem [shape: bf16[4,1,9,9,4], index: 1, kind: input, shape index: {}]
  %s2 = inlined_call_operand.vmem [shape: f32[1,4], index: 2, kind: input, shape index: {}]
  %s3 = inlined_call_operand.vmem [shape: f32[1,4], index: 3, kind: input, shape index: {}]
  %s4 = inlined_call_operand.vmem [shape: bf16[36,4], index: 4, kind: input, shape index: {}]
  %s5 = inlined_call_operand.vmem [shape: bf16[2,8,8,4], index: 5, kind: output, shape index: {0}]
  %s6 = inlined_call_operand.vmem [shape: f32[2,2,4], index: 6, kind: output, shape index: {1}]
  %7 = xla_tuple %s5, %s6
  %s8 = sld [smem:[#allocation0]]
  $region102: #{bottleneck_forward.5} parent=0
    _
  %s10 = ssub.s32 1, %s8
  %s11 = scalar_select 0, %s10, %s8
  $region1: #{bottleneck_forward.5} parent=0
    #allocation2 [shape = 'u8[294912]{0}', space=vmem, size = 0x48000, scoped, tag = 'input window, operand 0']
    loop: start=0, step=1, limit=4
    $region2: #{bottleneck_forward.5} parent=1 // loop_pre_header
      _
    $region3: #{bottleneck_forward.5} parent=1 // loop_header
      %s13 = sphi 0, %s17
      %p14 = scmp.ge.s32.totalorder %s13, 4
      %s23 = sphi 0, %s25
      %s26 = sphi 0, %s23
      %s27 = sphi 0, %s26
      %s43 = sphi 0, %s27
      %s47 = sphi 0, %s47
      %s49 = sphi 0, %s47
      %s50 = sphi 0, %s49
      %s64 = sphi 0, %s50
      %s68 = sphi 0, %s68
      %s70 = sphi 0, %s68
      %s71 = sphi 0, %s70
      %s85 = sphi 0, %s71
      %s89 = sphi 0, %s89
      %s91 = sphi 0, %s89
      %s92 = sphi 0, %s91
      %s106 = sphi 0, %s92
      %s110 = sphi 0, %s110
      %s112 = sphi 0, %s110
      %s113 = sphi 0, %s112
      %s127 = sphi 0, %s113
      %s133 = sphi 0, %s135
      %s136 = sphi 0, %s133
      %s137 = sphi 0, %s136
      %s153 = sphi 0, %s137
      %s159 = sphi 0, %s161
      %s162 = sphi 0, %s159
      %s163 = sphi 0, %s162
      %s179 = sphi 0, %s163
    $region4: #{bottleneck_forward.5} parent=1 // loop_header_branch
      %16 = sbr.rel (%p14) target = $region8
    $region5: #{bottleneck_forward.5} parent=1 // loop_body
      %s18 = ssub.s32 %s13, 1
      %s19 = ssub.s32 %s13, 2
      %s20 = sadd.s32 %s13, 1
      %s21 = ssub.s32 %s13, %s20
      %p22 = scmp.eq.s32.totalorder %s21, 0
      %s24 = sadd.s32 %s23, 1
      %s25 = scalar_select %p22, %s23, %s24
      %p28 = pneg %p22
      %p29 = scmp.eq.s32.totalorder %s13, 1
      %p30 = por %p28, %p29
      %p31 = scmp.ne.s32.totalorder %s23, %s26
      %p32 = scmp.eq.s32.totalorder %s13, 0
      %p33 = por %p31, %p32
      %p34 = scmp.ne.s32.totalorder %s23, %s26
      %p35 = scmp.eq.s32.totalorder %s18, 1
      %p36 = por %p34, %p35
      %p37 = scmp.ne.s32.totalorder %s26, %s27
      %p38 = scmp.eq.s32.totalorder %s18, 0
      %p39 = por %p37, %p38
      %p40 = scmp.ne.s32.totalorder %s26, %s27
      %p41 = scmp.eq.s32.totalorder %s19, 1
      %p42 = por %p40, %p41
      %p44 = scmp.ne.s32.totalorder %s27, %s43
      %p45 = scmp.eq.s32.totalorder %s19, 0
      %p46 = por %p44, %p45
      %s48 = sadd.s32 %s47, 1
      %p51 = scmp.eq.s32.totalorder %s13, 1
      %p52 = scmp.ne.s32.totalorder %s47, %s49
      %p53 = scmp.eq.s32.totalorder %s13, 0
      %p54 = por %p52, %p53
      %p55 = scmp.ne.s32.totalorder %s47, %s49
      %p56 = scmp.eq.s32.totalorder %s18, 1
      %p57 = por %p55, %p56
      %p58 = scmp.ne.s32.totalorder %s49, %s50
      %p59 = scmp.eq.s32.totalorder %s18, 0
      %p60 = por %p58, %p59
      %p61 = scmp.ne.s32.totalorder %s49, %s50
      %p62 = scmp.eq.s32.totalorder %s19, 1
      %p63 = por %p61, %p62
      %p65 = scmp.ne.s32.totalorder %s50, %s64
      %p66 = scmp.eq.s32.totalorder %s19, 0
      %p67 = por %p65, %p66
      %s69 = sadd.s32 %s68, 1
      %p72 = scmp.eq.s32.totalorder %s13, 1
      %p73 = scmp.ne.s32.totalorder %s68, %s70
      %p74 = scmp.eq.s32.totalorder %s13, 0
      %p75 = por %p73, %p74
      %p76 = scmp.ne.s32.totalorder %s68, %s70
      %p77 = scmp.eq.s32.totalorder %s18, 1
      %p78 = por %p76, %p77
      %p79 = scmp.ne.s32.totalorder %s70, %s71
      %p80 = scmp.eq.s32.totalorder %s18, 0
      %p81 = por %p79, %p80
      %p82 = scmp.ne.s32.totalorder %s70, %s71
      %p83 = scmp.eq.s32.totalorder %s19, 1
      %p84 = por %p82, %p83
      %p86 = scmp.ne.s32.totalorder %s71, %s85
      %p87 = scmp.eq.s32.totalorder %s19, 0
      %p88 = por %p86, %p87
      %s90 = sadd.s32 %s89, 1
      %p93 = scmp.eq.s32.totalorder %s13, 1
      %p94 = scmp.ne.s32.totalorder %s89, %s91
      %p95 = scmp.eq.s32.totalorder %s13, 0
      %p96 = por %p94, %p95
      %p97 = scmp.ne.s32.totalorder %s89, %s91
      %p98 = scmp.eq.s32.totalorder %s18, 1
      %p99 = por %p97, %p98
      %p100 = scmp.ne.s32.totalorder %s91, %s92
      %p101 = scmp.eq.s32.totalorder %s18, 0
      %p102 = por %p100, %p101
      %p103 = scmp.ne.s32.totalorder %s91, %s92
      %p104 = scmp.eq.s32.totalorder %s19, 1
      %p105 = por %p103, %p104
      %p107 = scmp.ne.s32.totalorder %s92, %s106
      %p108 = scmp.eq.s32.totalorder %s19, 0
      %p109 = por %p107, %p108
      %s111 = sadd.s32 %s110, 1
      %p114 = scmp.eq.s32.totalorder %s13, 1
      %p115 = scmp.ne.s32.totalorder %s110, %s112
      %p116 = scmp.eq.s32.totalorder %s13, 0
      %p117 = por %p115, %p116
      %p118 = scmp.ne.s32.totalorder %s110, %s112
      %p119 = scmp.eq.s32.totalorder %s18, 1
      %p120 = por %p118, %p119
      %p121 = scmp.ne.s32.totalorder %s112, %s113
      %p122 = scmp.eq.s32.totalorder %s18, 0
      %p123 = por %p121, %p122
      %p124 = scmp.ne.s32.totalorder %s112, %s113
      %p125 = scmp.eq.s32.totalorder %s19, 1
      %p126 = por %p124, %p125
      %p128 = scmp.ne.s32.totalorder %s113, %s127
      %p129 = scmp.eq.s32.totalorder %s19, 0
      %p130 = por %p128, %p129
      %s131 = ssub.s32 %s13, %s20
      %p132 = scmp.eq.s32.totalorder %s131, 0
      %s134 = sadd.s32 %s133, 1
      %s135 = scalar_select %p132, %s133, %s134
      %p138 = pneg %p132
      %p139 = scmp.eq.s32.totalorder %s13, 1
      %p140 = por %p138, %p139
      %p141 = scmp.ne.s32.totalorder %s133, %s136
      %p142 = scmp.eq.s32.totalorder %s13, 0
      %p143 = por %p141, %p142
      %p144 = scmp.ne.s32.totalorder %s133, %s136
      %p145 = scmp.eq.s32.totalorder %s18, 1
      %p146 = por %p144, %p145
      %p147 = scmp.ne.s32.totalorder %s136, %s137
      %p148 = scmp.eq.s32.totalorder %s18, 0
      %p149 = por %p147, %p148
      %p150 = scmp.ne.s32.totalorder %s136, %s137
      %p151 = scmp.eq.s32.totalorder %s19, 1
      %p152 = por %p150, %p151
      %p154 = scmp.ne.s32.totalorder %s137, %s153
      %p155 = scmp.eq.s32.totalorder %s19, 0
      %p156 = por %p154, %p155
      %s157 = ssub.s32 %s13, %s20
      %p158 = scmp.eq.s32.totalorder %s157, 0
      %s160 = sadd.s32 %s159, 1
      %s161 = scalar_select %p158, %s159, %s160
      %p164 = pneg %p158
      %p165 = scmp.eq.s32.totalorder %s13, 1
      %p166 = por %p164, %p165
      %p167 = scmp.ne.s32.totalorder %s159, %s162
      %p168 = scmp.eq.s32.totalorder %s13, 0
      %p169 = por %p167, %p168
      %p170 = scmp.ne.s32.totalorder %s159, %s162
      %p171 = scmp.eq.s32.totalorder %s18, 1
      %p172 = por %p170, %p171
      %p173 = scmp.ne.s32.totalorder %s162, %s163
      %p174 = scmp.eq.s32.totalorder %s18, 0
      %p175 = por %p173, %p174
      %p176 = scmp.ne.s32.totalorder %s162, %s163
      %p177 = scmp.eq.s32.totalorder %s19, 1
      %p178 = por %p176, %p177
      %p180 = scmp.ne.s32.totalorder %s163, %s179
      %p181 = scmp.eq.s32.totalorder %s19, 0
      %p182 = por %p180, %p181
      %p183 = scmp.le.s32.totalorder 1, %s13
      %p184 = scmp.lt.s32.totalorder %s13, 3
      %p185 = pnand %p183, %p184
      %p186 = pneg %p185
      // Predicated region
      $region9: #{bottleneck_forward.5} parent=5 // pred_check
        _
      $region10: #{bottleneck_forward.5} parent=5 // pred_check_branch
        %188 = sbr.rel (%p185) target = $region12
      $region11: #{bottleneck_forward.5} parent=5 // pred_region
        %s189 = ssub.s32 %s13, 1
        // Predicated region
        $region13: #{bottleneck_forward.5} parent=11 // pred_check
          %p190 = pneg %p60
        $region14: #{bottleneck_forward.5} parent=11 // pred_check_branch
          %192 = sbr.rel (%p190) target = $region16
        $region15: #{bottleneck_forward.5} parent=11 // pred_region
          _
        $region16: #{bottleneck_forward.5} parent=11 // pred_fallthru
          _
        // Predicated region
        $region17: #{bottleneck_forward.5} parent=11 // pred_check
          %p193 = pneg %p81
        $region18: #{bottleneck_forward.5} parent=11 // pred_check_branch
          %195 = sbr.rel (%p193) target = $region20
        $region19: #{bottleneck_forward.5} parent=11 // pred_region
          _
        $region20: #{bottleneck_forward.5} parent=11 // pred_fallthru
          _
        // Predicated region
        $region21: #{bottleneck_forward.5} parent=11 // pred_check
          %p196 = pneg %p102
        $region22: #{bottleneck_forward.5} parent=11 // pred_check_branch
          %198 = sbr.rel (%p196) target = $region24
        $region23: #{bottleneck_forward.5} parent=11 // pred_region
          _
        $region24: #{bottleneck_forward.5} parent=11 // pred_fallthru
          _
        // Predicated region
        $region25: #{bottleneck_forward.5} parent=11 // pred_check
          %p199 = pneg %p123
        $region26: #{bottleneck_forward.5} parent=11 // pred_check_branch
          %201 = sbr.rel (%p199) target = $region28
        $region27: #{bottleneck_forward.5} parent=11 // pred_region
          _
        $region28: #{bottleneck_forward.5} parent=11 // pred_fallthru
          _
      $region12: #{bottleneck_forward.5} parent=5 // pred_fallthru
        _
      %p202 = scmp.lt.s32.totalorder %s13, 2
      // Predicated region
      $region29: #{bottleneck_forward.5} parent=5 // pred_check
        %p203 = pneg %p202
      $region30: #{bottleneck_forward.5} parent=5 // pred_check_branch
        %205 = sbr.rel (%p203) target = $region32
      $region31: #{bottleneck_forward.5} parent=5 // pred_region
        // Predicated region
        $region33: #{bottleneck_forward.5} parent=31 // pred_check
          %p206 = pneg %p33
        $region34: #{bottleneck_forward.5} parent=31 // pred_check_branch
          %208 = sbr.rel (%p206) target = $region36
        $region35: #{bottleneck_forward.5} parent=31 // pred_region
          %s209 = sand.u32 %s23, 1
          %s210 = sand.u32 %s23, 1
          %s211 = smul.addr %s210, 288
          %s212 = scalar_lea.vmem [#allocation2], %s211
          %s213 = smul.addr %s13, 18
          %s214 = smul.addr %s213, 4
          %s215 = scalar_lea.vmem %s0, %s214
          // Predicated region
          $region37: #{bottleneck_forward.5} parent=35 // pred_check
            _
          $region38: #{bottleneck_forward.5} parent=35 // pred_check_branch
            %217 = sbr.rel (0) target = $region40
          $region39: #{bottleneck_forward.5} parent=35 // pred_region
            // Predicated region
            $region41: #{bottleneck_forward.5} parent=39 // pred_check
              _
            $region42: #{bottleneck_forward.5} parent=39 // pred_check_branch
              %219 = sbr.rel target = $region44
            $region43: #{bottleneck_forward.5} parent=39 // pred_region
              // Predicated region
              $region56: #{bottleneck_forward.5} parent=43 // pred_check
                _
              $region57: #{bottleneck_forward.5} parent=43 // pred_check_branch
                %377 = sbr.rel (0) target = $region59
              $region58: #{bottleneck_forward.5} parent=43 // pred_region
                loop: start=0, step=1, limit=1
                $region60: #{bottleneck_forward.5} parent=58 // loop_pre_header
                  _
                $region61: #{bottleneck_forward.5} parent=58 // loop_header
                  %s379 = sphi 0, %s383
                  %p380 = scmp.ge.s32.totalorder %s379, 1
                  %s384 = sphi %s215, %s215
                  %s385 = sphi %s212, %s212
                $region62: #{bottleneck_forward.5} parent=58 // loop_header_branch
                  %382 = sbr.rel (%p380) target = $region66
                $region63: #{bottleneck_forward.5} parent=58 // loop_body
                  _
                $region64: #{bottleneck_forward.5} parent=58 // loop_footer
                  %s383 = sadd.s32 1, %s379
                $region65: #{bottleneck_forward.5} parent=58 // loop_footer_branch
                  %378 = sbr.rel target = $region61
                $region66: #{bottleneck_forward.5} parent=58 // loop_exit
                  _
                %s387 = ssub.s32 16, 1
                loop: start=0, step=1, limit=1
                $region67: #{bottleneck_forward.5} parent=58 // loop_pre_header
                  _
                $region68: #{bottleneck_forward.5} parent=58 // loop_header
                  %s389 = sphi 0, %s393
                  %p390 = scmp.ge.s32.totalorder %s389, 1
                  %s394 = sphi %s215, %s215
                  %s395 = sphi %s212, %s212
                $region69: #{bottleneck_forward.5} parent=58 // loop_header_branch
                  %392 = sbr.rel (%p390) target = $region73
                $region70: #{bottleneck_forward.5} parent=58 // loop_body
                  %v396 = vld [vmem:[%s394] sm:%s387]
                  %397 = vst [vmem:[%s395] sm:%s387] %v396
                  %v398 = vld [vmem:[%s394 + $0x4] sm:%s387]
                  %399 = vst [vmem:[%s395 + $0x4] sm:%s387] %v398
                  %v400 = vld [vmem:[%s394 + $0x8] sm:%s387]
                  %401 = vst [vmem:[%s395 + $0x8] sm:%s387] %v400
                  %v402 = vld [vmem:[%s394 + $0xc] sm:%s387]
                  %403 = vst [vmem:[%s395 + $0xc] sm:%s387] %v402
                  %v404 = vld [vmem:[%s394 + $0x10] sm:%s387]
                  %405 = vst [vmem:[%s395 + $0x10] sm:%s387] %v404
                  %v406 = vld [vmem:[%s394 + $0x14] sm:%s387]
                  %407 = vst [vmem:[%s395 + $0x14] sm:%s387] %v406
                  %v408 = vld [vmem:[%s394 + $0x18] sm:%s387]
                  %409 = vst [vmem:[%s395 + $0x18] sm:%s387] %v408
                  %v410 = vld [vmem:[%s394 + $0x1c] sm:%s387]
                  %411 = vst [vmem:[%s395 + $0x1c] sm:%s387] %v410
                  %v412 = vld [vmem:[%s394 + $0x20] sm:%s387]
                  %413 = vst [vmem:[%s395 + $0x20] sm:%s387] %v412
                  %v414 = vld [vmem:[%s394 + $0x24] sm:%s387]
                  %415 = vst [vmem:[%s395 + $0x24] sm:%s387] %v414
                  %v416 = vld [vmem:[%s394 + $0x28] sm:%s387]
                  %417 = vst [vmem:[%s395 + $0x28] sm:%s387] %v416
                  %v418 = vld [vmem:[%s394 + $0x2c] sm:%s387]
                  %419 = vst [vmem:[%s395 + $0x2c] sm:%s387] %v418
                  %v420 = vld [vmem:[%s394 + $0x30] sm:%s387]
                  %421 = vst [vmem:[%s395 + $0x30] sm:%s387] %v420
                  %v422 = vld [vmem:[%s394 + $0x34] sm:%s387]
                  %423 = vst [vmem:[%s395 + $0x34] sm:%s387] %v422
                  %v424 = vld [vmem:[%s394 + $0x38] sm:%s387]
                  %425 = vst [vmem:[%s395 + $0x38] sm:%s387] %v424
                  %v426 = vld [vmem:[%s394 + $0x3c] sm:%s387]
                  %427 = vst [vmem:[%s395 + $0x3c] sm:%s387] %v426
                  %v428 = vld [vmem:[%s394 + $0x40] sm:%s387]
                  %429 = vst [vmem:[%s395 + $0x40] sm:%s387] %v428
                  %v430 = vld [vmem:[%s394 + $0x44] sm:%s387]
                  %431 = vst [vmem:[%s395 + $0x44] sm:%s387] %v430
                  %v432 = vld [vmem:[%s394 + $0x90] sm:%s387]
                  %433 = vst [vmem:[%s395 + $0x48] sm:%s387] %v432
                  %v434 = vld [vmem:[%s394 + $0x94] sm:%s387]
                  %435 = vst [vmem:[%s395 + $0x4c] sm:%s387] %v434
                  %v436 = vld [vmem:[%s394 + $0x98] sm:%s387]
                  %437 = vst [vmem:[%s395 + $0x50] sm:%s387] %v436
                  %v438 = vld [vmem:[%s394 + $0x9c] sm:%s387]
                  %439 = vst [vmem:[%s395 + $0x54] sm:%s387] %v438
                  %v440 = vld [vmem:[%s394 + $0xa0] sm:%s387]
                  %441 = vst [vmem:[%s395 + $0x58] sm:%s387] %v440
                  %v442 = vld [vmem:[%s394 + $0xa4] sm:%s387]
                  %443 = vst [vmem:[%s395 + $0x5c] sm:%s387] %v442
                  %v444 = vld [vmem:[%s394 + $0xa8] sm:%s387]
                  %445 = vst [vmem:[%s395 + $0x60] sm:%s387] %v444
                  %v446 = vld [vmem:[%s394 + $0xac] sm:%s387]
                  %447 = vst [vmem:[%s395 + $0x64] sm:%s387] %v446
                  %v448 = vld [vmem:[%s394 + $0xb0] sm:%s387]
                  %449 = vst [vmem:[%s395 + $0x68] sm:%s387] %v448
                  %v450 = vld [vmem:[%s394 + $0xb4] sm:%s387]
                  %451 = vst [vmem:[%s395 + $0x6c] sm:%s387] %v450
                  %v452 = vld [vmem:[%s394 + $0xb8] sm:%s387]
                  %453 = vst [vmem:[%s395 + $0x70] sm:%s387] %v452
                  %v454 = vld [vmem:[%s394 + $0xbc] sm:%s387]
                  %455 = vst [vmem:[%s395 + $0x74] sm:%s387] %v454
                  %v456 = vld [vmem:[%s394 + $0xc0] sm:%s387]
                  %457 = vst [vmem:[%s395 + $0x78] sm:%s387] %v456
                  %v458 = vld [vmem:[%s394 + $0xc4] sm:%s387]
                  %459 = vst [vmem:[%s395 + $0x7c] sm:%s387] %v458
                  %v460 = vld [vmem:[%s394 + $0xc8] sm:%s387]
                  %461 = vst [vmem:[%s395 + $0x80] sm:%s387] %v460
                  %v462 = vld [vmem:[%s394 + $0xcc] sm:%s387]
                  %463 = vst [vmem:[%s395 + $0x84] sm:%s387] %v462
                  %v464 = vld [vmem:[%s394 + $0xd0] sm:%s387]
                  %465 = vst [vmem:[%s395 + $0x88] sm:%s387] %v464
                  %v466 = vld [vmem:[%s394 + $0xd4] sm:%s387]
                  %467 = vst [vmem:[%s395 + $0x8c] sm:%s387] %v466
                  %v468 = vld [vmem:[%s394 + $0x120] sm:%s387]
                  %469 = vst [vmem:[%s395 + $0x90] sm:%s387] %v468
                  %v470 = vld [vmem:[%s394 + $0x124] sm:%s387]
                  %471 = vst [vmem:[%s395 + $0x94] sm:%s387] %v470
                  %v472 = vld [vmem:[%s394 + $0x128] sm:%s387]
                  %473 = vst [vmem:[%s395 + $0x98] sm:%s387] %v472
                  %v474 = vld [vmem:[%s394 + $0x12c] sm:%s387]
                  %475 = vst [vmem:[%s395 + $0x9c] sm:%s387] %v474
                  %v476 = vld [vmem:[%s394 + $0x130] sm:%s387]
                  %477 = vst [vmem:[%s395 + $0xa0] sm:%s387] %v476
                  %v478 = vld [vmem:[%s394 + $0x134] sm:%s387]
                  %479 = vst [vmem:[%s395 + $0xa4] sm:%s387] %v478
                  %v480 = vld [vmem:[%s394 + $0x138] sm:%s387]
                  %481 = vst [vmem:[%s395 + $0xa8] sm:%s387] %v480
                  %v482 = vld [vmem:[%s394 + $0x13c] sm:%s387]
                  %483 = vst [vmem:[%s395 + $0xac] sm:%s387] %v482
                  %v484 = vld [vmem:[%s394 + $0x140] sm:%s387]
                  %485 = vst [vmem:[%s395 + $0xb0] sm:%s387] %v484
                  %v486 = vld [vmem:[%s394 + $0x144] sm:%s387]
                  %487 = vst [vmem:[%s395 + $0xb4] sm:%s387] %v486
                  %v488 = vld [vmem:[%s394 + $0x148] sm:%s387]
                  %489 = vst [vmem:[%s395 + $0xb8] sm:%s387] %v488
                  %v490 = vld [vmem:[%s394 + $0x14c] sm:%s387]
                  %491 = vst [vmem:[%s395 + $0xbc] sm:%s387] %v490
                  %v492 = vld [vmem:[%s394 + $0x150] sm:%s387]
                  %493 = vst [vmem:[%s395 + $0xc0] sm:%s387] %v492
                  %v494 = vld [vmem:[%s394 + $0x154] sm:%s387]
                  %495 = vst [vmem:[%s395 + $0xc4] sm:%s387] %v494
                  %v496 = vld [vmem:[%s394 + $0x158] sm:%s387]
                  %497 = vst [vmem:[%s395 + $0xc8] sm:%s387] %v496
                  %v498 = vld [vmem:[%s394 + $0x15c] sm:%s387]
                  %499 = vst [vmem:[%s395 + $0xcc] sm:%s387] %v498
                  %v500 = vld [vmem:[%s394 + $0x160] sm:%s387]
                  %501 = vst [vmem:[%s395 + $0xd0] sm:%s387] %v500
                  %v502 = vld [vmem:[%s394 + $0x164] sm:%s387]
                  %503 = vst [vmem:[%s395 + $0xd4] sm:%s387] %v502
                  %v504 = vld [vmem:[%s394 + $0x1b0] sm:%s387]
                  %505 = vst [vmem:[%s395 + $0xd8] sm:%s387] %v504
                  %v506 = vld [vmem:[%s394 + $0x1b4] sm:%s387]
                  %507 = vst [vmem:[%s395 + $0xdc] sm:%s387] %v506
                  %v508 = vld [vmem:[%s394 + $0x1b8] sm:%s387]
                  %509 = vst [vmem:[%s395 + $0xe0] sm:%s387] %v508
                  %v510 = vld [vmem:[%s394 + $0x1bc] sm:%s387]
                  %511 = vst [vmem:[%s395 + $0xe4] sm:%s387] %v510
                  %v512 = vld [vmem:[%s394 + $0x1c0] sm:%s387]
                  %513 = vst [vmem:[%s395 + $0xe8] sm:%s387] %v512
                  %v514 = vld [vmem:[%s394 + $0x1c4] sm:%s387]
                  %515 = vst [vmem:[%s395 + $0xec] sm:%s387] %v514
                  %v516 = vld [vmem:[%s394 + $0x1c8] sm:%s387]
                  %517 = vst [vmem:[%s395 + $0xf0] sm:%s387] %v516
                  %v518 = vld [vmem:[%s394 + $0x1cc] sm:%s387]
                  %519 = vst [vmem:[%s395 + $0xf4] sm:%s387] %v518
                  %v520 = vld [vmem:[%s394 + $0x1d0] sm:%s387]
                  %521 = vst [vmem:[%s395 + $0xf8] sm:%s387] %v520
                  %v522 = vld [vmem:[%s394 + $0x1d4] sm:%s387]
                  %523 = vst [vmem:[%s395 + $0xfc] sm:%s387] %v522
                  %v524 = vld [vmem:[%s394 + $0x1d8] sm:%s387]
                  %525 = vst [vmem:[%s395 + $0x100] sm:%s387] %v524
                  %v526 = vld [vmem:[%s394 + $0x1dc] sm:%s387]
                  %527 = vst [vmem:[%s395 + $0x104] sm:%s387] %v526
                  %v528 = vld [vmem:[%s394 + $0x1e0] sm:%s387]
                  %529 = vst [vmem:[%s395 + $0x108] sm:%s387] %v528
                  %v530 = vld [vmem:[%s394 + $0x1e4] sm:%s387]
                  %531 = vst [vmem:[%s395 + $0x10c] sm:%s387] %v530
                  %v532 = vld [vmem:[%s394 + $0x1e8] sm:%s387]
                  %533 = vst [vmem:[%s395 + $0x110] sm:%s387] %v532
                  %v534 = vld [vmem:[%s394 + $0x1ec] sm:%s387]
                  %535 = vst [vmem:[%s395 + $0x114] sm:%s387] %v534
                  %v536 = vld [vmem:[%s394 + $0x1f0] sm:%s387]
                  %537 = vst [vmem:[%s395 + $0x118] sm:%s387] %v536
                  %v538 = vld [vmem:[%s394 + $0x1f4] sm:%s387]
                  %539 = vst [vmem:[%s395 + $0x11c] sm:%s387] %v538
                $region71: #{bottleneck_forward.5} parent=58 // loop_footer
                  %s393 = sadd.s32 1, %s389
                $region72: #{bottleneck_forward.5} parent=58 // loop_footer_branch
                  %388 = sbr.rel target = $region68
                $region73: #{bottleneck_forward.5} parent=58 // loop_exit
                  _
              $region59: #{bottleneck_forward.5} parent=43 // pred_fallthru
                _
            $region44: #{bottleneck_forward.5} parent=39 // pred_fallthru
              _
            // Predicated region
            $region45: #{bottleneck_forward.5} parent=39 // pred_check
              _
            $region46: #{bottleneck_forward.5} parent=39 // pred_check_branch
              %221 = sbr.rel (0) target = $region48
            $region47: #{bottleneck_forward.5} parent=39 // pred_region
              %s223 = ssub.s32 16, 1
              loop: start=0, step=1, limit=1
              $region49: #{bottleneck_forward.5} parent=47 // loop_pre_header
                _
              $region50: #{bottleneck_forward.5} parent=47 // loop_header
                %s225 = sphi 0, %s229
                %p226 = scmp.ge.s32.totalorder %s225, 1
                %s230 = sphi %s215, %s215
                %s231 = sphi %s212, %s212
              $region51: #{bottleneck_forward.5} parent=47 // loop_header_branch
                %228 = sbr.rel (%p226) target = $region55
              $region52: #{bottleneck_forward.5} parent=47 // loop_body
                %v232 = vld [vmem:[%s230] sm:%s223]
                %233 = vst [vmem:[%s231] sm:%s223] %v232
                %v234 = vld [vmem:[%s230 + $0x4] sm:%s223]
                %235 = vst [vmem:[%s231 + $0x4] sm:%s223] %v234
                %v236 = vld [vmem:[%s230 + $0x8] sm:%s223]
                %237 = vst [vmem:[%s231 + $0x8] sm:%s223] %v236
                %v238 = vld [vmem:[%s230 + $0xc] sm:%s223]
                %239 = vst [vmem:[%s231 + $0xc] sm:%s223] %v238
                %v240 = vld [vmem:[%s230 + $0x10] sm:%s223]
                %241 = vst [vmem:[%s231 + $0x10] sm:%s223] %v240
                %v242 = vld [vmem:[%s230 + $0x14] sm:%s223]
                %243 = vst [vmem:[%s231 + $0x14] sm:%s223] %v242
                %v244 = vld [vmem:[%s230 + $0x18] sm:%s223]
                %245 = vst [vmem:[%s231 + $0x18] sm:%s223] %v244
                %v246 = vld [vmem:[%s230 + $0x1c] sm:%s223]
                %247 = vst [vmem:[%s231 + $0x1c] sm:%s223] %v246
                %v248 = vld [vmem:[%s230 + $0x20] sm:%s223]
                %249 = vst [vmem:[%s231 + $0x20] sm:%s223] %v248
                %v250 = vld [vmem:[%s230 + $0x24] sm:%s223]
                %251 = vst [vmem:[%s231 + $0x24] sm:%s223] %v250
                %v252 = vld [vmem:[%s230 + $0x28] sm:%s223]
                %253 = vst [vmem:[%s231 + $0x28] sm:%s223] %v252
                %v254 = vld [vmem:[%s230 + $0x2c] sm:%s223]
                %255 = vst [vmem:[%s231 + $0x2c] sm:%s223] %v254
                %v256 = vld [vmem:[%s230 + $0x30] sm:%s223]
                %257 = vst [vmem:[%s231 + $0x30] sm:%s223] %v256
                %v258 = vld [vmem:[%s230 + $0x34] sm:%s223]
                %259 = vst [vmem:[%s231 + $0x34] sm:%s223] %v258
                %v260 = vld [vmem:[%s230 + $0x38] sm:%s223]
                %261 = vst [vmem:[%s231 + $0x38] sm:%s223] %v260
                %v262 = vld [vmem:[%s230 + $0x3c] sm:%s223]
                %263 = vst [vmem:[%s231 + $0x3c] sm:%s223] %v262
                %v264 = vld [vmem:[%s230 + $0x40] sm:%s223]
                %265 = vst [vmem:[%s231 + $0x40] sm:%s223] %v264
                %v266 = vld [vmem:[%s230 + $0x44] sm:%s223]
                %267 = vst [vmem:[%s231 + $0x44] sm:%s223] %v266
                %v268 = vld [vmem:[%s230 + $0x90] sm:%s223]
                %269 = vst [vmem:[%s231 + $0x48] sm:%s223] %v268
                %v270 = vld [vmem:[%s230 + $0x94] sm:%s223]
                %271 = vst [vmem:[%s231 + $0x4c] sm:%s223] %v270
                %v272 = vld [vmem:[%s230 + $0x98] sm:%s223]
                %273 = vst [vmem:[%s231 + $0x50] sm:%s223] %v272
                %v274 = vld [vmem:[%s230 + $0x9c] sm:%s223]
                %275 = vst [vmem:[%s231 + $0x54] sm:%s223] %v274
                %v276 = vld [vmem:[%s230 + $0xa0] sm:%s223]
                %277 = vst [vmem:[%s231 + $0x58] sm:%s223] %v276
                %v278 = vld [vmem:[%s230 + $0xa4] sm:%s223]
                %279 = vst [vmem:[%s231 + $0x5c] sm:%s223] %v278
                %v280 = vld [vmem:[%s230 + $0xa8] sm:%s223]
                %281 = vst [vmem:[%s231 + $0x60] sm:%s223] %v280
                %v282 = vld [vmem:[%s230 + $0xac] sm:%s223]
                %283 = vst [vmem:[%s231 + $0x64] sm:%s223] %v282
                %v284 = vld [vmem:[%s230 + $0xb0] sm:%s223]
                %285 = vst [vmem:[%s231 + $0x68] sm:%s223] %v284
                %v286 = vld [vmem:[%s230 + $0xb4] sm:%s223]
                %287 = vst [vmem:[%s231 + $0x6c] sm:%s223] %v286
                %v288 = vld [vmem:[%s230 + $0xb8] sm:%s223]
                %289 = vst [vmem:[%s231 + $0x70] sm:%s223] %v288
                %v290 = vld [vmem:[%s230 + $0xbc] sm:%s223]
                %291 = vst [vmem:[%s231 + $0x74] sm:%s223] %v290
                %v292 = vld [vmem:[%s230 + $0xc0] sm:%s223]
                %293 = vst [vmem:[%s231 + $0x78] sm:%s223] %v292
                %v294 = vld [vmem:[%s230 + $0xc4] sm:%s223]
                %295 = vst [vmem:[%s231 + $0x7c] sm:%s223] %v294
                %v296 = vld [vmem:[%s230 + $0xc8] sm:%s223]
                %297 = vst [vmem:[%s231 + $0x80] sm:%s223] %v296
                %v298 = vld [vmem:[%s230 + $0xcc] sm:%s223]
                %299 = vst [vmem:[%s231 + $0x84] sm:%s223] %v298
                %v300 = vld [vmem:[%s230 + $0xd0] sm:%s223]
                %301 = vst [vmem:[%s231 + $0x88] sm:%s223] %v300
                %v302 = vld [vmem:[%s230 + $0xd4] sm:%s223]
                %303 = vst [vmem:[%s231 + $0x8c] sm:%s223] %v302
                %v304 = vld [vmem:[%s230 + $0x120] sm:%s223]
                %305 = vst [vmem:[%s231 + $0x90] sm:%s223] %v304
                %v306 = vld [vmem:[%s230 + $0x124] sm:%s223]
                %307 = vst [vmem:[%s231 + $0x94] sm:%s223] %v306
                %v308 = vld [vmem:[%s230 + $0x128] sm:%s223]
                %309 = vst [vmem:[%s231 + $0x98] sm:%s223] %v308
                %v310 = vld [vmem:[%s230 + $0x12c] sm:%s223]
                %311 = vst [vmem:[%s231 + $0x9c] sm:%s223] %v310
                %v312 = vld [vmem:[%s230 + $0x130] sm:%s223]
                %313 = vst [vmem:[%s231 + $0xa0] sm:%s223] %v312
                %v314 = vld [vmem:[%s230 + $0x134] sm:%s223]
                %315 = vst [vmem:[%s231 + $0xa4] sm:%s223] %v314
                %v316 = vld [vmem:[%s230 + $0x138] sm:%s223]
                %317 = vst [vmem:[%s231 + $0xa8] sm:%s223] %v316
                %v318 = vld [vmem:[%s230 + $0x13c] sm:%s223]
                %319 = vst [vmem:[%s231 + $0xac] sm:%s223] %v318
                %v320 = vld [vmem:[%s230 + $0x140] sm:%s223]
                %321 = vst [vmem:[%s231 + $0xb0] sm:%s223] %v320
                %v322 = vld [vmem:[%s230 + $0x144] sm:%s223]
                %323 = vst [vmem:[%s231 + $0xb4] sm:%s223] %v322
                %v324 = vld [vmem:[%s230 + $0x148] sm:%s223]
                %325 = vst [vmem:[%s231 + $0xb8] sm:%s223] %v324
                %v326 = vld [vmem:[%s230 + $0x14c] sm:%s223]
                %327 = vst [vmem:[%s231 + $0xbc] sm:%s223] %v326
                %v328 = vld [vmem:[%s230 + $0x150] sm:%s223]
                %329 = vst [vmem:[%s231 + $0xc0] sm:%s223] %v328
                %v330 = vld [vmem:[%s230 + $0x154] sm:%s223]
                %331 = vst [vmem:[%s231 + $0xc4] sm:%s223] %v330
                %v332 = vld [vmem:[%s230 + $0x158] sm:%s223]
                %333 = vst [vmem:[%s231 + $0xc8] sm:%s223] %v332
                %v334 = vld [vmem:[%s230 + $0x15c] sm:%s223]
                %335 = vst [vmem:[%s231 + $0xcc] sm:%s223] %v334
                %v336 = vld [vmem:[%s230 + $0x160] sm:%s223]
                %337 = vst [vmem:[%s231 + $0xd0] sm:%s223] %v336
                %v338 = vld [vmem:[%s230 + $0x164] sm:%s223]
                %339 = vst [vmem:[%s231 + $0xd4] sm:%s223] %v338
                %v340 = vld [vmem:[%s230 + $0x1b0] sm:%s223]
                %341 = vst [vmem:[%s231 + $0xd8] sm:%s223] %v340
                %v342 = vld [vmem:[%s230 + $0x1b4] sm:%s223]
                %343 = vst [vmem:[%s231 + $0xdc] sm:%s223] %v342
                %v344 = vld [vmem:[%s230 + $0x1b8] sm:%s223]
                %345 = vst [vmem:[%s231 + $0xe0] sm:%s223] %v344
                %v346 = vld [vmem:[%s230 + $0x1bc] sm:%s223]
                %347 = vst [vmem:[%s231 + $0xe4] sm:%s223] %v346
                %v348 = vld [vmem:[%s230 + $0x1c0] sm:%s223]
                %349 = vst [vmem:[%s231 + $0xe8] sm:%s223] %v348
                %v350 = vld [vmem:[%s230 + $0x1c4] sm:%s223]
                %351 = vst [vmem:[%s231 + $0xec] sm:%s223] %v350
                %v352 = vld [vmem:[%s230 + $0x1c8] sm:%s223]
                %353 = vst [vmem:[%s231 + $0xf0] sm:%s223] %v352
                %v354 = vld [vmem:[%s230 + $0x1cc] sm:%s223]
                %355 = vst [vmem:[%s231 + $0xf4] sm:%s223] %v354
                %v356 = vld [vmem:[%s230 + $0x1d0] sm:%s223]
                %357 = vst [vmem:[%s231 + $0xf8] sm:%s223] %v356
                %v358 = vld [vmem:[%s230 + $0x1d4] sm:%s223]
                %359 = vst [vmem:[%s231 + $0xfc] sm:%s223] %v358
                %v360 = vld [vmem:[%s230 + $0x1d8] sm:%s223]
                %361 = vst [vmem:[%s231 + $0x100] sm:%s223] %v360
                %v362 = vld [vmem:[%s230 + $0x1dc] sm:%s223]
                %363 = vst [vmem:[%s231 + $0x104] sm:%s223] %v362
                %v364 = vld [vmem:[%s230 + $0x1e0] sm:%s223]
                %365 = vst [vmem:[%s231 + $0x108] sm:%s223] %v364
                %v366 = vld [vmem:[%s230 + $0x1e4] sm:%s223]
                %367 = vst [vmem:[%s231 + $0x10c] sm:%s223] %v366
                %v368 = vld [vmem:[%s230 + $0x1e8] sm:%s223]
                %369 = vst [vmem:[%s231 + $0x110] sm:%s223] %v368
                %v370 = vld [vmem:[%s230 + $0x1ec] sm:%s223]
                %371 = vst [vmem:[%s231 + $0x114] sm:%s223] %v370
                %v372 = vld [vmem:[%s230 + $0x1f0] sm:%s223]
                %373 = vst [vmem:[%s231 + $0x118] sm:%s223] %v372
                %v374 = vld [vmem:[%s230 + $0x1f4] sm:%s223]
                %375 = vst [vmem:[%s231 + $0x11c] sm:%s223] %v374
              $region53: #{bottleneck_forward.5} parent=47 // loop_footer
                %s229 = sadd.s32 1, %s225
              $region54: #{bottleneck_forward.5} parent=47 // loop_footer_branch
                %224 = sbr.rel target = $region50
              $region55: #{bottleneck_forward.5} parent=47 // loop_exit
                _
            $region48: #{bottleneck_forward.5} parent=39 // pred_fallthru
              _
          $region40: #{bottleneck_forward.5} parent=35 // pred_fallthru
            _
          %540 = vnop
        $region36: #{bottleneck_forward.5} parent=31 // pred_fallthru
          _
      $region32: #{bottleneck_forward.5} parent=5 // pred_fallthru
        _
      %p541 = scmp.le.s32.totalorder 1, %s13
      %p542 = scmp.lt.s32.totalorder %s13, 3
      %p543 = pnand %p541, %p542
      %p544 = pneg %p543
      // Predicated region
      $region74: #{bottleneck_forward.5} parent=5 // pred_check
        _
      $region75: #{bottleneck_forward.5} parent=5 // pred_check_branch
        %546 = sbr.rel (%p543) target = $region77
      $region76: #{bottleneck_forward.5} parent=5 // pred_region
        %s547 = ssub.s32 %s13, 1
        %s548 = sand.u32 %s26, 1
        %s549 = sand.u32 %s26, 1
        %s550 = smul.addr %s549, 288
        %s551 = scalar_lea.vmem [#allocation2], %s550
        // Predicated region
        $region78: #{bottleneck_forward.5} parent=76 // pred_check
          %p552 = pneg %p39
        $region79: #{bottleneck_forward.5} parent=76 // pred_check_branch
          %554 = sbr.rel (%p552) target = $region81
        $region80: #{bottleneck_forward.5} parent=76 // pred_region
          _
        $region81: #{bottleneck_forward.5} parent=76 // pred_fallthru
          _
        %s555 = sand.u32 %s26, 1
        %s556 = sand.u32 %s26, 1
        %s557 = smul.addr %s556, 288
        %s558 = scalar_lea.vmem [#allocation2], %s557
        %p559 = pneg %p39
        %p560 = pneg %p36
        %p561 = pneg %p60
        %p562 = pneg %p57
        %p563 = pneg %p81
        %p564 = pneg %p78
        %p565 = pneg %p102
        %p566 = pneg %p99
        %p567 = pneg %p123
        %p568 = pneg %p120
        %p569 = pneg %p149
        %p570 = pneg %p146
        %p571 = scmp.lt.s32.totalorder %s18, 1
        %s572 = scalar_select %p571, %s18, 1
        %s573 = smul.addr %s572, 8
        %s574 = smul.addr %s573, 4
        %s575 = scalar_lea.vmem %s5, %s574
        %p576 = pneg %p175
        %p577 = pneg %p172
        %p578 = scmp.lt.s32.totalorder %s18, 1
        %s579 = scalar_select %p578, %s18, 1
        %s580 = smul.addr %s579, 2
        %s581 = scalar_lea.vmem %s6, %s580
        %p582 = scmp.lt.s32.totalorder %s18, 1
        %s583 = scalar_select %p582, %s18, 1
        %s584 = smul.addr %s583, 8
        %s585 = smul.addr %s584, 4
        %s586 = scalar_lea.vmem %s5, %s585
        %p587 = scmp.lt.s32.totalorder %s18, 1
        %s588 = scalar_select %p587, %s18, 1
        %s589 = smul.addr %s588, 2
        %s590 = scalar_lea.vmem %s6, %s589
        %v592 = vld [vmem:[%s551] sm:$0xf]
        %v593 = vld [vmem:[%s551 + $0x4] sm:$0x1]
        %v594 = vld [vmem:[%s551 + $0x8] sm:$0xf]
        %v595 = vld [vmem:[%s551 + $0xc] sm:$0x1]
        %v596 = vld [vmem:[%s551 + $0x10] sm:$0xf]
        %v597 = vld [vmem:[%s551 + $0x14] sm:$0x1]
        %v598 = vld [vmem:[%s551 + $0x18] sm:$0xf]
        %v599 = vld [vmem:[%s551 + $0x1c] sm:$0x1]
        %v600 = vld [vmem:[%s551 + $0x20] sm:$0xf]
        %v601 = vld [vmem:[%s551 + $0x24] sm:$0x1]
        %v602 = vld [vmem:[%s551 + $0x28] sm:$0xf]
        %v603 = vld [vmem:[%s551 + $0x2c] sm:$0x1]
        %v604 = vld [vmem:[%s551 + $0x30] sm:$0xf]
        %v605 = vld [vmem:[%s551 + $0x34] sm:$0x1]
        %v606 = vld [vmem:[%s551 + $0x38] sm:$0xf]
        %v607 = vld [vmem:[%s551 + $0x3c] sm:$0x1]
        %v608 = vld [vmem:[%s551 + $0x40] sm:$0xf]
        %v609 = vld [vmem:[%s551 + $0x44] sm:$0x1]
        %v610 = vld [vmem:[%s551 + $0x48] sm:$0xf]
        %v611 = vld [vmem:[%s551 + $0x4c] sm:$0x1]
        %v612 = vld [vmem:[%s551 + $0x50] sm:$0xf]
        %v613 = vld [vmem:[%s551 + $0x54] sm:$0x1]
        %v614 = vld [vmem:[%s551 + $0x58] sm:$0xf]
        %v615 = vld [vmem:[%s551 + $0x5c] sm:$0x1]
        %v616 = vld [vmem:[%s551 + $0x60] sm:$0xf]
        %v617 = vld [vmem:[%s551 + $0x64] sm:$0x1]
        %v618 = vld [vmem:[%s551 + $0x68] sm:$0xf]
        %v619 = vld [vmem:[%s551 + $0x6c] sm:$0x1]
        %v620 = vld [vmem:[%s551 + $0x70] sm:$0xf]
        %v621 = vld [vmem:[%s551 + $0x74] sm:$0x1]
        %v622 = vld [vmem:[%s551 + $0x78] sm:$0xf]
        %v623 = vld [vmem:[%s551 + $0x7c] sm:$0x1]
        %v624 = vld [vmem:[%s551 + $0x80] sm:$0xf]
        %v625 = vld [vmem:[%s551 + $0x84] sm:$0x1]
        %v626 = vld [vmem:[%s551 + $0x88] sm:$0xf]
        %v627 = vld [vmem:[%s551 + $0x8c] sm:$0x1]
        %v628 = vld [vmem:[%s551 + $0x90] sm:$0xf]
        %v629 = vld [vmem:[%s551 + $0x94] sm:$0x1]
        %v630 = vld [vmem:[%s551 + $0x98] sm:$0xf]
        %v631 = vld [vmem:[%s551 + $0x9c] sm:$0x1]
        %v632 = vld [vmem:[%s551 + $0xa0] sm:$0xf]
        %v633 = vld [vmem:[%s551 + $0xa4] sm:$0x1]
        %v634 = vld [vmem:[%s551 + $0xa8] sm:$0xf]
        %v635 = vld [vmem:[%s551 + $0xac] sm:$0x1]
        %v636 = vld [vmem:[%s551 + $0xb0] sm:$0xf]
        %v637 = vld [vmem:[%s551 + $0xb4] sm:$0x1]
        %v638 = vld [vmem:[%s551 + $0xb8] sm:$0xf]
        %v639 = vld [vmem:[%s551 + $0xbc] sm:$0x1]
        %v640 = vld [vmem:[%s551 + $0xc0] sm:$0xf]
        %v641 = vld [vmem:[%s551 + $0xc4] sm:$0x1]
        %v642 = vld [vmem:[%s551 + $0xc8] sm:$0xf]
        %v643 = vld [vmem:[%s551 + $0xcc] sm:$0x1]
        %v644 = vld [vmem:[%s551 + $0xd8] sm:$0xf]
        %v645 = vld [vmem:[%s551 + $0xdc] sm:$0x1]
        %v646 = vld [vmem:[%s551 + $0xe0] sm:$0xf]
        %v647 = vld [vmem:[%s551 + $0xe4] sm:$0x1]
        %v648 = vld [vmem:[%s551 + $0xe8] sm:$0xf]
        %v649 = vld [vmem:[%s551 + $0xec] sm:$0x1]
        %v650 = vld [vmem:[%s551 + $0xf0] sm:$0xf]
        %v651 = vld [vmem:[%s551 + $0xf4] sm:$0x1]
        %v652 = vld [vmem:[%s551 + $0xf8] sm:$0xf]
        %v653 = vld [vmem:[%s551 + $0xfc] sm:$0x1]
        %v654 = vld [vmem:[%s551 + $0x100] sm:$0xf]
        %v655 = vld [vmem:[%s551 + $0x104] sm:$0x1]
        %v656 = vld [vmem:[%s551 + $0x108] sm:$0xf]
        %v657 = vld [vmem:[%s551 + $0x10c] sm:$0x1]
        %v658 = vld [vmem:[%s551 + $0x110] sm:$0xf]
        %v659 = vld [vmem:[%s551 + $0x114] sm:$0x1]
        %v660 = vunpack.c.l.bf16 %v592
        %v661 = vunpack.c.l.bf16 %v593
        %v662 = vunpack.c.l.bf16 %v594
        %v663 = vunpack.c.l.bf16 %v595
        %v664 = vunpack.c.l.bf16 %v596
        %v665 = vunpack.c.l.bf16 %v597
        %v666 = vunpack.c.l.bf16 %v598
        %v667 = vunpack.c.l.bf16 %v599
        %v668 = vunpack.c.l.bf16 %v600
        %v669 = vunpack.c.l.bf16 %v601
        %v670 = vunpack.c.l.bf16 %v602
        %v671 = vunpack.c.l.bf16 %v603
        %v672 = vunpack.c.l.bf16 %v604
        %v673 = vunpack.c.l.bf16 %v605
        %v674 = vunpack.c.l.bf16 %v606
        %v675 = vunpack.c.l.bf16 %v607
        %v676 = vunpack.c.l.bf16 %v608
        %v677 = vunpack.c.l.bf16 %v609
        %v678 = vunpack.c.l.bf16 %v610
        %v679 = vunpack.c.l.bf16 %v611
        %v680 = vunpack.c.l.bf16 %v612
        %v681 = vunpack.c.l.bf16 %v613
        %v682 = vunpack.c.l.bf16 %v614
        %v683 = vunpack.c.l.bf16 %v615
        %v684 = vunpack.c.l.bf16 %v616
        %v685 = vunpack.c.l.bf16 %v617
        %v686 = vunpack.c.l.bf16 %v618
        %v687 = vunpack.c.l.bf16 %v619
        %v688 = vunpack.c.l.bf16 %v620
        %v689 = vunpack.c.l.bf16 %v621
        %v690 = vunpack.c.l.bf16 %v622
        %v691 = vunpack.c.l.bf16 %v623
        %v692 = vunpack.c.l.bf16 %v624
        %v693 = vunpack.c.l.bf16 %v625
        %v694 = vunpack.c.l.bf16 %v626
        %v695 = vunpack.c.l.bf16 %v627
        %v696 = vunpack.c.l.bf16 %v628
        %v697 = vunpack.c.l.bf16 %v629
        %v698 = vunpack.c.l.bf16 %v630
        %v699 = vunpack.c.l.bf16 %v631
        %v700 = vunpack.c.l.bf16 %v632
        %v701 = vunpack.c.l.bf16 %v633
        %v702 = vunpack.c.l.bf16 %v634
        %v703 = vunpack.c.l.bf16 %v635
        %v704 = vunpack.c.l.bf16 %v636
        %v705 = vunpack.c.l.bf16 %v637
        %v706 = vunpack.c.l.bf16 %v638
        %v707 = vunpack.c.l.bf16 %v639
        %v708 = vunpack.c.l.bf16 %v640
        %v709 = vunpack.c.l.bf16 %v641
        %v710 = vunpack.c.l.bf16 %v642
        %v711 = vunpack.c.l.bf16 %v643
        %v712 = vunpack.c.l.bf16 %v644
        %v713 = vunpack.c.l.bf16 %v645
        %v714 = vunpack.c.l.bf16 %v646
        %v715 = vunpack.c.l.bf16 %v647
        %v716 = vunpack.c.l.bf16 %v648
        %v717 = vunpack.c.l.bf16 %v649
        %v718 = vunpack.c.l.bf16 %v650
        %v719 = vunpack.c.l.bf16 %v651
        %v720 = vunpack.c.l.bf16 %v652
        %v721 = vunpack.c.l.bf16 %v653
        %v722 = vunpack.c.l.bf16 %v654
        %v723 = vunpack.c.l.bf16 %v655
        %v724 = vunpack.c.l.bf16 %v656
        %v725 = vunpack.c.l.bf16 %v657
        %v726 = vunpack.c.l.bf16 %v658
        %v727 = vunpack.c.l.bf16 %v659
        %v728 = vld [vmem:[%s2] sm:$0x1]
        %v730 = vlaneseq
        %v731 = vshrl.u32 %v730, 7
        %v732 = vsub.s32 0, %v731
        %v733 = vrot.slane %v728, %v732
        %v735 = vmul.f32 %v660, %v733
        %v736 = vmul.f32 %v661, %v733
        %v737 = vmul.f32 %v662, %v733
        %v738 = vmul.f32 %v663, %v733
        %v739 = vmul.f32 %v664, %v733
        %v740 = vmul.f32 %v665, %v733
        %v741 = vmul.f32 %v666, %v733
        %v742 = vmul.f32 %v667, %v733
        %v743 = vmul.f32 %v668, %v733
        %v744 = vmul.f32 %v669, %v733
        %v745 = vmul.f32 %v670, %v733
        %v746 = vmul.f32 %v671, %v733
        %v747 = vmul.f32 %v672, %v733
        %v748 = vmul.f32 %v673, %v733
        %v749 = vmul.f32 %v674, %v733
        %v750 = vmul.f32 %v675, %v733
        %v751 = vmul.f32 %v676, %v733
        %v752 = vmul.f32 %v677, %v733
        %v753 = vmul.f32 %v678, %v733
        %v754 = vmul.f32 %v679, %v733
        %v755 = vmul.f32 %v680, %v733
        %v756 = vmul.f32 %v681, %v733
        %v757 = vmul.f32 %v682, %v733
        %v758 = vmul.f32 %v683, %v733
        %v759 = vmul.f32 %v684, %v733
        %v760 = vmul.f32 %v685, %v733
        %v761 = vmul.f32 %v686, %v733
        %v762 = vmul.f32 %v687, %v733
        %v763 = vmul.f32 %v688, %v733
        %v764 = vmul.f32 %v689, %v733
        %v765 = vmul.f32 %v690, %v733
        %v766 = vmul.f32 %v691, %v733
        %v767 = vmul.f32 %v692, %v733
        %v768 = vmul.f32 %v693, %v733
        %v769 = vmul.f32 %v694, %v733
        %v770 = vmul.f32 %v695, %v733
        %v771 = vmul.f32 %v696, %v733
        %v772 = vmul.f32 %v697, %v733
        %v773 = vmul.f32 %v698, %v733
        %v774 = vmul.f32 %v699, %v733
        %v775 = vmul.f32 %v700, %v733
        %v776 = vmul.f32 %v701, %v733
        %v777 = vmul.f32 %v702, %v733
        %v778 = vmul.f32 %v703, %v733
        %v779 = vmul.f32 %v704, %v733
        %v780 = vmul.f32 %v705, %v733
        %v781 = vmul.f32 %v706, %v733
        %v782 = vmul.f32 %v707, %v733
        %v783 = vmul.f32 %v708, %v733
        %v784 = vmul.f32 %v709, %v733
        %v785 = vmul.f32 %v710, %v733
        %v786 = vmul.f32 %v711, %v733
        %v787 = vmul.f32 %v712, %v733
        %v788 = vmul.f32 %v713, %v733
        %v789 = vmul.f32 %v714, %v733
        %v790 = vmul.f32 %v715, %v733
        %v791 = vmul.f32 %v716, %v733
        %v792 = vmul.f32 %v717, %v733
        %v793 = vmul.f32 %v718, %v733
        %v794 = vmul.f32 %v719, %v733
        %v795 = vmul.f32 %v720, %v733
        %v796 = vmul.f32 %v721, %v733
        %v797 = vmul.f32 %v722, %v733
        %v798 = vmul.f32 %v723, %v733
        %v799 = vmul.f32 %v724, %v733
        %v800 = vmul.f32 %v725, %v733
        %v801 = vmul.f32 %v726, %v733
        %v802 = vmul.f32 %v727, %v733
        %v803 = vld [vmem:[%s3] sm:$0x1]
        %v805 = vlaneseq
        %v806 = vshrl.u32 %v805, 7
        %v807 = vsub.s32 0, %v806
        %v808 = vrot.slane %v803, %v807
        %v810 = vadd.f32 %v735, %v808
        %v811 = vadd.f32 %v736, %v808
        %v812 = vadd.f32 %v737, %v808
        %v813 = vadd.f32 %v738, %v808
        %v814 = vadd.f32 %v739, %v808
        %v815 = vadd.f32 %v740, %v808
        %v816 = vadd.f32 %v741, %v808
        %v817 = vadd.f32 %v742, %v808
        %v818 = vadd.f32 %v743, %v808
        %v819 = vadd.f32 %v744, %v808
        %v820 = vadd.f32 %v745, %v808
        %v821 = vadd.f32 %v746, %v808
        %v822 = vadd.f32 %v747, %v808
        %v823 = vadd.f32 %v748, %v808
        %v824 = vadd.f32 %v749, %v808
        %v825 = vadd.f32 %v750, %v808
        %v826 = vadd.f32 %v751, %v808
        %v827 = vadd.f32 %v752, %v808
        %v828 = vadd.f32 %v753, %v808
        %v829 = vadd.f32 %v754, %v808
        %v830 = vadd.f32 %v755, %v808
        %v831 = vadd.f32 %v756, %v808
        %v832 = vadd.f32 %v757, %v808
        %v833 = vadd.f32 %v758, %v808
        %v834 = vadd.f32 %v759, %v808
        %v835 = vadd.f32 %v760, %v808
        %v836 = vadd.f32 %v761, %v808
        %v837 = vadd.f32 %v762, %v808
        %v838 = vadd.f32 %v763, %v808
        %v839 = vadd.f32 %v764, %v808
        %v840 = vadd.f32 %v765, %v808
        %v841 = vadd.f32 %v766, %v808
        %v842 = vadd.f32 %v767, %v808
        %v843 = vadd.f32 %v768, %v808
        %v844 = vadd.f32 %v769, %v808
        %v845 = vadd.f32 %v770, %v808
        %v846 = vadd.f32 %v771, %v808
        %v847 = vadd.f32 %v772, %v808
        %v848 = vadd.f32 %v773, %v808
        %v849 = vadd.f32 %v774, %v808
        %v850 = vadd.f32 %v775, %v808
        %v851 = vadd.f32 %v776, %v808
        %v852 = vadd.f32 %v777, %v808
        %v853 = vadd.f32 %v778, %v808
        %v854 = vadd.f32 %v779, %v808
        %v855 = vadd.f32 %v780, %v808
        %v856 = vadd.f32 %v781, %v808
        %v857 = vadd.f32 %v782, %v808
        %v858 = vadd.f32 %v783, %v808
        %v859 = vadd.f32 %v784, %v808
        %v860 = vadd.f32 %v785, %v808
        %v861 = vadd.f32 %v786, %v808
        %v862 = vadd.f32 %v787, %v808
        %v863 = vadd.f32 %v788, %v808
        %v864 = vadd.f32 %v789, %v808
        %v865 = vadd.f32 %v790, %v808
        %v866 = vadd.f32 %v791, %v808
        %v867 = vadd.f32 %v792, %v808
        %v868 = vadd.f32 %v793, %v808
        %v869 = vadd.f32 %v794, %v808
        %v870 = vadd.f32 %v795, %v808
        %v871 = vadd.f32 %v796, %v808
        %v872 = vadd.f32 %v797, %v808
        %v873 = vadd.f32 %v798, %v808
        %v874 = vadd.f32 %v799, %v808
        %v875 = vadd.f32 %v800, %v808
        %v876 = vadd.f32 %v801, %v808
        %v877 = vadd.f32 %v802, %v808
        %v878 = vmax.f32 %v810, 0.0
        %v879 = vmax.f32 %v811, 0.0
        %v880 = vmax.f32 %v812, 0.0
        %v881 = vmax.f32 %v813, 0.0
        %v882 = vmax.f32 %v814, 0.0
        %v883 = vmax.f32 %v815, 0.0
        %v884 = vmax.f32 %v816, 0.0
        %v885 = vmax.f32 %v817, 0.0
        %v886 = vmax.f32 %v818, 0.0
        %v887 = vmax.f32 %v819, 0.0
        %v888 = vmax.f32 %v820, 0.0
        %v889 = vmax.f32 %v821, 0.0
        %v890 = vmax.f32 %v822, 0.0
        %v891 = vmax.f32 %v823, 0.0
        %v892 = vmax.f32 %v824, 0.0
        %v893 = vmax.f32 %v825, 0.0
        %v894 = vmax.f32 %v826, 0.0
        %v895 = vmax.f32 %v827, 0.0
        %v896 = vmax.f32 %v828, 0.0
        %v897 = vmax.f32 %v829, 0.0
        %v898 = vmax.f32 %v830, 0.0
        %v899 = vmax.f32 %v831, 0.0
        %v900 = vmax.f32 %v832, 0.0
        %v901 = vmax.f32 %v833, 0.0
        %v902 = vmax.f32 %v834, 0.0
        %v903 = vmax.f32 %v835, 0.0
        %v904 = vmax.f32 %v836, 0.0
        %v905 = vmax.f32 %v837, 0.0
        %v906 = vmax.f32 %v838, 0.0
        %v907 = vmax.f32 %v839, 0.0
        %v908 = vmax.f32 %v840, 0.0
        %v909 = vmax.f32 %v841, 0.0
        %v910 = vmax.f32 %v842, 0.0
        %v911 = vmax.f32 %v843, 0.0
        %v912 = vmax.f32 %v844, 0.0
        %v913 = vmax.f32 %v845, 0.0
        %v914 = vmax.f32 %v846, 0.0
        %v915 = vmax.f32 %v847, 0.0
        %v916 = vmax.f32 %v848, 0.0
        %v917 = vmax.f32 %v849, 0.0
        %v918 = vmax.f32 %v850, 0.0
        %v919 = vmax.f32 %v851, 0.0
        %v920 = vmax.f32 %v852, 0.0
        %v921 = vmax.f32 %v853, 0.0
        %v922 = vmax.f32 %v854, 0.0
        %v923 = vmax.f32 %v855, 0.0
        %v924 = vmax.f32 %v856, 0.0
        %v925 = vmax.f32 %v857, 0.0
        %v926 = vmax.f32 %v858, 0.0
        %v927 = vmax.f32 %v859, 0.0
        %v928 = vmax.f32 %v860, 0.0
        %v929 = vmax.f32 %v861, 0.0
        %v930 = vmax.f32 %v862, 0.0
        %v931 = vmax.f32 %v863, 0.0
        %v932 = vmax.f32 %v864, 0.0
        %v933 = vmax.f32 %v865, 0.0
        %v934 = vmax.f32 %v866, 0.0
        %v935 = vmax.f32 %v867, 0.0
        %v936 = vmax.f32 %v868, 0.0
        %v937 = vmax.f32 %v869, 0.0
        %v938 = vmax.f32 %v870, 0.0
        %v939 = vmax.f32 %v871, 0.0
        %v940 = vmax.f32 %v872, 0.0
        %v941 = vmax.f32 %v873, 0.0
        %v942 = vmax.f32 %v874, 0.0
        %v943 = vmax.f32 %v875, 0.0
        %v944 = vmax.f32 %v876, 0.0
        %v945 = vmax.f32 %v877, 0.0
        %v946 = vpack.c.bf16 %v879, %v878
        %v947 = vpack.c.bf16 %v881, %v880
        %v948 = vpack.c.bf16 %v883, %v882
        %v949 = vpack.c.bf16 %v885, %v884
        %v950 = vpack.c.bf16 %v887, %v886
        %v951 = vpack.c.bf16 %v889, %v888
        %v952 = vpack.c.bf16 %v891, %v890
        %v953 = vpack.c.bf16 %v893, %v892
        %v954 = vpack.c.bf16 %v895, %v894
        %v955 = vpack.c.bf16 %v897, %v896
        %v956 = vpack.c.bf16 %v899, %v898
        %v957 = vpack.c.bf16 %v901, %v900
        %v958 = vpack.c.bf16 %v903, %v902
        %v959 = vpack.c.bf16 %v905, %v904
        %v960 = vpack.c.bf16 %v907, %v906
        %v961 = vpack.c.bf16 %v909, %v908
        %v962 = vpack.c.bf16 %v911, %v910
        %v963 = vpack.c.bf16 %v913, %v912
        %v964 = vpack.c.bf16 %v915, %v914
        %v965 = vpack.c.bf16 %v917, %v916
        %v966 = vpack.c.bf16 %v919, %v918
        %v967 = vpack.c.bf16 %v921, %v920
        %v968 = vpack.c.bf16 %v923, %v922
        %v969 = vpack.c.bf16 %v925, %v924
        %v970 = vpack.c.bf16 %v927, %v926
        %v971 = vpack.c.bf16 %v929, %v928
        %v972 = vpack.c.bf16 %v931, %v930
        %v973 = vpack.c.bf16 %v933, %v932
        %v974 = vpack.c.bf16 %v935, %v934
        %v975 = vpack.c.bf16 %v937, %v936
        %v976 = vpack.c.bf16 %v939, %v938
        %v977 = vpack.c.bf16 %v941, %v940
        %v978 = vpack.c.bf16 %v943, %v942
        %v979 = vpack.c.bf16 %v945, %v944
        %v980 = vld [vmem:[%s1] sm:$0xf]
        %v981 = vld [vmem:[%s1 + $0x4] sm:$0x1]
        %v982 = vld [vmem:[%s1 + $0x8] sm:$0xf]
        %v983 = vld [vmem:[%s1 + $0xc] sm:$0x1]
        %v984 = vld [vmem:[%s1 + $0x10] sm:$0xf]
        %v985 = vld [vmem:[%s1 + $0x14] sm:$0x1]
        %v986 = vld [vmem:[%s1 + $0x18] sm:$0xf]
        %v987 = vld [vmem:[%s1 + $0x1c] sm:$0x1]
        %v988 = vld [vmem:[%s1 + $0x20] sm:$0xf]
        %v989 = vld [vmem:[%s1 + $0x24] sm:$0x1]
        %v990 = vld [vmem:[%s1 + $0x28] sm:$0xf]
        %v991 = vld [vmem:[%s1 + $0x2c] sm:$0x1]
        %v992 = vld [vmem:[%s1 + $0x30] sm:$0xf]
        %v993 = vld [vmem:[%s1 + $0x34] sm:$0x1]
        %v994 = vld [vmem:[%s1 + $0x38] sm:$0xf]
        %v995 = vld [vmem:[%s1 + $0x3c] sm:$0x1]
        %v996 = vld [vmem:[%s1 + $0x40] sm:$0xf]
        %v997 = vld [vmem:[%s1 + $0x44] sm:$0x1]
        %v998 = vld [vmem:[%s1 + $0x48] sm:$0xf]
        %v999 = vld [vmem:[%s1 + $0x4c] sm:$0x1]
        %v1000 = vld [vmem:[%s1 + $0x50] sm:$0xf]
        %v1001 = vld [vmem:[%s1 + $0x54] sm:$0x1]
        %v1002 = vld [vmem:[%s1 + $0x58] sm:$0xf]
        %v1003 = vld [vmem:[%s1 + $0x5c] sm:$0x1]
        %v1004 = vld [vmem:[%s1 + $0x60] sm:$0xf]
        %v1005 = vld [vmem:[%s1 + $0x64] sm:$0x1]
        %v1006 = vld [vmem:[%s1 + $0x68] sm:$0xf]
        %v1007 = vld [vmem:[%s1 + $0x6c] sm:$0x1]
        %v1008 = vld [vmem:[%s1 + $0x70] sm:$0xf]
        %v1009 = vld [vmem:[%s1 + $0x74] sm:$0x1]
        %v1010 = vld [vmem:[%s1 + $0x78] sm:$0xf]
        %v1011 = vld [vmem:[%s1 + $0x7c] sm:$0x1]
        %v1012 = vld [vmem:[%s1 + $0x80] sm:$0xf]
        %v1013 = vld [vmem:[%s1 + $0x84] sm:$0x1]
        %v1014 = vld [vmem:[%s1 + $0x88] sm:$0xf]
        %v1015 = vld [vmem:[%s1 + $0x8c] sm:$0x1]
        %v1016 = vld [vmem:[%s1 + $0x90] sm:$0xf]
        %v1017 = vld [vmem:[%s1 + $0x94] sm:$0x1]
        %v1018 = vld [vmem:[%s1 + $0x98] sm:$0xf]
        %v1019 = vld [vmem:[%s1 + $0x9c] sm:$0x1]
        %v1020 = vld [vmem:[%s1 + $0xa0] sm:$0xf]
        %v1021 = vld [vmem:[%s1 + $0xa4] sm:$0x1]
        %v1022 = vld [vmem:[%s1 + $0xa8] sm:$0xf]
        %v1023 = vld [vmem:[%s1 + $0xac] sm:$0x1]
        %v1024 = vld [vmem:[%s1 + $0xb0] sm:$0xf]
        %v1025 = vld [vmem:[%s1 + $0xb4] sm:$0x1]
        %v1026 = vld [vmem:[%s1 + $0xb8] sm:$0xf]
        %v1027 = vld [vmem:[%s1 + $0xbc] sm:$0x1]
        %v1028 = vld [vmem:[%s1 + $0xc0] sm:$0xf]
        %v1029 = vld [vmem:[%s1 + $0xc4] sm:$0x1]
        %v1030 = vld [vmem:[%s1 + $0xc8] sm:$0xf]
        %v1031 = vld [vmem:[%s1 + $0xcc] sm:$0x1]
        %v1032 = vld [vmem:[%s1 + $0xd8] sm:$0xf]
        %v1033 = vld [vmem:[%s1 + $0xdc] sm:$0x1]
        %v1034 = vld [vmem:[%s1 + $0xe0] sm:$0xf]
        %v1035 = vld [vmem:[%s1 + $0xe4] sm:$0x1]
        %v1036 = vld [vmem:[%s1 + $0xe8] sm:$0xf]
        %v1037 = vld [vmem:[%s1 + $0xec] sm:$0x1]
        %v1038 = vld [vmem:[%s1 + $0xf0] sm:$0xf]
        %v1039 = vld [vmem:[%s1 + $0xf4] sm:$0x1]
        %v1040 = vld [vmem:[%s1 + $0xf8] sm:$0xf]
        %v1041 = vld [vmem:[%s1 + $0xfc] sm:$0x1]
        %v1042 = vld [vmem:[%s1 + $0x100] sm:$0xf]
        %v1043 = vld [vmem:[%s1 + $0x104] sm:$0x1]
        %v1044 = vld [vmem:[%s1 + $0x108] sm:$0xf]
        %v1045 = vld [vmem:[%s1 + $0x10c] sm:$0x1]
        %v1046 = vld [vmem:[%s1 + $0x110] sm:$0xf]
        %v1047 = vld [vmem:[%s1 + $0x114] sm:$0x1]
        %v1116 = vunpack.c.l.b16 %v980
        %v1117 = vunpack.c.l.b16 %v981
        %v1118 = vunpack.c.l.b16 %v982
        %v1119 = vunpack.c.l.b16 %v983
        %v1120 = vunpack.c.l.b16 %v984
        %v1121 = vunpack.c.l.b16 %v985
        %v1122 = vunpack.c.l.b16 %v986
        %v1123 = vunpack.c.l.b16 %v987
        %v1124 = vunpack.c.l.b16 %v988
        %v1125 = vunpack.c.l.b16 %v989
        %v1126 = vunpack.c.l.b16 %v990
        %v1127 = vunpack.c.l.b16 %v991
        %v1128 = vunpack.c.l.b16 %v992
        %v1129 = vunpack.c.l.b16 %v993
        %v1130 = vunpack.c.l.b16 %v994
        %v1131 = vunpack.c.l.b16 %v995
        %v1132 = vunpack.c.l.b16 %v996
        %v1133 = vunpack.c.l.b16 %v997
        %v1134 = vunpack.c.l.b16 %v998
        %v1135 = vunpack.c.l.b16 %v999
        %v1136 = vunpack.c.l.b16 %v1000
        %v1137 = vunpack.c.l.b16 %v1001
        %v1138 = vunpack.c.l.b16 %v1002
        %v1139 = vunpack.c.l.b16 %v1003
        %v1140 = vunpack.c.l.b16 %v1004
        %v1141 = vunpack.c.l.b16 %v1005
        %v1142 = vunpack.c.l.b16 %v1006
        %v1143 = vunpack.c.l.b16 %v1007
        %v1144 = vunpack.c.l.b16 %v1008
        %v1145 = vunpack.c.l.b16 %v1009
        %v1146 = vunpack.c.l.b16 %v1010
        %v1147 = vunpack.c.l.b16 %v1011
        %v1148 = vunpack.c.l.b16 %v1012
        %v1149 = vunpack.c.l.b16 %v1013
        %v1150 = vunpack.c.l.b16 %v1014
        %v1151 = vunpack.c.l.b16 %v1015
        %v1152 = vunpack.c.l.b16 %v1016
        %v1153 = vunpack.c.l.b16 %v1017
        %v1154 = vunpack.c.l.b16 %v1018
        %v1155 = vunpack.c.l.b16 %v1019
        %v1156 = vunpack.c.l.b16 %v1020
        %v1157 = vunpack.c.l.b16 %v1021
        %v1158 = vunpack.c.l.b16 %v1022
        %v1159 = vunpack.c.l.b16 %v1023
        %v1160 = vunpack.c.l.b16 %v1024
        %v1161 = vunpack.c.l.b16 %v1025
        %v1162 = vunpack.c.l.b16 %v1026
        %v1163 = vunpack.c.l.b16 %v1027
        %v1164 = vunpack.c.l.b16 %v1028
        %v1165 = vunpack.c.l.b16 %v1029
        %v1166 = vunpack.c.l.b16 %v1030
        %v1167 = vunpack.c.l.b16 %v1031
        %v1168 = vunpack.c.l.b16 %v1032
        %v1169 = vunpack.c.l.b16 %v1033
        %v1170 = vunpack.c.l.b16 %v1034
        %v1171 = vunpack.c.l.b16 %v1035
        %v1172 = vunpack.c.l.b16 %v1036
        %v1173 = vunpack.c.l.b16 %v1037
        %v1174 = vunpack.c.l.b16 %v1038
        %v1175 = vunpack.c.l.b16 %v1039
        %v1176 = vunpack.c.l.b16 %v1040
        %v1177 = vunpack.c.l.b16 %v1041
        %v1178 = vunpack.c.l.b16 %v1042
        %v1179 = vunpack.c.l.b16 %v1043
        %v1180 = vunpack.c.l.b16 %v1044
        %v1181 = vunpack.c.l.b16 %v1045
        %v1182 = vunpack.c.l.b16 %v1046
        %v1183 = vunpack.c.l.b16 %v1047
        %v1184 = vpack.c.b16 %v1117, %v1116
        %v1185 = vpack.c.b16 %v1119, %v1118
        %v1186 = vpack.c.b16 %v1121, %v1120
        %v1187 = vpack.c.b16 %v1123, %v1122
        %v1188 = vpack.c.b16 %v1125, %v1124
        %v1189 = vpack.c.b16 %v1127, %v1126
        %v1190 = vpack.c.b16 %v1129, %v1128
        %v1191 = vpack.c.b16 %v1131, %v1130
        %v1192 = vpack.c.b16 %v1133, %v1132
        %v1193 = vpack.c.b16 %v1135, %v1134
        %v1194 = vpack.c.b16 %v1137, %v1136
        %v1195 = vpack.c.b16 %v1139, %v1138
        %v1196 = vpack.c.b16 %v1141, %v1140
        %v1197 = vpack.c.b16 %v1143, %v1142
        %v1198 = vpack.c.b16 %v1145, %v1144
        %v1199 = vpack.c.b16 %v1147, %v1146
        %v1200 = vpack.c.b16 %v1149, %v1148
        %v1201 = vpack.c.b16 %v1151, %v1150
        %v1202 = vpack.c.b16 %v1153, %v1152
        %v1203 = vpack.c.b16 %v1155, %v1154
        %v1204 = vpack.c.b16 %v1157, %v1156
        %v1205 = vpack.c.b16 %v1159, %v1158
        %v1206 = vpack.c.b16 %v1161, %v1160
        %v1207 = vpack.c.b16 %v1163, %v1162
        %v1208 = vpack.c.b16 %v1165, %v1164
        %v1209 = vpack.c.b16 %v1167, %v1166
        %v1210 = vpack.c.b16 %v1169, %v1168
        %v1211 = vpack.c.b16 %v1171, %v1170
        %v1212 = vpack.c.b16 %v1173, %v1172
        %v1213 = vpack.c.b16 %v1175, %v1174
        %v1214 = vpack.c.b16 %v1177, %v1176
        %v1215 = vpack.c.b16 %v1179, %v1178
        %v1216 = vpack.c.b16 %v1181, %v1180
        %v1217 = vpack.c.b16 %v1183, %v1182
        %v1252 = vmul.bf16 %v946, %v1184
        %v1253 = vmul.bf16 %v947, %v1185
        %v1254 = vmul.bf16 %v948, %v1186
        %v1255 = vmul.bf16 %v949, %v1187
        %v1256 = vmul.bf16 %v950, %v1188
        %v1257 = vmul.bf16 %v951, %v1189
        %v1258 = vmul.bf16 %v952, %v1190
        %v1259 = vmul.bf16 %v953, %v1191
        %v1260 = vmul.bf16 %v954, %v1192
        %v1261 = vmul.bf16 %v955, %v1193
        %v1262 = vmul.bf16 %v956, %v1194
        %v1263 = vmul.bf16 %v957, %v1195
        %v1264 = vmul.bf16 %v958, %v1196
        %v1265 = vmul.bf16 %v959, %v1197
        %v1266 = vmul.bf16 %v960, %v1198
        %v1267 = vmul.bf16 %v961, %v1199
        %v1268 = vmul.bf16 %v962, %v1200
        %v1269 = vmul.bf16 %v963, %v1201
        %v1270 = vmul.bf16 %v964, %v1202
        %v1271 = vmul.bf16 %v965, %v1203
        %v1272 = vmul.bf16 %v966, %v1204
        %v1273 = vmul.bf16 %v967, %v1205
        %v1274 = vmul.bf16 %v968, %v1206
        %v1275 = vmul.bf16 %v969, %v1207
        %v1276 = vmul.bf16 %v970, %v1208
        %v1277 = vmul.bf16 %v971, %v1209
        %v1278 = vmul.bf16 %v972, %v1210
        %v1279 = vmul.bf16 %v973, %v1211
        %v1280 = vmul.bf16 %v974, %v1212
        %v1281 = vmul.bf16 %v975, %v1213
        %v1282 = vmul.bf16 %v976, %v1214
        %v1283 = vmul.bf16 %v977, %v1215
        %v1284 = vmul.bf16 %v978, %v1216
        %v1285 = vmul.bf16 %v979, %v1217
        %v1294 = vunpack.c.l.b16 %v1252
        %v1295 = vunpack.c.h.b16 %v1252
        %v1296 = vunpack.c.l.b16 %v1253
        %v1297 = vunpack.c.h.b16 %v1253
        %v1298 = vunpack.c.l.b16 %v1254
        %v1299 = vunpack.c.h.b16 %v1254
        %v1300 = vunpack.c.l.b16 %v1255
        %v1301 = vunpack.c.h.b16 %v1255
        %v1302 = vunpack.c.l.b16 %v1256
        %v1303 = vunpack.c.h.b16 %v1256
        %v1304 = vunpack.c.l.b16 %v1257
        %v1305 = vunpack.c.h.b16 %v1257
        %v1306 = vunpack.c.l.b16 %v1258
        %v1307 = vunpack.c.h.b16 %v1258
        %v1308 = vunpack.c.l.b16 %v1259
        %v1309 = vunpack.c.h.b16 %v1259
        %v1310 = vpack.c.b16 %v1294, %v1294
        %v1311 = vpack.c.b16 %v1295, %v1295
        %v1312 = vpack.c.b16 %v1296, %v1296
        %v1313 = vpack.c.b16 %v1297, %v1297
        %v1314 = vpack.c.b16 %v1298, %v1298
        %v1315 = vpack.c.b16 %v1299, %v1299
        %v1316 = vpack.c.b16 %v1300, %v1300
        %v1317 = vpack.c.b16 %v1301, %v1301
        %v1318 = vpack.c.b16 %v1302, %v1302
        %v1319 = vpack.c.b16 %v1303, %v1303
        %v1320 = vpack.c.b16 %v1304, %v1304
        %v1321 = vpack.c.b16 %v1305, %v1305
        %v1322 = vpack.c.b16 %v1306, %v1306
        %v1323 = vpack.c.b16 %v1307, %v1307
        %v1324 = vpack.c.b16 %v1308, %v1308
        %v1325 = vpack.c.b16 %v1309, %v1309
        %vm1326 = vsmask.f32 3328
        %vm1327 = vsmask.f32 7440
        %vm1328 = vmor %vm1326, %vm1327
        %v1330 = vshrl.u32 %v1310, 16
        %v1332 = vrot.slane %v1330, 4
        %v1333 = vshll.u32 %v1310, 16
        %v1335 = vrot.slane %v1333, 5
        %v1336 = vor.u32 %v1332, %v1335
        %v1337 = vrot.slane %v1336, 4
        %v1339 = vshll.u32 %v1311, 16
        %v1341 = vrot.slane %v1339, 5
        %v1342 = vsel %vm1328, %v1337, %v1341
        %v1344 = vshrl.u32 %v1312, 16
        %v1346 = vrot.slane %v1344, 4
        %v1347 = vshll.u32 %v1312, 16
        %v1349 = vrot.slane %v1347, 5
        %v1350 = vor.u32 %v1346, %v1349
        %v1351 = vrot.slane %v1350, 4
        %v1353 = vshll.u32 %v1313, 16
        %v1355 = vrot.slane %v1353, 5
        %v1356 = vsel %vm1328, %v1351, %v1355
        %v1358 = vshrl.u32 %v1314, 16
        %v1360 = vrot.slane %v1358, 4
        %v1361 = vshll.u32 %v1314, 16
        %v1363 = vrot.slane %v1361, 5
        %v1364 = vor.u32 %v1360, %v1363
        %v1365 = vrot.slane %v1364, 4
        %v1367 = vshll.u32 %v1315, 16
        %v1369 = vrot.slane %v1367, 5
        %v1370 = vsel %vm1328, %v1365, %v1369
        %v1372 = vshrl.u32 %v1316, 16
        %v1374 = vrot.slane %v1372, 4
        %v1375 = vshll.u32 %v1316, 16
        %v1377 = vrot.slane %v1375, 5
        %v1378 = vor.u32 %v1374, %v1377
        %v1379 = vrot.slane %v1378, 4
        %v1381 = vshll.u32 %v1317, 16
        %v1383 = vrot.slane %v1381, 5
        %v1384 = vsel %vm1328, %v1379, %v1383
        %v1386 = vshrl.u32 %v1318, 16
        %v1388 = vrot.slane %v1386, 4
        %v1389 = vshll.u32 %v1318, 16
        %v1391 = vrot.slane %v1389, 5
        %v1392 = vor.u32 %v1388, %v1391
        %v1393 = vrot.slane %v1392, 4
        %v1395 = vshll.u32 %v1319, 16
        %v1397 = vrot.slane %v1395, 5
        %v1398 = vsel %vm1328, %v1393, %v1397
        %v1400 = vshrl.u32 %v1320, 16
        %v1402 = vrot.slane %v1400, 4
        %v1403 = vshll.u32 %v1320, 16
        %v1405 = vrot.slane %v1403, 5
        %v1406 = vor.u32 %v1402, %v1405
        %v1407 = vrot.slane %v1406, 4
        %v1409 = vshll.u32 %v1321, 16
        %v1411 = vrot.slane %v1409, 5
        %v1412 = vsel %vm1328, %v1407, %v1411
        %v1414 = vshrl.u32 %v1322, 16
        %v1416 = vrot.slane %v1414, 4
        %v1417 = vshll.u32 %v1322, 16
        %v1419 = vrot.slane %v1417, 5
        %v1420 = vor.u32 %v1416, %v1419
        %v1421 = vrot.slane %v1420, 4
        %v1423 = vshll.u32 %v1323, 16
        %v1425 = vrot.slane %v1423, 5
        %v1426 = vsel %vm1328, %v1421, %v1425
        %v1428 = vshrl.u32 %v1324, 16
        %v1430 = vrot.slane %v1428, 4
        %v1431 = vshll.u32 %v1324, 16
        %v1433 = vrot.slane %v1431, 5
        %v1434 = vor.u32 %v1430, %v1433
        %v1435 = vrot.slane %v1434, 4
        %v1437 = vshll.u32 %v1325, 16
        %v1439 = vrot.slane %v1437, 5
        %v1440 = vsel %vm1328, %v1435, %v1439
        %v1449 = vunpack.c.l.b16 %v1270
        %v1450 = vunpack.c.h.b16 %v1270
        %v1451 = vunpack.c.l.b16 %v1271
        %v1452 = vunpack.c.h.b16 %v1271
        %v1453 = vunpack.c.l.b16 %v1272
        %v1454 = vunpack.c.h.b16 %v1272
        %v1455 = vunpack.c.l.b16 %v1273
        %v1456 = vunpack.c.h.b16 %v1273
        %v1457 = vunpack.c.l.b16 %v1274
        %v1458 = vunpack.c.h.b16 %v1274
        %v1459 = vunpack.c.l.b16 %v1275
        %v1460 = vunpack.c.h.b16 %v1275
        %v1461 = vunpack.c.l.b16 %v1276
        %v1462 = vunpack.c.h.b16 %v1276
        %v1463 = vunpack.c.l.b16 %v1277
        %v1464 = vunpack.c.h.b16 %v1277
        %v1465 = vpack.c.b16 %v1449, %v1449
        %v1466 = vpack.c.b16 %v1450, %v1450
        %v1467 = vpack.c.b16 %v1451, %v1451
        %v1468 = vpack.c.b16 %v1452, %v1452
        %v1469 = vpack.c.b16 %v1453, %v1453
        %v1470 = vpack.c.b16 %v1454, %v1454
        %v1471 = vpack.c.b16 %v1455, %v1455
        %v1472 = vpack.c.b16 %v1456, %v1456
        %v1473 = vpack.c.b16 %v1457, %v1457
        %v1474 = vpack.c.b16 %v1458, %v1458
        %v1475 = vpack.c.b16 %v1459, %v1459
        %v1476 = vpack.c.b16 %v1460, %v1460
        %v1477 = vpack.c.b16 %v1461, %v1461
        %v1478 = vpack.c.b16 %v1462, %v1462
        %v1479 = vpack.c.b16 %v1463, %v1463
        %v1480 = vpack.c.b16 %v1464, %v1464
        %v1482 = vshrl.u32 %v1465, 16
        %v1484 = vrot.slane %v1482, 4
        %v1485 = vshll.u32 %v1465, 16
        %v1487 = vrot.slane %v1485, 5
        %v1488 = vor.u32 %v1484, %v1487
        %v1489 = vrot.slane %v1488, 4
        %v1491 = vshll.u32 %v1466, 16
        %v1493 = vrot.slane %v1491, 5
        %v1494 = vsel %vm1328, %v1489, %v1493
        %v1496 = vshrl.u32 %v1467, 16
        %v1498 = vrot.slane %v1496, 4
        %v1499 = vshll.u32 %v1467, 16
        %v1501 = vrot.slane %v1499, 5
        %v1502 = vor.u32 %v1498, %v1501
        %v1503 = vrot.slane %v1502, 4
        %v1505 = vshll.u32 %v1468, 16
        %v1507 = vrot.slane %v1505, 5
        %v1508 = vsel %vm1328, %v1503, %v1507
        %v1510 = vshrl.u32 %v1469, 16
        %v1512 = vrot.slane %v1510, 4
        %v1513 = vshll.u32 %v1469, 16
        %v1515 = vrot.slane %v1513, 5
        %v1516 = vor.u32 %v1512, %v1515
        %v1517 = vrot.slane %v1516, 4
        %v1519 = vshll.u32 %v1470, 16
        %v1521 = vrot.slane %v1519, 5
        %v1522 = vsel %vm1328, %v1517, %v1521
        %v1524 = vshrl.u32 %v1471, 16
        %v1526 = vrot.slane %v1524, 4
        %v1527 = vshll.u32 %v1471, 16
        %v1529 = vrot.slane %v1527, 5
        %v1530 = vor.u32 %v1526, %v1529
        %v1531 = vrot.slane %v1530, 4
        %v1533 = vshll.u32 %v1472, 16
        %v1535 = vrot.slane %v1533, 5
        %v1536 = vsel %vm1328, %v1531, %v1535
        %v1538 = vshrl.u32 %v1473, 16
        %v1540 = vrot.slane %v1538, 4
        %v1541 = vshll.u32 %v1473, 16
        %v1543 = vrot.slane %v1541, 5
        %v1544 = vor.u32 %v1540, %v1543
        %v1545 = vrot.slane %v1544, 4
        %v1547 = vshll.u32 %v1474, 16
        %v1549 = vrot.slane %v1547, 5
        %v1550 = vsel %vm1328, %v1545, %v1549
        %v1552 = vshrl.u32 %v1475, 16
        %v1554 = vrot.slane %v1552, 4
        %v1555 = vshll.u32 %v1475, 16
        %v1557 = vrot.slane %v1555, 5
        %v1558 = vor.u32 %v1554, %v1557
        %v1559 = vrot.slane %v1558, 4
        %v1561 = vshll.u32 %v1476, 16
        %v1563 = vrot.slane %v1561, 5
        %v1564 = vsel %vm1328, %v1559, %v1563
        %v1566 = vshrl.u32 %v1477, 16
        %v1568 = vrot.slane %v1566, 4
        %v1569 = vshll.u32 %v1477, 16
        %v1571 = vrot.slane %v1569, 5
        %v1572 = vor.u32 %v1568, %v1571
        %v1573 = vrot.slane %v1572, 4
        %v1575 = vshll.u32 %v1478, 16
        %v1577 = vrot.slane %v1575, 5
        %v1578 = vsel %vm1328, %v1573, %v1577
        %v1580 = vshrl.u32 %v1479, 16
        %v1582 = vrot.slane %v1580, 4
        %v1583 = vshll.u32 %v1479, 16
        %v1585 = vrot.slane %v1583, 5
        %v1586 = vor.u32 %v1582, %v1585
        %v1587 = vrot.slane %v1586, 4
        %v1589 = vshll.u32 %v1480, 16
        %v1591 = vrot.slane %v1589, 5
        %v1592 = vsel %vm1328, %v1587, %v1591
        %v1594 = vunpack.c.l.b16 %v1260
        %v1595 = vunpack.c.h.b16 %v1260
        %v1596 = vpack.c.b16 %v1594, %v1594
        %v1597 = vpack.c.b16 %v1595, %v1595
        %v1599 = vshrl.u32 %v1596, 16
        %v1601 = vrot.slane %v1599, 4
        %v1602 = vshll.u32 %v1596, 16
        %v1604 = vrot.slane %v1602, 5
        %v1605 = vor.u32 %v1601, %v1604
        %v1606 = vrot.slane %v1605, 4
        %v1608 = vshll.u32 %v1597, 16
        %v1610 = vrot.slane %v1608, 5
        %v1611 = vsel %vm1328, %v1606, %v1610
        %v1612 = vpack.c.b16 %v1296, %v1294
        %v1613 = vpack.c.b16 %v1300, %v1298
        %v1614 = vpack.c.b16 %v1304, %v1302
        %v1615 = vpack.c.b16 %v1308, %v1306
        %v1624 = vunpack.c.l.b16 %v1261
        %v1625 = vunpack.c.l.b16 %v1262
        %v1626 = vunpack.c.l.b16 %v1263
        %v1627 = vunpack.c.l.b16 %v1264
        %v1628 = vunpack.c.l.b16 %v1265
        %v1629 = vunpack.c.l.b16 %v1266
        %v1630 = vunpack.c.l.b16 %v1267
        %v1631 = vunpack.c.l.b16 %v1268
        %v1632 = vpack.c.b16 %v1625, %v1624
        %v1633 = vpack.c.b16 %v1627, %v1626
        %v1634 = vpack.c.b16 %v1629, %v1628
        %v1635 = vpack.c.b16 %v1631, %v1630
        %1636 = vrot.lane.b32.xlu0 %v1632, 4
        %v1637 = vpop.permute.xlu0 %1636
        %1638 = vrot.lane.b32.xlu0 %v1633, 4
        %v1639 = vpop.permute.xlu0 %1638
        %1640 = vrot.lane.b32.xlu0 %v1634, 4
        %v1641 = vpop.permute.xlu0 %1640
        %1642 = vrot.lane.b32.xlu0 %v1635, 4
        %v1643 = vpop.permute.xlu0 %1642
        %v1644 = vunpack.c.l.b16 %v1342
        %v1645 = vunpack.c.l.b16 %v1356
        %v1646 = vunpack.c.l.b16 %v1370
        %v1647 = vunpack.c.l.b16 %v1384
        %v1648 = vunpack.c.l.b16 %v1398
        %v1649 = vunpack.c.l.b16 %v1412
        %v1650 = vunpack.c.l.b16 %v1426
        %v1651 = vunpack.c.l.b16 %v1440
        %v1652 = vpack.c.b16 %v1645, %v1644
        %v1653 = vpack.c.b16 %v1647, %v1646
        %v1654 = vpack.c.b16 %v1649, %v1648
        %v1655 = vpack.c.b16 %v1651, %v1650
        %1656 = vrot.lane.b32.xlu0 %v1652, 8
        %v1657 = vpop.permute.xlu0 %1656
        %1658 = vrot.lane.b32.xlu0 %v1653, 8
        %v1659 = vpop.permute.xlu0 %1658
        %1660 = vrot.lane.b32.xlu0 %v1654, 8
        %v1661 = vpop.permute.xlu0 %1660
        %1662 = vrot.lane.b32.xlu0 %v1655, 8
        %v1663 = vpop.permute.xlu0 %1662
        %v1664 = vpack.c.b16 %v1451, %v1449
        %v1665 = vpack.c.b16 %v1455, %v1453
        %v1666 = vpack.c.b16 %v1459, %v1457
        %v1667 = vpack.c.b16 %v1463, %v1461
        %1668 = vrot.lane.b32.xlu0 %v1664, 12
        %v1669 = vpop.permute.xlu0 %1668
        %1670 = vrot.lane.b32.xlu0 %v1665, 12
        %v1671 = vpop.permute.xlu0 %1670
        %1672 = vrot.lane.b32.xlu0 %v1666, 12
        %v1673 = vpop.permute.xlu0 %1672
        %1674 = vrot.lane.b32.xlu0 %v1667, 12
        %v1675 = vpop.permute.xlu0 %1674
        %v1684 = vunpack.c.l.b16 %v1278
        %v1685 = vunpack.c.l.b16 %v1279
        %v1686 = vunpack.c.l.b16 %v1280
        %v1687 = vunpack.c.l.b16 %v1281
        %v1688 = vunpack.c.l.b16 %v1282
        %v1689 = vunpack.c.l.b16 %v1283
        %v1690 = vunpack.c.l.b16 %v1284
        %v1691 = vunpack.c.l.b16 %v1285
        %v1692 = vpack.c.b16 %v1685, %v1684
        %v1693 = vpack.c.b16 %v1687, %v1686
        %v1694 = vpack.c.b16 %v1689, %v1688
        %v1695 = vpack.c.b16 %v1691, %v1690
        %1696 = vrot.lane.b32.xlu0 %v1692, 16
        %v1697 = vpop.permute.xlu0 %1696
        %1698 = vrot.lane.b32.xlu0 %v1693, 16
        %v1699 = vpop.permute.xlu0 %1698
        %1700 = vrot.lane.b32.xlu0 %v1694, 16
        %v1701 = vpop.permute.xlu0 %1700
        %1702 = vrot.lane.b32.xlu0 %v1695, 16
        %v1703 = vpop.permute.xlu0 %1702
        %v1704 = vunpack.c.l.b16 %v1494
        %v1705 = vunpack.c.l.b16 %v1508
        %v1706 = vunpack.c.l.b16 %v1522
        %v1707 = vunpack.c.l.b16 %v1536
        %v1708 = vunpack.c.l.b16 %v1550
        %v1709 = vunpack.c.l.b16 %v1564
        %v1710 = vunpack.c.l.b16 %v1578
        %v1711 = vunpack.c.l.b16 %v1592
        %v1712 = vpack.c.b16 %v1705, %v1704
        %v1713 = vpack.c.b16 %v1707, %v1706
        %v1714 = vpack.c.b16 %v1709, %v1708
        %v1715 = vpack.c.b16 %v1711, %v1710
        %1716 = vrot.lane.b32.xlu0 %v1712, 20
        %v1717 = vpop.permute.xlu0 %1716
        %1718 = vrot.lane.b32.xlu0 %v1713, 20
        %v1719 = vpop.permute.xlu0 %1718
        %1720 = vrot.lane.b32.xlu0 %v1714, 20
        %v1721 = vpop.permute.xlu0 %1720
        %1722 = vrot.lane.b32.xlu0 %v1715, 20
        %v1723 = vpop.permute.xlu0 %1722
        %v1724 = vpack.c.b16 %v1298, %v1296
        %v1725 = vpack.c.b16 %v1302, %v1300
        %v1726 = vpack.c.b16 %v1306, %v1304
        %v1727 = vpack.c.b16 %v1594, %v1308
        %1728 = vrot.lane.b32.xlu0 %v1724, 24
        %v1729 = vpop.permute.xlu0 %1728
        %1730 = vrot.lane.b32.xlu0 %v1725, 24
        %v1731 = vpop.permute.xlu0 %1730
        %1732 = vrot.lane.b32.xlu0 %v1726, 24
        %v1733 = vpop.permute.xlu0 %1732
        %1734 = vrot.lane.b32.xlu0 %v1727, 24
        %v1735 = vpop.permute.xlu0 %1734
        %v1737 = vunpack.c.l.b16 %v1269
        %v1738 = vpack.c.b16 %v1626, %v1625
        %v1739 = vpack.c.b16 %v1628, %v1627
        %v1740 = vpack.c.b16 %v1630, %v1629
        %v1741 = vpack.c.b16 %v1737, %v1631
        %1742 = vrot.lane.b32.xlu0 %v1738, 28
        %v1743 = vpop.permute.xlu0 %1742
        %1744 = vrot.lane.b32.xlu0 %v1739, 28
        %v1745 = vpop.permute.xlu0 %1744
        %1746 = vrot.lane.b32.xlu0 %v1740, 28
        %v1747 = vpop.permute.xlu0 %1746
        %1748 = vrot.lane.b32.xlu0 %v1741, 28
        %v1749 = vpop.permute.xlu0 %1748
        %v1750 = vunpack.c.l.b16 %v1611
        %v1751 = vpack.c.b16 %v1646, %v1645
        %v1752 = vpack.c.b16 %v1648, %v1647
        %v1753 = vpack.c.b16 %v1650, %v1649
        %v1754 = vpack.c.b16 %v1750, %v1651
        %1755 = vrot.lane.b32.xlu0 %v1751, 32
        %v1756 = vpop.permute.xlu0 %1755
        %1757 = vrot.lane.b32.xlu0 %v1752, 32
        %v1758 = vpop.permute.xlu0 %1757
        %1759 = vrot.lane.b32.xlu0 %v1753, 32
        %v1760 = vpop.permute.xlu0 %1759
        %1761 = vrot.lane.b32.xlu0 %v1754, 32
        %v1762 = vpop.permute.xlu0 %1761
        %vm1763 = vcmask 31744
        %v1766 = vsel %vm1763, %v1612, %v1637
        %v1769 = vsel %vm1763, %v1613, %v1639
        %v1772 = vsel %vm1763, %v1614, %v1641
        %v1775 = vsel %vm1763, %v1615, %v1643
        %vm1776 = vcmask 64512
        %v1778 = vsel %vm1776, %v1766, %v1657
        %v1780 = vsel %vm1776, %v1769, %v1659
        %v1782 = vsel %vm1776, %v1772, %v1661
        %v1784 = vsel %vm1776, %v1775, %v1663
        %vm1785 = vcmask 97280
        %v1787 = vsel %vm1785, %v1778, %v1669
        %v1789 = vsel %vm1785, %v1780, %v1671
        %v1791 = vsel %vm1785, %v1782, %v1673
        %v1793 = vsel %vm1785, %v1784, %v1675
        %vm1794 = vcmask 130048
        %v1796 = vsel %vm1794, %v1787, %v1697
        %v1798 = vsel %vm1794, %v1789, %v1699
        %v1800 = vsel %vm1794, %v1791, %v1701
        %v1802 = vsel %vm1794, %v1793, %v1703
        %vm1803 = vcmask 162816
        %v1805 = vsel %vm1803, %v1796, %v1717
        %v1807 = vsel %vm1803, %v1798, %v1719
        %v1809 = vsel %vm1803, %v1800, %v1721
        %v1811 = vsel %vm1803, %v1802, %v1723
        %vm1812 = vcmask 195584
        %v1814 = vsel %vm1812, %v1805, %v1729
        %v1816 = vsel %vm1812, %v1807, %v1731
        %v1818 = vsel %vm1812, %v1809, %v1733
        %v1820 = vsel %vm1812, %v1811, %v1735
        %vm1821 = vcmask 228352
        %v1823 = vsel %vm1821, %v1814, %v1743
        %v1825 = vsel %vm1821, %v1816, %v1745
        %v1827 = vsel %vm1821, %v1818, %v1747
        %v1829 = vsel %vm1821, %v1820, %v1749
        %vm1830 = vcmask 261120
        %v1832 = vsel %vm1830, %v1823, %v1756
        %v1834 = vsel %vm1830, %v1825, %v1758
        %v1836 = vsel %vm1830, %v1827, %v1760
        %v1838 = vsel %vm1830, %v1829, %v1762
        %v1839 = vld [vmem:[%s4] sm:$0xf]
        %v1840 = vld [vmem:[%s4 + $0x4] sm:$0xf]
        %v1841 = vld [vmem:[%s4 + $0x8] sm:$0xf]
        %v1842 = vld [vmem:[%s4 + $0xc] sm:$0xf]
        %v1843 = vld [vmem:[%s4 + $0x10] sm:$0x3]
        %v1849 = vunpack.c.l.b16 %v1839
        %v1850 = vunpack.c.l.b16 %v1840
        %v1851 = vunpack.c.l.b16 %v1841
        %v1852 = vunpack.c.l.b16 %v1842
        %v1853 = vunpack.c.l.b16 %v1843
        %v1854 = vpack.c.b16 %v1850, %v1849
        %v1855 = vpack.c.b16 %v1852, %v1851
        %v1856 = vpack.c.b16 %v1853, %v1853
        %vm1859 = vcmask 293888
        %v1860 = vsel %vm1859, %v1832, 0
        %v1862 = vsel %vm1859, %v1834, 0
        %v1864 = vsel %vm1859, %v1836, 0
        %v1866 = vsel %vm1859, %v1838, 0
        %vm1868 = vcmask 1041408
        %v1870 = vsel %vm1868, %v1856, 0
        %1872 = vmatprep.subr.bf16.mxu0 0
        %1873 = vmatpush1.bf16.msra.mxu0 0
        %1874 = vmatprep.subr.bf16.mxu0 0
        %1875 = vmatpush1.bf16.msra.mxu0 0
        %1876 = vmatprep.subr.bf16.mxu0 0
        %1877 = vmatpush1.bf16.msra.mxu0 0
        %1878 = vmatprep.subr.bf16.mxu0 0
        %1879 = vmatpush1.bf16.msra.mxu0 0
        %1880 = vmatprep.subr.bf16.mxu0 0
        %1881 = vmatpush1.bf16.msra.mxu0 0
        %1882 = vmatprep.subr.bf16.mxu0 0
        %1883 = vmatpush1.bf16.msra.mxu0 %v1870
        %1884 = vmatprep.subr.bf16.mxu0 0
        %1885 = vmatpush1.bf16.msra.mxu0 %v1855
        %1886 = vmatprep.subr.bf16.mxu0 0
        %1887 = vmatpush1.bf16.msra.mxu0 %v1854
        %1888 = vmatprep.subr.bf16.mxu0 0
        %1889 = vmatpush2.bf16.msra.mxu0 0
        %1890 = vmatprep.subr.bf16.mxu0 0
        %1891 = vmatpush2.bf16.msra.mxu0 0
        %1892 = vmatprep.subr.bf16.mxu0 0
        %1893 = vmatpush2.bf16.msra.mxu0 0
        %1894 = vmatprep.subr.bf16.mxu0 0
        %1895 = vmatpush2.bf16.msra.mxu0 0
        %1896 = vmatprep.subr.bf16.mxu0 0
        %1897 = vmatpush2.bf16.msra.mxu0 0
        %1898 = vmatprep.subr.bf16.mxu0 0
        %1899 = vmatpush2.bf16.msra.mxu0 0
        %1900 = vmatprep.subr.bf16.mxu0 0
        %1901 = vmatpush2.bf16.msra.mxu0 0
        %1902 = vmatprep.subr.bf16.mxu0 0
        %1903 = vmatpush2.bf16.msra.mxu0 0
        %1904 = vmatprep.mubr.bf16.mxu0 0
        %1905 = vmatmul.mubr.bf16.gmra.mxu0 %v1860
        %v1906 = vpop.f32.mrf.mxu0
        %v1907 = vadd.f32 0.0, %v1906
        %v1908 = vpop.f32.mrf.mxu0
        %v1909 = vpop.f32.mrf.mxu0
        %v1910 = vadd.f32 0.0, %v1909
        %v1911 = vpop.f32.mrf.mxu0
        %1912 = vmatprep.mubr.bf16.mxu0 0
        %1913 = vmatmul.mubr.bf16.gmra.mxu0 %v1862
        %v1914 = vpop.f32.mrf.mxu0
        %v1915 = vadd.f32 0.0, %v1914
        %v1916 = vpop.f32.mrf.mxu0
        %v1917 = vpop.f32.mrf.mxu0
        %v1918 = vadd.f32 0.0, %v1917
        %v1919 = vpop.f32.mrf.mxu0
        %1920 = vmatprep.mubr.bf16.mxu0 0
        %1921 = vmatmul.mubr.bf16.gmra.mxu0 %v1864
        %v1922 = vpop.f32.mrf.mxu0
        %v1923 = vadd.f32 0.0, %v1922
        %v1924 = vpop.f32.mrf.mxu0
        %v1925 = vpop.f32.mrf.mxu0
        %v1926 = vadd.f32 0.0, %v1925
        %v1927 = vpop.f32.mrf.mxu0
        %1928 = vmatprep.mubr.bf16.mxu0 0
        %1929 = vmatmul.mubr.bf16.gmra.mxu0 %v1866
        %v1930 = vpop.f32.mrf.mxu0
        %v1931 = vadd.f32 0.0, %v1930
        %v1932 = vpop.f32.mrf.mxu0
        %v1933 = vpop.f32.mrf.mxu0
        %v1934 = vadd.f32 0.0, %v1933
        %v1935 = vpop.f32.mrf.mxu0
        %1936 = vdwg.mxu0
        %v1937 = vpack.c.bf16 %v1907, %v1907
        %v1938 = vpack.c.bf16 %v1910, %v1910
        %v1939 = vpack.c.bf16 %v1915, %v1915
        %v1940 = vpack.c.bf16 %v1918, %v1918
        %v1941 = vpack.c.bf16 %v1923, %v1923
        %v1942 = vpack.c.bf16 %v1926, %v1926
        %v1943 = vpack.c.bf16 %v1931, %v1931
        %v1944 = vpack.c.bf16 %v1934, %v1934
        %vm1945 = vcmask 27648
        %1946 = vst.msk [vmem:[%s586] sm:$0xf] %vm1945, %v1937
        %1947 = vst.msk [vmem:[%s586 + $0x4] sm:$0xf] %vm1945, %v1938
        %1948 = vst.msk [vmem:[%s586 + $0x8] sm:$0xf] %vm1945, %v1939
        %1949 = vst.msk [vmem:[%s586 + $0xc] sm:$0xf] %vm1945, %v1940
        %1950 = vst.msk [vmem:[%s586 + $0x10] sm:$0xf] %vm1945, %v1941
        %1951 = vst.msk [vmem:[%s586 + $0x14] sm:$0xf] %vm1945, %v1942
        %1952 = vst.msk [vmem:[%s586 + $0x18] sm:$0xf] %vm1945, %v1943
        %1953 = vst.msk [vmem:[%s586 + $0x1c] sm:$0xf] %vm1945, %v1944
        %v1954 = vsel %vm1763, %v1907, 0.0
        %v1955 = vsel %vm1763, %v1910, 0.0
        %v1956 = vadd.f32 %v1954, %v1955
        %v1957 = vsel %vm1763, %v1915, 0.0
        %v1958 = vadd.f32 %v1956, %v1957
        %v1959 = vsel %vm1763, %v1918, 0.0
        %v1960 = vadd.f32 %v1958, %v1959
        %v1961 = vsel %vm1763, %v1923, 0.0
        %v1962 = vadd.f32 %v1960, %v1961
        %v1963 = vsel %vm1763, %v1926, 0.0
        %v1964 = vadd.f32 %v1962, %v1963
        %v1965 = vsel %vm1763, %v1931, 0.0
        %v1966 = vadd.f32 %v1964, %v1965
        %v1967 = vsel %vm1763, %v1934, 0.0
        %v1968 = vadd.f32 %v1966, %v1967
        %v1969 = vrot.slane %v1968, 4
        %v1970 = vadd.f32 %v1968, %v1969
        %v1971 = vrot.slane %v1970, 2
        %v1972 = vadd.f32 %v1970, %v1971
        %v1973 = vrot.slane %v1972, 1
        %v1974 = vadd.f32 %v1972, %v1973
        %v1975 = vmul.f32 %v1907, %v1907
        %v1976 = vmul.f32 %v1910, %v1910
        %v1977 = vmul.f32 %v1915, %v1915
        %v1978 = vmul.f32 %v1918, %v1918
        %v1979 = vmul.f32 %v1923, %v1923
        %v1980 = vmul.f32 %v1926, %v1926
        %v1981 = vmul.f32 %v1931, %v1931
        %v1982 = vmul.f32 %v1934, %v1934
        %v1983 = vsel %vm1763, %v1975, 0.0
        %v1984 = vsel %vm1763, %v1976, 0.0
        %v1985 = vadd.f32 %v1983, %v1984
        %v1986 = vsel %vm1763, %v1977, 0.0
        %v1987 = vadd.f32 %v1985, %v1986
        %v1988 = vsel %vm1763, %v1978, 0.0
        %v1989 = vadd.f32 %v1987, %v1988
        %v1990 = vsel %vm1763, %v1979, 0.0
        %v1991 = vadd.f32 %v1989, %v1990
        %v1992 = vsel %vm1763, %v1980, 0.0
        %v1993 = vadd.f32 %v1991, %v1992
        %v1994 = vsel %vm1763, %v1981, 0.0
        %v1995 = vadd.f32 %v1993, %v1994
        %v1996 = vsel %vm1763, %v1982, 0.0
        %v1997 = vadd.f32 %v1995, %v1996
        %v1998 = vrot.slane %v1997, 4
        %v1999 = vadd.f32 %v1997, %v1998
        %v2000 = vrot.slane %v1999, 2
        %v2001 = vadd.f32 %v1999, %v2000
        %v2002 = vrot.slane %v2001, 1
        %v2003 = vadd.f32 %v2001, %v2002
        %vm2004 = vcmask 1040384
        %v2005 = vsel %vm2004, %v1974, %v2003
        %vm2006 = vcmask 25600
        %2007 = vst.msk [vmem:[%s590] sm:$0x3] %vm2006, %v2005
        %p2008 = scmp.lt.s32.totalorder %s18, 1
        %s2009 = scalar_select %p2008, %s18, 1
        %s2010 = smul.addr %s2009, 8
        %s2011 = smul.addr %s2010, 4
        %s2012 = scalar_lea.vmem %s5, %s2011
        %p2013 = scmp.lt.s32.totalorder %s18, 1
        %s2014 = scalar_select %p2013, %s18, 1
        %s2015 = smul.addr %s2014, 2
        %s2016 = scalar_lea.vmem %s6, %s2015
        // Predicated region
        $region82: #{bottleneck_forward.5} parent=76 // pred_check
          %p2017 = pneg %p146
        $region83: #{bottleneck_forward.5} parent=76 // pred_check_branch
          %2019 = sbr.rel (%p2017) target = $region85
        $region84: #{bottleneck_forward.5} parent=76 // pred_region
          _
        $region85: #{bottleneck_forward.5} parent=76 // pred_fallthru
          _
        // Predicated region
        $region86: #{bottleneck_forward.5} parent=76 // pred_check
          %p2020 = pneg %p172
        $region87: #{bottleneck_forward.5} parent=76 // pred_check_branch
          %2022 = sbr.rel (%p2020) target = $region89
        $region88: #{bottleneck_forward.5} parent=76 // pred_region
          _
        $region89: #{bottleneck_forward.5} parent=76 // pred_fallthru
          _
      $region77: #{bottleneck_forward.5} parent=5 // pred_fallthru
        _
      %p2023 = scmp.le.s32.totalorder 2, %s13
      // Predicated region
      $region90: #{bottleneck_forward.5} parent=5 // pred_check
        %p2024 = pneg %p2023
      $region91: #{bottleneck_forward.5} parent=5 // pred_check_branch
        %2026 = sbr.rel (%p2024) target = $region93
      $region92: #{bottleneck_forward.5} parent=5 // pred_region
        %s2027 = ssub.s32 %s13, 2
        // Predicated region
        $region94: #{bottleneck_forward.5} parent=92 // pred_check
          %p2028 = pneg %p152
        $region95: #{bottleneck_forward.5} parent=92 // pred_check_branch
          %2030 = sbr.rel (%p2028) target = $region97
        $region96: #{bottleneck_forward.5} parent=92 // pred_region
          %p2031 = scmp.lt.s32.totalorder %s19, 1
          %s2032 = scalar_select %p2031, %s19, 1
          %s2033 = smul.addr %s2032, 8
          %s2034 = smul.addr %s2033, 4
          %s2035 = scalar_lea.vmem %s5, %s2034
        $region97: #{bottleneck_forward.5} parent=92 // pred_fallthru
          _
        // Predicated region
        $region98: #{bottleneck_forward.5} parent=92 // pred_check
          %p2036 = pneg %p178
        $region99: #{bottleneck_forward.5} parent=92 // pred_check_branch
          %2038 = sbr.rel (%p2036) target = $region101
        $region100: #{bottleneck_forward.5} parent=92 // pred_region
          %p2039 = scmp.lt.s32.totalorder %s19, 1
          %s2040 = scalar_select %p2039, %s19, 1
          %s2041 = smul.addr %s2040, 2
          %s2042 = scalar_lea.vmem %s6, %s2041
        $region101: #{bottleneck_forward.5} parent=92 // pred_fallthru
          _
      $region93: #{bottleneck_forward.5} parent=5 // pred_fallthru
        _
    $region6: #{bottleneck_forward.5} parent=1 // loop_footer
      %s17 = sadd.s32 1, %s13
    $region7: #{bottleneck_forward.5} parent=1 // loop_footer_branch
      %12 = sbr.rel target = $region3
    $region8: #{bottleneck_forward.5} parent=1 // loop_exit
      _

</llo_original>
